<compile_context>
chip_gen: v6e
topology: v6e:2x2x1
jax: 0.10.0
libtpu: 0.0.40
codegen_flags: <defaults>
</compile_context>

<pallas_src>
import jax
import jax.numpy as jnp
from jax.experimental import pallas as pl
from jax.experimental.pallas import tpu as pltpu

# Static geometry implied by the module (fc1 = 16*5*5 forces a 28x28 input:
# 28 ->conv 26 ->pool 13 ->conv 11 ->pool 5).
H0, W0, C0 = 28, 28, 3
K1, C1 = 3, 6
OH1, OW1 = H0 - K1 + 1, W0 - K1 + 1            # 26, 26
PH1, PW1 = OH1 // 2, OW1 // 2                  # 13, 13
K2, C2 = 3, 16
OH2, OW2 = PH1 - K2 + 1, PW1 - K2 + 1          # 11, 11
PH2, PW2 = OH2 // 2, OW2 // 2                  # 5, 5
F1, F2, F3 = 120, 84, 10
FPAD = 128                                     # lane-dense padding for the FC stack
LANES = 128                                    # padded input lane width (W0*C0=84 -> 128)

B_TILE = 8                                     # images per grid step
SLAB = 32                                      # padded rows per image (28 valid + 4 zero)
HALF = SLAB // 2                               # 16: per-image block pitch after stride-2 rows
TROWS = B_TILE * SLAB                          # 256: stacked input rows per grid step
R1 = TROWS - 2                                 # 254: conv1 output rows (junk rows unused)
RC1 = B_TILE * HALF - 1                        # 127: rows after stride-2 compaction
R2 = B_TILE * HALF - 3                         # 125: conv2 output rows
W1L = OW1 * C1                                 # 156: conv1 output lane width
W2L = OW2 * C2                                 # 176: conv2 output lane width
LP1 = W1L - C1                                 # 150: pooled1 lane width (wide, even-ow slots)
LP2 = W2L - C2                                 # 160: pooled2 lane width (wide, even-ow slots)


# ------------------------------ fused kernel ------------------------------- #

def _net_kernel(x_ref, t1_ref, b1_ref, t2_ref, b2_ref, sc1_ref, sfc_ref,
                wf1_ref, bf1_ref, wf2_ref, bf2_ref, wf3_ref, bf3_ref, o_ref):
    f32 = jnp.float32

    def mm(a, b):
        return jnp.dot(a, b, preferred_element_type=f32)

    x = x_ref[0]                                             # (256, 128): 8 stacked images

    # ---- conv1 (3x3 valid) + bias + ReLU: 3 Toeplitz GEMMs, static row-slice taps.
    # Image b lives in rows [b*32, b*32+27]; row b*32+oh of acc1 is its output row oh.
    acc1 = mm(x[0:R1, :], t1_ref[0])
    acc1 = acc1 + mm(x[1:R1 + 1, :], t1_ref[1])
    acc1 = acc1 + mm(x[2:R1 + 2, :], t1_ref[2])
    y1 = jnp.maximum(acc1 + b1_ref[...], 0.0)                # (254, 156)

    # ---- maxpool1 2x2: adjacent-row / adjacent-column max via shifted slices (VPU).
    m1 = jnp.maximum(y1[0:R1 - 1, :], y1[1:R1, :])           # (253, 156) m1[g]=max(y1[g],y1[g+1])
    m2 = jnp.maximum(m1[:, 0:LP1], m1[:, C1:W1L])            # (253, 150) column-pair max

    # ---- stride-2 row compaction (pool1): one 0/1 selection GEMM, p1[j] = m2[2j].
    p1 = mm(sc1_ref[...], m2)                                # (127, 150)

    # ---- conv2 + bias + ReLU (pool1 lane compaction folded into t2 weights).
    acc2 = mm(p1[0:R2, :], t2_ref[0])
    acc2 = acc2 + mm(p1[1:R2 + 1, :], t2_ref[1])
    acc2 = acc2 + mm(p1[2:R2 + 2, :], t2_ref[2])
    y2 = jnp.maximum(acc2 + b2_ref[...], 0.0)                # (125, 176)

    # ---- maxpool2 2x2.
    n1 = jnp.maximum(y2[0:R2 - 1, :], y2[1:R2, :])           # (124, 176)
    n2 = jnp.maximum(n1[:, 0:LP2], n1[:, C2:W2L])            # (124, 160)

    # ---- fc1: gather the 5 pooled rows of every image (tiny precomputed selection
    #      GEMMs) and contract against per-row weight slabs -> batched (8,128) GEMMs.
    #      Pool2 lane compaction + torch CHW flatten are folded into wf1_ref.
    f = jnp.zeros((B_TILE, FPAD), f32)
    for r in range(PH2):
        g = mm(sfc_ref[r], n2)                               # (8, 160) rows b*16 + 2r
        f = f + mm(g, wf1_ref[r])                            # (8, 128)
    z1 = jnp.maximum(f + bf1_ref[...], 0.0)                  # (8, 128); lanes >= 120 are 0
    z2 = jnp.maximum(mm(z1, wf2_ref[...]) + bf2_ref[...], 0.0)
    o_ref[0] = mm(z2, wf3_ref[...]) + bf3_ref[...]           # lanes >= 10 are 0


# --------------------------- weight prep (run once) ------------------------- #

def _toeplitz(w, w_in):
    # w: (Cout, Cin, kh, kw) PyTorch layout -> T: (kh, w_in*Cin, OW*Cout) with
    # T[i, w*Cin+cin, ow*Cout+cout] = w[cout, cin, i, w-ow] for 0 <= w-ow < kw.
    cout, cin, kh, kw = w.shape
    ow_n = w_in - kw + 1
    wt = jnp.transpose(w, (2, 3, 1, 0))                      # (kh, kw, Cin, Cout)
    wi = jnp.arange(w_in)[:, None]
    oi = jnp.arange(ow_n)[None, :]
    j = wi - oi                                              # (w_in, OW)
    valid = ((j >= 0) & (j < kw)).astype(w.dtype)
    jc = jnp.clip(j, 0, kw - 1)
    t = wt[:, jc, :, :] * valid[None, :, :, None, None]      # (kh, w_in, OW, Cin, Cout)
    t = jnp.transpose(t, (0, 1, 3, 2, 4))                    # (kh, w_in, Cin, OW, Cout)
    return t.reshape(kh, w_in * cin, ow_n * cout)


def prepare_params(params):
    """One-time prep: Toeplitz conv weights, folded pooling/flatten, sel constants."""
    f32 = jnp.float32
    w1, b1 = params["w1"].astype(f32), params["b1"].astype(f32)
    w2, b2 = params["w2"].astype(f32), params["b2"].astype(f32)
    wf1, bf1 = params["wf1"].astype(f32), params["bf1"].astype(f32)
    wf2, bf2 = params["wf2"].astype(f32), params["bf2"].astype(f32)
    wf3, bf3 = params["wf3"].astype(f32), params["bf3"].astype(f32)

    # conv1 Toeplitz, K padded 84 -> 128 to match the lane-padded input.
    t1 = _toeplitz(w1, W0)                                   # (3, 84, 156)
    t1p = jnp.zeros((K1, LANES, W1L), f32).at[:, :W0 * C0, :].set(t1)

    # conv2 Toeplitz with pool1's stride-2 lane compaction folded in (wide 150-lane K).
    t2 = _toeplitz(w2, PW1)                                  # (3, 78, 176)
    sel_cols = jnp.zeros((OW1, PW1), f32).at[2 * jnp.arange(PW1), jnp.arange(PW1)].set(1.0)
    pc1 = jnp.kron(sel_cols, jnp.eye(C1, dtype=f32))         # (156, 78)
    t2p = jnp.einsum("lr,irn->iln", pc1, t2)[:, :LP1, :]     # (3, 150, 176)

    b1w = jnp.tile(b1, OW1).reshape(1, W1L)                  # (1, 156)
    b2w = jnp.tile(b2, OW2).reshape(1, W2L)                  # (1, 176)

    # Pool1 stride-2 row compaction: sc1[j, 2j] = 1.
    sc1 = jnp.zeros((RC1, R1 - 1), f32).at[jnp.arange(RC1), 2 * jnp.arange(RC1)].set(1.0)
    # fc1 row gather: sfc[r, b, b*16 + 2r] = 1 (pooled2 row r of image b).
    idx = HALF * jnp.arange(B_TILE)[None, :] + 2 * jnp.arange(PH2)[:, None]   # (5, 8)
    sfc = jax.nn.one_hot(idx, R2 - 1, dtype=f32)             # (5, 8, 124)

    # fc1: pool2 lane compaction + torch CHW flatten folded into per-row slabs.
    wf1_t = jnp.transpose(wf1.reshape(C2, PH2, PW2, F1), (1, 2, 0, 3))        # (r, p, c, k)
    wf1c = jnp.zeros((PH2, 2 * PW2, C2, FPAD), f32)
    wf1c = wf1c.at[:, 0:2 * PW2:2, :, :F1].set(wf1_t)        # place at even ow = 2p
    wf1c = wf1c.reshape(PH2, LP2, FPAD)                      # (5, 160, 128)

    bf1p = jnp.zeros((1, FPAD), f32).at[0, :F1].set(bf1)
    wf2p = jnp.zeros((FPAD, FPAD), f32).at[:F1, :F2].set(wf2)
    bf2p = jnp.zeros((1, FPAD), f32).at[0, :F2].set(bf2)
    wf3p = jnp.zeros((FPAD, FPAD), f32).at[:F2, :F3].set(wf3)
    bf3p = jnp.zeros((1, FPAD), f32).at[0, :F3].set(bf3)
    return (t1p, b1w, t2p, b2w, sc1, sfc, wf1c, bf1p, wf2p, bf2p, wf3p, bf3p)


# ----------------------------------- forward -------------------------------- #

def net_forward(x_nchw, prep):
    # TODO(synk): the torch forward's host-side print() shape logging is omitted.
    n = x_nchw.shape[0]
    n_tiles = (n + B_TILE - 1) // B_TILE
    n_pad = n_tiles * B_TILE

    # NCHW -> (n, 28, 84) -> pad rows to 32, lanes to 128, batch to a tile multiple,
    # then stack B_TILE images per grid step along the sublane axis.
    x = jnp.transpose(x_nchw, (0, 2, 3, 1)).reshape(n, H0, W0 * C0).astype(jnp.float32)
    x = jnp.pad(x, ((0, n_pad - n), (0, SLAB - H0), (0, LANES - W0 * C0)))
    x = x.reshape(n_tiles, TROWS, LANES)

    (t1p, b1w, t2p, b2w, sc1, sfc, wf1c, bf1p, wf2p, bf2p, wf3p, bf3p) = prep

    def full(a):
        nd = a.ndim
        return pl.BlockSpec(a.shape, lambda i, _nd=nd: (0,) * _nd)

    out = pl.pallas_call(
        _net_kernel,
        out_shape=jax.ShapeDtypeStruct((n_tiles, B_TILE, FPAD), jnp.float32),
        grid=(n_tiles,),
        in_specs=[
            pl.BlockSpec((1, TROWS, LANES), lambda i: (i, 0, 0)),
            full(t1p), full(b1w), full(t2p), full(b2w), full(sc1), full(sfc),
            full(wf1c), full(bf1p), full(wf2p), full(bf2p), full(wf3p), full(bf3p),
        ],
        out_specs=pl.BlockSpec((1, B_TILE, FPAD), lambda i: (i, 0, 0)),
        compiler_params=pltpu.CompilerParams(dimension_semantics=("parallel",)),
    )(x, t1p, b1w, t2p, b2w, sc1, sfc, wf1c, bf1p, wf2p, bf2p, wf3p, bf3p)

    return out.reshape(n_pad, FPAD)[:n, :F3]


# ------------------------- pure-JAX reference & init ------------------------ #

def net_reference(x, p):
    hi = jax.lax.Precision.HIGHEST
    y = jax.lax.conv_general_dilated(x, p["w1"], (1, 1), "VALID",
                                     dimension_numbers=("NCHW", "OIHW", "NCHW"),
                                     precision=hi)
    y = jax.nn.relu(y + p["b1"][None, :, None, None])
    y = jax.lax.reduce_window(y, -jnp.inf, jax.lax.max, (1, 1, 2, 2), (1, 1, 2, 2), "VALID")
    y = jax.lax.conv_general_dilated(y, p["w2"], (1, 1), "VALID",
                                     dimension_numbers=("NCHW", "OIHW", "NCHW"),
                                     precision=hi)
    y = jax.nn.relu(y + p["b2"][None, :, None, None])
    y = jax.lax.reduce_window(y, -jnp.inf, jax.lax.max, (1, 1, 2, 2), (1, 1, 2, 2), "VALID")
    y = y.reshape(y.shape[0], -1)                            # CHW flatten, like torch .view
    y = jax.nn.relu(jnp.dot(y, p["wf1"], precision=hi) + p["bf1"])
    y = jax.nn.relu(jnp.dot(y, p["wf2"], precision=hi) + p["bf2"])
    return jnp.dot(y, p["wf3"], precision=hi) + p["bf3"]


def init_params(key):
    ks = jax.random.split(key, 10)

    def u(k, shape, fan_in):
        bound = 1.0 / float(fan_in) ** 0.5
        return jax.random.uniform(k, shape, jnp.float32, -bound, bound)

    return {
        "w1": u(ks[0], (C1, C0, K1, K1), C0 * K1 * K1),      # Conv2d(3, 6, k=3)
        "b1": u(ks[1], (C1,), C0 * K1 * K1),
        "w2": u(ks[2], (C2, C1, K2, K2), C1 * K2 * K2),      # Conv2d(6, 16, k=3)
        "b2": u(ks[3], (C2,), C1 * K2 * K2),
        "wf1": u(ks[4], (C2 * PH2 * PW2, F1), C2 * PH2 * PW2),   # Linear(400, 120)
        "bf1": u(ks[5], (F1,), C2 * PH2 * PW2),
        "wf2": u(ks[6], (F1, F2), F1),                       # Linear(120, 84)
        "bf2": u(ks[7], (F2,), F1),
        "wf3": u(ks[8], (F2, F3), F2),                       # Linear(84, 10)
        "bf3": u(ks[9], (F3,), F2),
    }


if __name__ == "__main__":
    key = jax.random.PRNGKey(0)
    pkey, xkey = jax.random.split(key)
    params = init_params(pkey)
    x = jax.random.normal(xkey, (2, C0, H0, W0), jnp.float32)    # NCHW, like torch

    prep = prepare_params(params)            # weight prep once, off the steady-state path
    fwd = jax.jit(net_forward)
    out = jax.block_until_ready(fwd(x, prep))
    assert out.shape == (2, F3) and out.dtype == jnp.float32

    ref = jax.block_until_ready(jax.jit(net_reference)(x, params))
    err = float(jnp.max(jnp.abs(out - ref)))
    # Tolerance covers the MXU's default bf16-pass f32 matmuls vs. the
    # HIGHEST-precision XLA reference; a structural bug would show O(1) error.
    assert err < 5e-2, f"mismatch vs reference: max abs err {err}"
    print("KERNEL_OK")
</pallas_src>

<mosaic_0001>
module attributes {stable_mosaic.version = 11 : i64} {
  func.func @_net_kernel(%arg0: i32, %arg1: memref<1x256x128xf32, #tpu.memory_space<vmem>>, %arg2: memref<3x128x156xf32, #tpu.memory_space<vmem>>, %arg3: memref<1x156xf32, #tpu.memory_space<vmem>>, %arg4: memref<3x150x176xf32, #tpu.memory_space<vmem>>, %arg5: memref<1x176xf32, #tpu.memory_space<vmem>>, %arg6: memref<127x253xf32, #tpu.memory_space<vmem>>, %arg7: memref<5x8x124xf32, #tpu.memory_space<vmem>>, %arg8: memref<5x160x128xf32, #tpu.memory_space<vmem>>, %arg9: memref<1x128xf32, #tpu.memory_space<vmem>>, %arg10: memref<128x128xf32, #tpu.memory_space<vmem>>, %arg11: memref<1x128xf32, #tpu.memory_space<vmem>>, %arg12: memref<128x128xf32, #tpu.memory_space<vmem>>, %arg13: memref<1x128xf32, #tpu.memory_space<vmem>>, %arg14: memref<1x8x128xf32, #tpu.memory_space<vmem>>) attributes {dimension_semantics = [#tpu.dimension_semantics<parallel>], iteration_bounds = array<i64: 1>, scalar_prefetch = 0 : i64, scratch_operands = 0 : i64, tpu.core_type = #tpu.core_type<tc>, window_params = [{transform_indices = @transform_0, window_bounds = array<i64: 1, 256, 128>}, {pipeline_mode = #tpu.pipeline_mode<synchronous>, transform_indices = @transform_1, window_bounds = array<i64: 3, 128, 156>}, {pipeline_mode = #tpu.pipeline_mode<synchronous>, transform_indices = @transform_2, window_bounds = array<i64: 1, 156>}, {pipeline_mode = #tpu.pipeline_mode<synchronous>, transform_indices = @transform_3, window_bounds = array<i64: 3, 150, 176>}, {pipeline_mode = #tpu.pipeline_mode<synchronous>, transform_indices = @transform_4, window_bounds = array<i64: 1, 176>}, {pipeline_mode = #tpu.pipeline_mode<synchronous>, transform_indices = @transform_5, window_bounds = array<i64: 127, 253>}, {pipeline_mode = #tpu.pipeline_mode<synchronous>, transform_indices = @transform_6, window_bounds = array<i64: 5, 8, 124>}, {pipeline_mode = #tpu.pipeline_mode<synchronous>, transform_indices = @transform_7, window_bounds = array<i64: 5, 160, 128>}, {pipeline_mode = #tpu.pipeline_mode<synchronous>, transform_indices = @transform_8, window_bounds = array<i64: 1, 128>}, {pipeline_mode = #tpu.pipeline_mode<synchronous>, transform_indices = @transform_9, window_bounds = array<i64: 128, 128>}, {pipeline_mode = #tpu.pipeline_mode<synchronous>, transform_indices = @transform_10, window_bounds = array<i64: 1, 128>}, {pipeline_mode = #tpu.pipeline_mode<synchronous>, transform_indices = @transform_11, window_bounds = array<i64: 128, 128>}, {pipeline_mode = #tpu.pipeline_mode<synchronous>, transform_indices = @transform_12, window_bounds = array<i64: 1, 128>}, {transform_indices = @transform_13, window_bounds = array<i64: 1, 8, 128>}]} {
    %c0 = arith.constant 0 : index
    %c0_0 = arith.constant 0 : index
    %c0_1 = arith.constant 0 : index
    %0 = vector.load %arg1[%c0, %c0_0, %c0_1] : memref<1x256x128xf32, #tpu.memory_space<vmem>>, vector<1x256x128xf32>
    %1 = vector.shape_cast %0 : vector<1x256x128xf32> to vector<256x128xf32>
    %2 = vector.extract_strided_slice %1 {offsets = [0, 0], sizes = [254, 128], strides = [1, 1]} : vector<256x128xf32> to vector<254x128xf32>
    %c0_2 = arith.constant 0 : index
    %c0_3 = arith.constant 0 : index
    %c0_4 = arith.constant 0 : index
    %3 = vector.load %arg2[%c0_2, %c0_3, %c0_4] : memref<3x128x156xf32, #tpu.memory_space<vmem>>, vector<1x128x156xf32>
    %4 = vector.shape_cast %3 : vector<1x128x156xf32> to vector<128x156xf32>
    %cst = arith.constant dense<0.000000e+00> : vector<254x156xf32>
    %5 = tpu.matmul %2, %4, %cst {dimension_numbers = #tpu.dot_dimension_numbers<[1], [0], [0], [1], [0, 0, 1, 1], [], []>} : vector<254x128xf32>, vector<128x156xf32>, vector<254x156xf32> -> vector<254x156xf32>
    %6 = vector.extract_strided_slice %1 {offsets = [1, 0], sizes = [254, 128], strides = [1, 1]} : vector<256x128xf32> to vector<254x128xf32>
    %c1 = arith.constant 1 : index
    %c0_5 = arith.constant 0 : index
    %c0_6 = arith.constant 0 : index
    %7 = vector.load %arg2[%c1, %c0_5, %c0_6] : memref<3x128x156xf32, #tpu.memory_space<vmem>>, vector<1x128x156xf32>
    %8 = vector.shape_cast %7 : vector<1x128x156xf32> to vector<128x156xf32>
    %cst_7 = arith.constant dense<0.000000e+00> : vector<254x156xf32>
    %9 = tpu.matmul %6, %8, %cst_7 {dimension_numbers = #tpu.dot_dimension_numbers<[1], [0], [0], [1], [0, 0, 1, 1], [], []>} : vector<254x128xf32>, vector<128x156xf32>, vector<254x156xf32> -> vector<254x156xf32>
    %10 = arith.addf %5, %9 : vector<254x156xf32>
    %11 = vector.extract_strided_slice %1 {offsets = [2, 0], sizes = [254, 128], strides = [1, 1]} : vector<256x128xf32> to vector<254x128xf32>
    %c2 = arith.constant 2 : index
    %c0_8 = arith.constant 0 : index
    %c0_9 = arith.constant 0 : index
    %12 = vector.load %arg2[%c2, %c0_8, %c0_9] : memref<3x128x156xf32, #tpu.memory_space<vmem>>, vector<1x128x156xf32>
    %13 = vector.shape_cast %12 : vector<1x128x156xf32> to vector<128x156xf32>
    %cst_10 = arith.constant dense<0.000000e+00> : vector<254x156xf32>
    %14 = tpu.matmul %11, %13, %cst_10 {dimension_numbers = #tpu.dot_dimension_numbers<[1], [0], [0], [1], [0, 0, 1, 1], [], []>} : vector<254x128xf32>, vector<128x156xf32>, vector<254x156xf32> -> vector<254x156xf32>
    %15 = arith.addf %10, %14 : vector<254x156xf32>
    %c0_11 = arith.constant 0 : index
    %c0_12 = arith.constant 0 : index
    %16 = vector.load %arg3[%c0_11, %c0_12] : memref<1x156xf32, #tpu.memory_space<vmem>>, vector<1x156xf32>
    %17 = vector.broadcast %16 : vector<1x156xf32> to vector<254x156xf32>
    %18 = arith.addf %15, %17 : vector<254x156xf32>
    %cst_13 = arith.constant 0.000000e+00 : f32
    %19 = vector.broadcast %cst_13 : f32 to vector<254x156xf32>
    %20 = arith.maximumf %18, %19 : vector<254x156xf32>
    %21 = vector.extract_strided_slice %20 {offsets = [0, 0], sizes = [253, 156], strides = [1, 1]} : vector<254x156xf32> to vector<253x156xf32>
    %22 = vector.extract_strided_slice %20 {offsets = [1, 0], sizes = [253, 156], strides = [1, 1]} : vector<254x156xf32> to vector<253x156xf32>
    %23 = arith.maximumf %21, %22 : vector<253x156xf32>
    %24 = vector.extract_strided_slice %23 {offsets = [0, 0], sizes = [253, 150], strides = [1, 1]} : vector<253x156xf32> to vector<253x150xf32>
    %25 = vector.extract_strided_slice %23 {offsets = [0, 6], sizes = [253, 150], strides = [1, 1]} : vector<253x156xf32> to vector<253x150xf32>
    %26 = arith.maximumf %24, %25 : vector<253x150xf32>
    %c0_14 = arith.constant 0 : index
    %c0_15 = arith.constant 0 : index
    %27 = vector.load %arg6[%c0_14, %c0_15] : memref<127x253xf32, #tpu.memory_space<vmem>>, vector<127x253xf32>
    %cst_16 = arith.constant dense<0.000000e+00> : vector<127x150xf32>
    %28 = tpu.matmul %27, %26, %cst_16 {dimension_numbers = #tpu.dot_dimension_numbers<[1], [0], [0], [1], [0, 0, 1, 1], [], []>} : vector<127x253xf32>, vector<253x150xf32>, vector<127x150xf32> -> vector<127x150xf32>
    %29 = vector.extract_strided_slice %28 {offsets = [0, 0], sizes = [125, 150], strides = [1, 1]} : vector<127x150xf32> to vector<125x150xf32>
    %c0_17 = arith.constant 0 : index
    %c0_18 = arith.constant 0 : index
    %c0_19 = arith.constant 0 : index
    %30 = vector.load %arg4[%c0_17, %c0_18, %c0_19] : memref<3x150x176xf32, #tpu.memory_space<vmem>>, vector<1x150x176xf32>
    %31 = vector.shape_cast %30 : vector<1x150x176xf32> to vector<150x176xf32>
    %cst_20 = arith.constant dense<0.000000e+00> : vector<125x176xf32>
    %32 = tpu.matmul %29, %31, %cst_20 {dimension_numbers = #tpu.dot_dimension_numbers<[1], [0], [0], [1], [0, 0, 1, 1], [], []>} : vector<125x150xf32>, vector<150x176xf32>, vector<125x176xf32> -> vector<125x176xf32>
    %33 = vector.extract_strided_slice %28 {offsets = [1, 0], sizes = [125, 150], strides = [1, 1]} : vector<127x150xf32> to vector<125x150xf32>
    %c1_21 = arith.constant 1 : index
    %c0_22 = arith.constant 0 : index
    %c0_23 = arith.constant 0 : index
    %34 = vector.load %arg4[%c1_21, %c0_22, %c0_23] : memref<3x150x176xf32, #tpu.memory_space<vmem>>, vector<1x150x176xf32>
    %35 = vector.shape_cast %34 : vector<1x150x176xf32> to vector<150x176xf32>
    %cst_24 = arith.constant dense<0.000000e+00> : vector<125x176xf32>
    %36 = tpu.matmul %33, %35, %cst_24 {dimension_numbers = #tpu.dot_dimension_numbers<[1], [0], [0], [1], [0, 0, 1, 1], [], []>} : vector<125x150xf32>, vector<150x176xf32>, vector<125x176xf32> -> vector<125x176xf32>
    %37 = arith.addf %32, %36 : vector<125x176xf32>
    %38 = vector.extract_strided_slice %28 {offsets = [2, 0], sizes = [125, 150], strides = [1, 1]} : vector<127x150xf32> to vector<125x150xf32>
    %c2_25 = arith.constant 2 : index
    %c0_26 = arith.constant 0 : index
    %c0_27 = arith.constant 0 : index
    %39 = vector.load %arg4[%c2_25, %c0_26, %c0_27] : memref<3x150x176xf32, #tpu.memory_space<vmem>>, vector<1x150x176xf32>
    %40 = vector.shape_cast %39 : vector<1x150x176xf32> to vector<150x176xf32>
    %cst_28 = arith.constant dense<0.000000e+00> : vector<125x176xf32>
    %41 = tpu.matmul %38, %40, %cst_28 {dimension_numbers = #tpu.dot_dimension_numbers<[1], [0], [0], [1], [0, 0, 1, 1], [], []>} : vector<125x150xf32>, vector<150x176xf32>, vector<125x176xf32> -> vector<125x176xf32>
    %42 = arith.addf %37, %41 : vector<125x176xf32>
    %c0_29 = arith.constant 0 : index
    %c0_30 = arith.constant 0 : index
    %43 = vector.load %arg5[%c0_29, %c0_30] : memref<1x176xf32, #tpu.memory_space<vmem>>, vector<1x176xf32>
    %44 = vector.broadcast %43 : vector<1x176xf32> to vector<125x176xf32>
    %45 = arith.addf %42, %44 : vector<125x176xf32>
    %cst_31 = arith.constant 0.000000e+00 : f32
    %46 = vector.broadcast %cst_31 : f32 to vector<125x176xf32>
    %47 = arith.maximumf %45, %46 : vector<125x176xf32>
    %48 = vector.extract_strided_slice %47 {offsets = [0, 0], sizes = [124, 176], strides = [1, 1]} : vector<125x176xf32> to vector<124x176xf32>
    %49 = vector.extract_strided_slice %47 {offsets = [1, 0], sizes = [124, 176], strides = [1, 1]} : vector<125x176xf32> to vector<124x176xf32>
    %50 = arith.maximumf %48, %49 : vector<124x176xf32>
    %51 = vector.extract_strided_slice %50 {offsets = [0, 0], sizes = [124, 160], strides = [1, 1]} : vector<124x176xf32> to vector<124x160xf32>
    %52 = vector.extract_strided_slice %50 {offsets = [0, 16], sizes = [124, 160], strides = [1, 1]} : vector<124x176xf32> to vector<124x160xf32>
    %53 = arith.maximumf %51, %52 : vector<124x160xf32>
    %cst_32 = arith.constant 0.000000e+00 : f32
    %54 = vector.broadcast %cst_32 : f32 to vector<8x128xf32>
    %c0_33 = arith.constant 0 : index
    %c0_34 = arith.constant 0 : index
    %c0_35 = arith.constant 0 : index
    %55 = vector.load %arg7[%c0_33, %c0_34, %c0_35] : memref<5x8x124xf32, #tpu.memory_space<vmem>>, vector<1x8x124xf32>
    %56 = vector.shape_cast %55 : vector<1x8x124xf32> to vector<8x124xf32>
    %cst_36 = arith.constant dense<0.000000e+00> : vector<8x160xf32>
    %57 = tpu.matmul %56, %53, %cst_36 {dimension_numbers = #tpu.dot_dimension_numbers<[1], [0], [0], [1], [0, 0, 1, 1], [], []>} : vector<8x124xf32>, vector<124x160xf32>, vector<8x160xf32> -> vector<8x160xf32>
    %c0_37 = arith.constant 0 : index
    %c0_38 = arith.constant 0 : index
    %c0_39 = arith.constant 0 : index
    %58 = vector.load %arg8[%c0_37, %c0_38, %c0_39] : memref<5x160x128xf32, #tpu.memory_space<vmem>>, vector<1x160x128xf32>
    %59 = vector.shape_cast %58 : vector<1x160x128xf32> to vector<160x128xf32>
    %cst_40 = arith.constant dense<0.000000e+00> : vector<8x128xf32>
    %60 = tpu.matmul %57, %59, %cst_40 {dimension_numbers = #tpu.dot_dimension_numbers<[1], [0], [0], [1], [0, 0, 1, 1], [], []>} : vector<8x160xf32>, vector<160x128xf32>, vector<8x128xf32> -> vector<8x128xf32>
    %61 = arith.addf %54, %60 : vector<8x128xf32>
    %c1_41 = arith.constant 1 : index
    %c0_42 = arith.constant 0 : index
    %c0_43 = arith.constant 0 : index
    %62 = vector.load %arg7[%c1_41, %c0_42, %c0_43] : memref<5x8x124xf32, #tpu.memory_space<vmem>>, vector<1x8x124xf32>
    %63 = vector.shape_cast %62 : vector<1x8x124xf32> to vector<8x124xf32>
    %cst_44 = arith.constant dense<0.000000e+00> : vector<8x160xf32>
    %64 = tpu.matmul %63, %53, %cst_44 {dimension_numbers = #tpu.dot_dimension_numbers<[1], [0], [0], [1], [0, 0, 1, 1], [], []>} : vector<8x124xf32>, vector<124x160xf32>, vector<8x160xf32> -> vector<8x160xf32>
    %c1_45 = arith.constant 1 : index
    %c0_46 = arith.constant 0 : index
    %c0_47 = arith.constant 0 : index
    %65 = vector.load %arg8[%c1_45, %c0_46, %c0_47] : memref<5x160x128xf32, #tpu.memory_space<vmem>>, vector<1x160x128xf32>
    %66 = vector.shape_cast %65 : vector<1x160x128xf32> to vector<160x128xf32>
    %cst_48 = arith.constant dense<0.000000e+00> : vector<8x128xf32>
    %67 = tpu.matmul %64, %66, %cst_48 {dimension_numbers = #tpu.dot_dimension_numbers<[1], [0], [0], [1], [0, 0, 1, 1], [], []>} : vector<8x160xf32>, vector<160x128xf32>, vector<8x128xf32> -> vector<8x128xf32>
    %68 = arith.addf %61, %67 : vector<8x128xf32>
    %c2_49 = arith.constant 2 : index
    %c0_50 = arith.constant 0 : index
    %c0_51 = arith.constant 0 : index
    %69 = vector.load %arg7[%c2_49, %c0_50, %c0_51] : memref<5x8x124xf32, #tpu.memory_space<vmem>>, vector<1x8x124xf32>
    %70 = vector.shape_cast %69 : vector<1x8x124xf32> to vector<8x124xf32>
    %cst_52 = arith.constant dense<0.000000e+00> : vector<8x160xf32>
    %71 = tpu.matmul %70, %53, %cst_52 {dimension_numbers = #tpu.dot_dimension_numbers<[1], [0], [0], [1], [0, 0, 1, 1], [], []>} : vector<8x124xf32>, vector<124x160xf32>, vector<8x160xf32> -> vector<8x160xf32>
    %c2_53 = arith.constant 2 : index
    %c0_54 = arith.constant 0 : index
    %c0_55 = arith.constant 0 : index
    %72 = vector.load %arg8[%c2_53, %c0_54, %c0_55] : memref<5x160x128xf32, #tpu.memory_space<vmem>>, vector<1x160x128xf32>
    %73 = vector.shape_cast %72 : vector<1x160x128xf32> to vector<160x128xf32>
    %cst_56 = arith.constant dense<0.000000e+00> : vector<8x128xf32>
    %74 = tpu.matmul %71, %73, %cst_56 {dimension_numbers = #tpu.dot_dimension_numbers<[1], [0], [0], [1], [0, 0, 1, 1], [], []>} : vector<8x160xf32>, vector<160x128xf32>, vector<8x128xf32> -> vector<8x128xf32>
    %75 = arith.addf %68, %74 : vector<8x128xf32>
    %c3 = arith.constant 3 : index
    %c0_57 = arith.constant 0 : index
    %c0_58 = arith.constant 0 : index
    %76 = vector.load %arg7[%c3, %c0_57, %c0_58] : memref<5x8x124xf32, #tpu.memory_space<vmem>>, vector<1x8x124xf32>
    %77 = vector.shape_cast %76 : vector<1x8x124xf32> to vector<8x124xf32>
    %cst_59 = arith.constant dense<0.000000e+00> : vector<8x160xf32>
    %78 = tpu.matmul %77, %53, %cst_59 {dimension_numbers = #tpu.dot_dimension_numbers<[1], [0], [0], [1], [0, 0, 1, 1], [], []>} : vector<8x124xf32>, vector<124x160xf32>, vector<8x160xf32> -> vector<8x160xf32>
    %c3_60 = arith.constant 3 : index
    %c0_61 = arith.constant 0 : index
    %c0_62 = arith.constant 0 : index
    %79 = vector.load %arg8[%c3_60, %c0_61, %c0_62] : memref<5x160x128xf32, #tpu.memory_space<vmem>>, vector<1x160x128xf32>
    %80 = vector.shape_cast %79 : vector<1x160x128xf32> to vector<160x128xf32>
    %cst_63 = arith.constant dense<0.000000e+00> : vector<8x128xf32>
    %81 = tpu.matmul %78, %80, %cst_63 {dimension_numbers = #tpu.dot_dimension_numbers<[1], [0], [0], [1], [0, 0, 1, 1], [], []>} : vector<8x160xf32>, vector<160x128xf32>, vector<8x128xf32> -> vector<8x128xf32>
    %82 = arith.addf %75, %81 : vector<8x128xf32>
    %c4 = arith.constant 4 : index
    %c0_64 = arith.constant 0 : index
    %c0_65 = arith.constant 0 : index
    %83 = vector.load %arg7[%c4, %c0_64, %c0_65] : memref<5x8x124xf32, #tpu.memory_space<vmem>>, vector<1x8x124xf32>
    %84 = vector.shape_cast %83 : vector<1x8x124xf32> to vector<8x124xf32>
    %cst_66 = arith.constant dense<0.000000e+00> : vector<8x160xf32>
    %85 = tpu.matmul %84, %53, %cst_66 {dimension_numbers = #tpu.dot_dimension_numbers<[1], [0], [0], [1], [0, 0, 1, 1], [], []>} : vector<8x124xf32>, vector<124x160xf32>, vector<8x160xf32> -> vector<8x160xf32>
    %c4_67 = arith.constant 4 : index
    %c0_68 = arith.constant 0 : index
    %c0_69 = arith.constant 0 : index
    %86 = vector.load %arg8[%c4_67, %c0_68, %c0_69] : memref<5x160x128xf32, #tpu.memory_space<vmem>>, vector<1x160x128xf32>
    %87 = vector.shape_cast %86 : vector<1x160x128xf32> to vector<160x128xf32>
    %cst_70 = arith.constant dense<0.000000e+00> : vector<8x128xf32>
    %88 = tpu.matmul %85, %87, %cst_70 {dimension_numbers = #tpu.dot_dimension_numbers<[1], [0], [0], [1], [0, 0, 1, 1], [], []>} : vector<8x160xf32>, vector<160x128xf32>, vector<8x128xf32> -> vector<8x128xf32>
    %89 = arith.addf %82, %88 : vector<8x128xf32>
    %c0_71 = arith.constant 0 : index
    %c0_72 = arith.constant 0 : index
    %90 = vector.load %arg9[%c0_71, %c0_72] : memref<1x128xf32, #tpu.memory_space<vmem>>, vector<1x128xf32>
    %91 = vector.broadcast %90 : vector<1x128xf32> to vector<8x128xf32>
    %92 = arith.addf %89, %91 : vector<8x128xf32>
    %cst_73 = arith.constant 0.000000e+00 : f32
    %93 = vector.broadcast %cst_73 : f32 to vector<8x128xf32>
    %94 = arith.maximumf %92, %93 : vector<8x128xf32>
    %c0_74 = arith.constant 0 : index
    %c0_75 = arith.constant 0 : index
    %95 = vector.load %arg10[%c0_74, %c0_75] : memref<128x128xf32, #tpu.memory_space<vmem>>, vector<128x128xf32>
    %cst_76 = arith.constant dense<0.000000e+00> : vector<8x128xf32>
    %96 = tpu.matmul %94, %95, %cst_76 {dimension_numbers = #tpu.dot_dimension_numbers<[1], [0], [0], [1], [0, 0, 1, 1], [], []>} : vector<8x128xf32>, vector<128x128xf32>, vector<8x128xf32> -> vector<8x128xf32>
    %c0_77 = arith.constant 0 : index
    %c0_78 = arith.constant 0 : index
    %97 = vector.load %arg11[%c0_77, %c0_78] : memref<1x128xf32, #tpu.memory_space<vmem>>, vector<1x128xf32>
    %98 = vector.broadcast %97 : vector<1x128xf32> to vector<8x128xf32>
    %99 = arith.addf %96, %98 : vector<8x128xf32>
    %cst_79 = arith.constant 0.000000e+00 : f32
    %100 = vector.broadcast %cst_79 : f32 to vector<8x128xf32>
    %101 = arith.maximumf %99, %100 : vector<8x128xf32>
    %c0_80 = arith.constant 0 : index
    %c0_81 = arith.constant 0 : index
    %102 = vector.load %arg12[%c0_80, %c0_81] : memref<128x128xf32, #tpu.memory_space<vmem>>, vector<128x128xf32>
    %cst_82 = arith.constant dense<0.000000e+00> : vector<8x128xf32>
    %103 = tpu.matmul %101, %102, %cst_82 {dimension_numbers = #tpu.dot_dimension_numbers<[1], [0], [0], [1], [0, 0, 1, 1], [], []>} : vector<8x128xf32>, vector<128x128xf32>, vector<8x128xf32> -> vector<8x128xf32>
    %c0_83 = arith.constant 0 : index
    %c0_84 = arith.constant 0 : index
    %104 = vector.load %arg13[%c0_83, %c0_84] : memref<1x128xf32, #tpu.memory_space<vmem>>, vector<1x128xf32>
    %105 = vector.broadcast %104 : vector<1x128xf32> to vector<8x128xf32>
    %106 = arith.addf %103, %105 : vector<8x128xf32>
    %c0_85 = arith.constant 0 : index
    %c0_86 = arith.constant 0 : index
    %c0_87 = arith.constant 0 : index
    %107 = vector.load %arg14[%c0_85, %c0_86, %c0_87] : memref<1x8x128xf32, #tpu.memory_space<vmem>>, vector<1x8x128xf32>
    %108 = vector.shape_cast %107 : vector<1x8x128xf32> to vector<8x128xf32>
    %109 = vector.shape_cast %106 : vector<8x128xf32> to vector<1x8x128xf32>
    tpu.vector_store %arg14[%c0_85, %c0_86, %c0_87], %109 {strides = array<i32>} : memref<1x8x128xf32, #tpu.memory_space<vmem>>, vector<1x8x128xf32>,
    return
  }
  func.func @transform_0(%arg0: i32) -> (i32, i32, i32) {
    %c0_i32 = arith.constant 0 : i32
    %c0_i32_0 = arith.constant 0 : i32
    %c0_i32_1 = arith.constant 0 : i32
    return %arg0, %c0_i32, %c0_i32_0 : i32, i32, i32
  }
  func.func @transform_1(%arg0: i32) -> (i32, i32, i32) {
    %c0_i32 = arith.constant 0 : i32
    %c0_i32_0 = arith.constant 0 : i32
    %c0_i32_1 = arith.constant 0 : i32
    %c0_i32_2 = arith.constant 0 : i32
    return %c0_i32, %c0_i32_0, %c0_i32_1 : i32, i32, i32
  }
  func.func @transform_2(%arg0: i32) -> (i32, i32) {
    %c0_i32 = arith.constant 0 : i32
    %c0_i32_0 = arith.constant 0 : i32
    %c0_i32_1 = arith.constant 0 : i32
    return %c0_i32, %c0_i32_0 : i32, i32
  }
  func.func @transform_3(%arg0: i32) -> (i32, i32, i32) {
    %c0_i32 = arith.constant 0 : i32
    %c0_i32_0 = arith.constant 0 : i32
    %c0_i32_1 = arith.constant 0 : i32
    %c0_i32_2 = arith.constant 0 : i32
    return %c0_i32, %c0_i32_0, %c0_i32_1 : i32, i32, i32
  }
  func.func @transform_4(%arg0: i32) -> (i32, i32) {
    %c0_i32 = arith.constant 0 : i32
    %c0_i32_0 = arith.constant 0 : i32
    %c0_i32_1 = arith.constant 0 : i32
    return %c0_i32, %c0_i32_0 : i32, i32
  }
  func.func @transform_5(%arg0: i32) -> (i32, i32) {
    %c0_i32 = arith.constant 0 : i32
    %c0_i32_0 = arith.constant 0 : i32
    %c0_i32_1 = arith.constant 0 : i32
    return %c0_i32, %c0_i32_0 : i32, i32
  }
  func.func @transform_6(%arg0: i32) -> (i32, i32, i32) {
    %c0_i32 = arith.constant 0 : i32
    %c0_i32_0 = arith.constant 0 : i32
    %c0_i32_1 = arith.constant 0 : i32
    %c0_i32_2 = arith.constant 0 : i32
    return %c0_i32, %c0_i32_0, %c0_i32_1 : i32, i32, i32
  }
  func.func @transform_7(%arg0: i32) -> (i32, i32, i32) {
    %c0_i32 = arith.constant 0 : i32
    %c0_i32_0 = arith.constant 0 : i32
    %c0_i32_1 = arith.constant 0 : i32
    %c0_i32_2 = arith.constant 0 : i32
    return %c0_i32, %c0_i32_0, %c0_i32_1 : i32, i32, i32
  }
  func.func @transform_8(%arg0: i32) -> (i32, i32) {
    %c0_i32 = arith.constant 0 : i32
    %c0_i32_0 = arith.constant 0 : i32
    %c0_i32_1 = arith.constant 0 : i32
    return %c0_i32, %c0_i32_0 : i32, i32
  }
  func.func @transform_9(%arg0: i32) -> (i32, i32) {
    %c0_i32 = arith.constant 0 : i32
    %c0_i32_0 = arith.constant 0 : i32
    %c0_i32_1 = arith.constant 0 : i32
    return %c0_i32, %c0_i32_0 : i32, i32
  }
  func.func @transform_10(%arg0: i32) -> (i32, i32) {
    %c0_i32 = arith.constant 0 : i32
    %c0_i32_0 = arith.constant 0 : i32
    %c0_i32_1 = arith.constant 0 : i32
    return %c0_i32, %c0_i32_0 : i32, i32
  }
  func.func @transform_11(%arg0: i32) -> (i32, i32) {
    %c0_i32 = arith.constant 0 : i32
    %c0_i32_0 = arith.constant 0 : i32
    %c0_i32_1 = arith.constant 0 : i32
    return %c0_i32, %c0_i32_0 : i32, i32
  }
  func.func @transform_12(%arg0: i32) -> (i32, i32) {
    %c0_i32 = arith.constant 0 : i32
    %c0_i32_0 = arith.constant 0 : i32
    %c0_i32_1 = arith.constant 0 : i32
    return %c0_i32, %c0_i32_0 : i32, i32
  }
  func.func @transform_13(%arg0: i32) -> (i32, i32, i32) {
    %c0_i32 = arith.constant 0 : i32
    %c0_i32_0 = arith.constant 0 : i32
    %c0_i32_1 = arith.constant 0 : i32
    return %arg0, %c0_i32, %c0_i32_0 : i32, i32, i32
  }
}

</mosaic_0001>

<llo_original>
// kernel: net_forward.1
$region0: #{net_forward.1}
  #allocation0 [shape = 'u32[]', space=smem, size = 0x4, offset = 0x4, fixed_abs, tag = 'smem constant byte address 0x4 - core index']
  #allocation1 [shape = 'u32[144,128]{1,0:T(1,128)}', space=vmem, size = 0x12000, scoped, tag = 'internal scratch']
  %s0 = inlined_call_operand.vmem [shape: f32[1,256,128], index: 0, kind: input, shape index: {}]
  %s1 = inlined_call_operand.vmem [shape: f32[3,128,156], index: 1, kind: input, shape index: {}]
  %s2 = inlined_call_operand.vmem [shape: f32[1,156], index: 2, kind: input, shape index: {}]
  %s3 = inlined_call_operand.vmem [shape: f32[3,150,176], index: 3, kind: input, shape index: {}]
  %s4 = inlined_call_operand.vmem [shape: f32[1,176], index: 4, kind: input, shape index: {}]
  %s5 = inlined_call_operand.vmem [shape: f32[127,253], index: 5, kind: input, shape index: {}]
  %s6 = inlined_call_operand.vmem [shape: f32[5,8,124], index: 6, kind: input, shape index: {}]
  %s7 = inlined_call_operand.vmem [shape: f32[5,160,128], index: 7, kind: input, shape index: {}]
  %s8 = inlined_call_operand.hbm [shape: f32[1,128], index: 8, kind: input, shape index: {}]
  %s9 = inlined_call_operand.vmem [shape: f32[128,128], index: 9, kind: input, shape index: {}]
  %s10 = inlined_call_operand.hbm [shape: f32[1,128], index: 10, kind: input, shape index: {}]
  %s11 = inlined_call_operand.hbm [shape: f32[128,128], index: 11, kind: input, shape index: {}]
  %s12 = inlined_call_operand.vmem [shape: f32[1,128], index: 12, kind: input, shape index: {}]
  %s13 = inlined_call_operand.vmem [shape: f32[1,8,128], index: 13, kind: output, shape index: {}]
  %s14 = sld [smem:[#allocation0]]
  $region74: #{net_forward.1} parent=0
    _
  %s16 = ssub.s32 1, %s14
  %s17 = scalar_select 0, %s16, %s14
  $region1: #{net_forward.1} parent=0
    #allocation2 [shape = 'u8[512]{0}', space=vmem, size = 0x400, scoped, tag = 'input window, operand 8, single buffered']
    #allocation3 [shape = 's32[1]{0}', space=sflag, size = 0x4, scoped, tag = 'scoped memory for net_forward.1']
    #allocation4 [shape = 'u8[512]{0}', space=vmem, size = 0x400, scoped, tag = 'input window, operand 10, single buffered']
    #allocation5 [shape = 's32[1]{0}', space=sflag, size = 0x4, scoped, tag = 'scoped memory for net_forward.1']
    #allocation6 [shape = 'u8[65536]{0}', space=vmem, size = 0x10000, scoped, tag = 'input window, operand 11, single buffered']
    %18 = vsyncpa [#allocation3], 0
    %19 = vsyncpa [#allocation5], 0
    // Predicated region
    $region2: #{net_forward.1} parent=1 // pred_check
      _
    $region3: #{net_forward.1} parent=1 // pred_check_branch
      %21 = sbr.rel (0) target = $region5
    $region4: #{net_forward.1} parent=1 // pred_region
      _
    $region5: #{net_forward.1} parent=1 // pred_fallthru
      _
    // Predicated region
    $region6: #{net_forward.1} parent=1 // pred_check
      _
    $region7: #{net_forward.1} parent=1 // pred_check_branch
      %23 = sbr.rel (0) target = $region9
    $region8: #{net_forward.1} parent=1 // pred_region
      _
    $region9: #{net_forward.1} parent=1 // pred_fallthru
      _
    // Predicated region
    $region10: #{net_forward.1} parent=1 // pred_check
      _
    $region11: #{net_forward.1} parent=1 // pred_check_branch
      %25 = sbr.rel (0) target = $region13
    $region12: #{net_forward.1} parent=1 // pred_region
      _
    $region13: #{net_forward.1} parent=1 // pred_fallthru
      _
    // Predicated region
    $region14: #{net_forward.1} parent=1 // pred_check
      _
    $region15: #{net_forward.1} parent=1 // pred_check_branch
      %27 = sbr.rel (0) target = $region17
    $region16: #{net_forward.1} parent=1 // pred_region
      _
    $region17: #{net_forward.1} parent=1 // pred_fallthru
      _
    // Predicated region
    $region18: #{net_forward.1} parent=1 // pred_check
      _
    $region19: #{net_forward.1} parent=1 // pred_check_branch
      %29 = sbr.rel (0) target = $region21
    $region20: #{net_forward.1} parent=1 // pred_region
      _
    $region21: #{net_forward.1} parent=1 // pred_fallthru
      _
    // Predicated region
    $region22: #{net_forward.1} parent=1 // pred_check
      _
    $region23: #{net_forward.1} parent=1 // pred_check_branch
      %31 = sbr.rel (0) target = $region25
    $region24: #{net_forward.1} parent=1 // pred_region
      _
    $region25: #{net_forward.1} parent=1 // pred_fallthru
      _
    // Predicated region
    $region26: #{net_forward.1} parent=1 // pred_check
      _
    $region27: #{net_forward.1} parent=1 // pred_check_branch
      %33 = sbr.rel (0) target = $region29
    $region28: #{net_forward.1} parent=1 // pred_region
      _
    $region29: #{net_forward.1} parent=1 // pred_fallthru
      _
    // Predicated region
    $region30: #{net_forward.1} parent=1 // pred_check
      _
    $region31: #{net_forward.1} parent=1 // pred_check_branch
      %35 = sbr.rel (0) target = $region33
    $region32: #{net_forward.1} parent=1 // pred_region
      _
    $region33: #{net_forward.1} parent=1 // pred_fallthru
      _
    // Predicated region
    $region34: #{net_forward.1} parent=1 // pred_check
      _
    $region35: #{net_forward.1} parent=1 // pred_check_branch
      %37 = sbr.rel (0) target = $region37
    $region36: #{net_forward.1} parent=1 // pred_region
      %s39 = ssub.s32 16, 16
      %40 = vsyncadd [#allocation3], %s39
      %s42 = sshll.u32 [#allocation2], 4
      %s43 = int_to_ptr.vmem [resolvable:$true] %s42
      %45 = dma.hbm_to_vmem [thread:$0]  %s8, 16, %s43, [#allocation3]
    $region37: #{net_forward.1} parent=1 // pred_fallthru
      _
    // Predicated region
    $region38: #{net_forward.1} parent=1 // pred_check
      _
    $region39: #{net_forward.1} parent=1 // pred_check_branch
      %47 = sbr.rel (0) target = $region41
    $region40: #{net_forward.1} parent=1 // pred_region
      _
    $region41: #{net_forward.1} parent=1 // pred_fallthru
      _
    // Predicated region
    $region42: #{net_forward.1} parent=1 // pred_check
      _
    $region43: #{net_forward.1} parent=1 // pred_check_branch
      %49 = sbr.rel (0) target = $region45
    $region44: #{net_forward.1} parent=1 // pred_region
      %s51 = ssub.s32 16, 16
      %52 = vsyncadd [#allocation5], %s51
      %s54 = sshll.u32 [#allocation4], 4
      %s55 = int_to_ptr.vmem [resolvable:$true] %s54
      %57 = dma.hbm_to_vmem [thread:$0]  %s10, 16, %s55, [#allocation5]
    $region45: #{net_forward.1} parent=1 // pred_fallthru
      _
    // Predicated region
    $region46: #{net_forward.1} parent=1 // pred_check
      _
    $region47: #{net_forward.1} parent=1 // pred_check_branch
      %59 = sbr.rel (0) target = $region49
    $region48: #{net_forward.1} parent=1 // pred_region
      %s61 = ssub.s32 2048, 2048
      %62 = vsyncadd [#allocation5], %s61
      %s63 = sshll.u32 [#allocation6], 4
      %s64 = int_to_ptr.vmem [resolvable:$true] %s63
      %69 = dma.hbm_to_vmem [thread:$0]  %s11, 2048, %s64, [#allocation5], 128, 128, 8
    $region49: #{net_forward.1} parent=1 // pred_fallthru
      _
    // Predicated region
    $region50: #{net_forward.1} parent=1 // pred_check
      _
    $region51: #{net_forward.1} parent=1 // pred_check_branch
      %71 = sbr.rel (0) target = $region53
    $region52: #{net_forward.1} parent=1 // pred_region
      _
    $region53: #{net_forward.1} parent=1 // pred_fallthru
      _
    // Predicated region
    $region54: #{net_forward.1} parent=1 // pred_check
      _
    $region55: #{net_forward.1} parent=1 // pred_check_branch
      %73 = sbr.rel (0) target = $region57
    $region56: #{net_forward.1} parent=1 // pred_region
      %74 = dma.done [#allocation3], 16
    $region57: #{net_forward.1} parent=1 // pred_fallthru
      _
    // Predicated region
    $region58: #{net_forward.1} parent=1 // pred_check
      _
    $region59: #{net_forward.1} parent=1 // pred_check_branch
      %76 = sbr.rel (0) target = $region61
    $region60: #{net_forward.1} parent=1 // pred_region
      %77 = dma.done [#allocation5], 16
    $region61: #{net_forward.1} parent=1 // pred_fallthru
      _
    // Predicated region
    $region62: #{net_forward.1} parent=1 // pred_check
      _
    $region63: #{net_forward.1} parent=1 // pred_check_branch
      %79 = sbr.rel (0) target = $region65
    $region64: #{net_forward.1} parent=1 // pred_region
      %80 = dma.done [#allocation5], 2048
    $region65: #{net_forward.1} parent=1 // pred_fallthru
      _
    %v81 = vld [vmem:[%s0] sm:$0xff]
    %v82 = vld [vmem:[%s0 + $0x8] sm:$0xff]
    %v83 = vld [vmem:[%s0 + $0x10] sm:$0xff]
    %v84 = vld [vmem:[%s0 + $0x18] sm:$0xff]
    %v85 = vld [vmem:[%s0 + $0x20] sm:$0xff]
    %v86 = vld [vmem:[%s0 + $0x28] sm:$0xff]
    %v87 = vld [vmem:[%s0 + $0x30] sm:$0xff]
    %v88 = vld [vmem:[%s0 + $0x38] sm:$0xff]
    %v89 = vld [vmem:[%s0 + $0x40] sm:$0xff]
    %v90 = vld [vmem:[%s0 + $0x48] sm:$0xff]
    %v91 = vld [vmem:[%s0 + $0x50] sm:$0xff]
    %v92 = vld [vmem:[%s0 + $0x58] sm:$0xff]
    %v93 = vld [vmem:[%s0 + $0x60] sm:$0xff]
    %v94 = vld [vmem:[%s0 + $0x68] sm:$0xff]
    %v95 = vld [vmem:[%s0 + $0x70] sm:$0xff]
    %v96 = vld [vmem:[%s0 + $0x78] sm:$0xff]
    %v97 = vld [vmem:[%s0 + $0x80] sm:$0xff]
    %v98 = vld [vmem:[%s0 + $0x88] sm:$0xff]
    %v99 = vld [vmem:[%s0 + $0x90] sm:$0xff]
    %v100 = vld [vmem:[%s0 + $0x98] sm:$0xff]
    %v101 = vld [vmem:[%s0 + $0xa0] sm:$0xff]
    %v102 = vld [vmem:[%s0 + $0xa8] sm:$0xff]
    %v103 = vld [vmem:[%s0 + $0xb0] sm:$0xff]
    %v104 = vld [vmem:[%s0 + $0xb8] sm:$0xff]
    %v105 = vld [vmem:[%s0 + $0xc0] sm:$0xff]
    %v106 = vld [vmem:[%s0 + $0xc8] sm:$0xff]
    %v107 = vld [vmem:[%s0 + $0xd0] sm:$0xff]
    %v108 = vld [vmem:[%s0 + $0xd8] sm:$0xff]
    %v109 = vld [vmem:[%s0 + $0xe0] sm:$0xff]
    %v110 = vld [vmem:[%s0 + $0xe8] sm:$0xff]
    %v111 = vld [vmem:[%s0 + $0xf0] sm:$0xff]
    %v112 = vld [vmem:[%s0 + $0xf8] sm:$0xff]
    %v113 = vld [vmem:[%s1] sm:$0xff]
    %v114 = vld [vmem:[%s1 + $0x8] sm:$0xff]
    %v115 = vld [vmem:[%s1 + $0x10] sm:$0xff]
    %v116 = vld [vmem:[%s1 + $0x18] sm:$0xff]
    %v117 = vld [vmem:[%s1 + $0x20] sm:$0xff]
    %v118 = vld [vmem:[%s1 + $0x28] sm:$0xff]
    %v119 = vld [vmem:[%s1 + $0x30] sm:$0xff]
    %v120 = vld [vmem:[%s1 + $0x38] sm:$0xff]
    %v121 = vld [vmem:[%s1 + $0x40] sm:$0xff]
    %v122 = vld [vmem:[%s1 + $0x48] sm:$0xff]
    %v123 = vld [vmem:[%s1 + $0x50] sm:$0xff]
    %v124 = vld [vmem:[%s1 + $0x58] sm:$0xff]
    %v125 = vld [vmem:[%s1 + $0x60] sm:$0xff]
    %v126 = vld [vmem:[%s1 + $0x68] sm:$0xff]
    %v127 = vld [vmem:[%s1 + $0x70] sm:$0xff]
    %v128 = vld [vmem:[%s1 + $0x78] sm:$0xff]
    %v129 = vld [vmem:[%s1 + $0x80] sm:$0xff]
    %v130 = vld [vmem:[%s1 + $0x88] sm:$0xff]
    %v131 = vld [vmem:[%s1 + $0x90] sm:$0xff]
    %v132 = vld [vmem:[%s1 + $0x98] sm:$0xff]
    %v133 = vld [vmem:[%s1 + $0xa0] sm:$0xff]
    %v134 = vld [vmem:[%s1 + $0xa8] sm:$0xff]
    %v135 = vld [vmem:[%s1 + $0xb0] sm:$0xff]
    %v136 = vld [vmem:[%s1 + $0xb8] sm:$0xff]
    %v137 = vld [vmem:[%s1 + $0xc0] sm:$0xff]
    %v138 = vld [vmem:[%s1 + $0xc8] sm:$0xff]
    %v139 = vld [vmem:[%s1 + $0xd0] sm:$0xff]
    %v140 = vld [vmem:[%s1 + $0xd8] sm:$0xff]
    %v141 = vld [vmem:[%s1 + $0xe0] sm:$0xff]
    %v142 = vld [vmem:[%s1 + $0xe8] sm:$0xff]
    %v143 = vld [vmem:[%s1 + $0xf0] sm:$0xff]
    %v144 = vld [vmem:[%s1 + $0xf8] sm:$0xff]
    %s145 = scalar_lea.vmem %s1, 256
    %v146 = vld [vmem:[%s145] sm:$0xff]
    %v147 = vld [vmem:[%s145 + $0x8] sm:$0xff]
    %v148 = vld [vmem:[%s145 + $0x10] sm:$0xff]
    %v149 = vld [vmem:[%s145 + $0x18] sm:$0xff]
    %v150 = vld [vmem:[%s145 + $0x20] sm:$0xff]
    %v151 = vld [vmem:[%s145 + $0x28] sm:$0xff]
    %v152 = vld [vmem:[%s145 + $0x30] sm:$0xff]
    %v153 = vld [vmem:[%s145 + $0x38] sm:$0xff]
    %v154 = vld [vmem:[%s145 + $0x40] sm:$0xff]
    %v155 = vld [vmem:[%s145 + $0x48] sm:$0xff]
    %v156 = vld [vmem:[%s145 + $0x50] sm:$0xff]
    %v157 = vld [vmem:[%s145 + $0x58] sm:$0xff]
    %v158 = vld [vmem:[%s145 + $0x60] sm:$0xff]
    %v159 = vld [vmem:[%s145 + $0x68] sm:$0xff]
    %v160 = vld [vmem:[%s145 + $0x70] sm:$0xff]
    %v161 = vld [vmem:[%s145 + $0x78] sm:$0xff]
    %v162 = vld [vmem:[%s145 + $0x80] sm:$0xff]
    %v163 = vld [vmem:[%s145 + $0x88] sm:$0xff]
    %v164 = vld [vmem:[%s145 + $0x90] sm:$0xff]
    %v165 = vld [vmem:[%s145 + $0x98] sm:$0xff]
    %v166 = vld [vmem:[%s145 + $0xa0] sm:$0xff]
    %v167 = vld [vmem:[%s145 + $0xa8] sm:$0xff]
    %v168 = vld [vmem:[%s145 + $0xb0] sm:$0xff]
    %v169 = vld [vmem:[%s145 + $0xb8] sm:$0xff]
    %v170 = vld [vmem:[%s145 + $0xc0] sm:$0xff]
    %v171 = vld [vmem:[%s145 + $0xc8] sm:$0xff]
    %v172 = vld [vmem:[%s145 + $0xd0] sm:$0xff]
    %v173 = vld [vmem:[%s145 + $0xd8] sm:$0xff]
    %v174 = vld [vmem:[%s145 + $0xe0] sm:$0xff]
    %v175 = vld [vmem:[%s145 + $0xe8] sm:$0xff]
    %v176 = vld [vmem:[%s145 + $0xf0] sm:$0xff]
    %v177 = vld [vmem:[%s145 + $0xf8] sm:$0xff]
    %vm210 = vcmask 1046528
    %v211 = vrot.slane %v81, 1
    %v212 = vrot.slane %v82, 1
    %v213 = vsel %vm210, %v211, %v212
    %v214 = vrot.slane %v83, 1
    %v215 = vsel %vm210, %v212, %v214
    %v216 = vrot.slane %v84, 1
    %v217 = vsel %vm210, %v214, %v216
    %v218 = vrot.slane %v85, 1
    %v219 = vsel %vm210, %v216, %v218
    %v220 = vrot.slane %v86, 1
    %v221 = vsel %vm210, %v218, %v220
    %v222 = vrot.slane %v87, 1
    %v223 = vsel %vm210, %v220, %v222
    %v224 = vrot.slane %v88, 1
    %v225 = vsel %vm210, %v222, %v224
    %v226 = vrot.slane %v89, 1
    %v227 = vsel %vm210, %v224, %v226
    %v228 = vrot.slane %v90, 1
    %v229 = vsel %vm210, %v226, %v228
    %v230 = vrot.slane %v91, 1
    %v231 = vsel %vm210, %v228, %v230
    %v232 = vrot.slane %v92, 1
    %v233 = vsel %vm210, %v230, %v232
    %v234 = vrot.slane %v93, 1
    %v235 = vsel %vm210, %v232, %v234
    %v236 = vrot.slane %v94, 1
    %v237 = vsel %vm210, %v234, %v236
    %v238 = vrot.slane %v95, 1
    %v239 = vsel %vm210, %v236, %v238
    %v240 = vrot.slane %v96, 1
    %v241 = vsel %vm210, %v238, %v240
    %v242 = vrot.slane %v97, 1
    %v243 = vsel %vm210, %v240, %v242
    %v244 = vrot.slane %v98, 1
    %v245 = vsel %vm210, %v242, %v244
    %v246 = vrot.slane %v99, 1
    %v247 = vsel %vm210, %v244, %v246
    %v248 = vrot.slane %v100, 1
    %v249 = vsel %vm210, %v246, %v248
    %v250 = vrot.slane %v101, 1
    %v251 = vsel %vm210, %v248, %v250
    %v252 = vrot.slane %v102, 1
    %v253 = vsel %vm210, %v250, %v252
    %v254 = vrot.slane %v103, 1
    %v255 = vsel %vm210, %v252, %v254
    %v256 = vrot.slane %v104, 1
    %v257 = vsel %vm210, %v254, %v256
    %v258 = vrot.slane %v105, 1
    %v259 = vsel %vm210, %v256, %v258
    %v260 = vrot.slane %v106, 1
    %v261 = vsel %vm210, %v258, %v260
    %v262 = vrot.slane %v107, 1
    %v263 = vsel %vm210, %v260, %v262
    %v264 = vrot.slane %v108, 1
    %v265 = vsel %vm210, %v262, %v264
    %v266 = vrot.slane %v109, 1
    %v267 = vsel %vm210, %v264, %v266
    %v268 = vrot.slane %v110, 1
    %v269 = vsel %vm210, %v266, %v268
    %v270 = vrot.slane %v111, 1
    %v271 = vsel %vm210, %v268, %v270
    %v272 = vrot.slane %v112, 1
    %v273 = vsel %vm210, %v270, %v272
    %306 = vmatprep.subr.mxu0 %v177
    %307 = vmatpush1.msra.mxu0 %v176
    %308 = vmatprep.subr.mxu0 %v175
    %309 = vmatpush1.msra.mxu0 %v174
    %310 = vmatprep.subr.mxu0 %v173
    %311 = vmatpush1.msra.mxu0 %v172
    %312 = vmatprep.subr.mxu0 %v171
    %313 = vmatpush1.msra.mxu0 %v170
    %314 = vmatprep.subr.mxu0 %v169
    %315 = vmatpush1.msra.mxu0 %v168
    %316 = vmatprep.subr.mxu0 %v167
    %317 = vmatpush1.msra.mxu0 %v166
    %318 = vmatprep.subr.mxu0 %v165
    %319 = vmatpush1.msra.mxu0 %v164
    %320 = vmatprep.subr.mxu0 %v163
    %321 = vmatpush1.msra.mxu0 %v162
    %322 = vmatprep.subr.mxu0 %v161
    %323 = vmatpush1.msra.mxu0 %v160
    %324 = vmatprep.subr.mxu0 %v159
    %325 = vmatpush1.msra.mxu0 %v158
    %326 = vmatprep.subr.mxu0 %v157
    %327 = vmatpush1.msra.mxu0 %v156
    %328 = vmatprep.subr.mxu0 %v155
    %329 = vmatpush1.msra.mxu0 %v154
    %330 = vmatprep.subr.mxu0 %v153
    %331 = vmatpush1.msra.mxu0 %v152
    %332 = vmatprep.subr.mxu0 %v151
    %333 = vmatpush1.msra.mxu0 %v150
    %334 = vmatprep.subr.mxu0 %v149
    %335 = vmatpush1.msra.mxu0 %v148
    %336 = vmatprep.subr.mxu0 %v147
    %337 = vmatpush1.msra.mxu0 %v146
    %338 = vmatprep.subr.mxu0 0.0
    %339 = vmatpush2.msra.mxu0 0.0
    %340 = vmatprep.subr.mxu0 0.0
    %341 = vmatpush2.msra.mxu0 0.0
    %342 = vmatprep.subr.mxu0 0.0
    %343 = vmatpush2.msra.mxu0 0.0
    %344 = vmatprep.subr.mxu0 0.0
    %345 = vmatpush2.msra.mxu0 0.0
    %346 = vmatprep.subr.mxu0 0.0
    %347 = vmatpush2.msra.mxu0 0.0
    %348 = vmatprep.subr.mxu0 0.0
    %349 = vmatpush2.msra.mxu0 0.0
    %350 = vmatprep.subr.mxu0 0.0
    %351 = vmatpush2.msra.mxu0 0.0
    %352 = vmatprep.subr.mxu0 0.0
    %353 = vmatpush2.msra.mxu0 0.0
    %354 = vmatprep.subr.mxu0 0.0
    %355 = vmatpush2.msra.mxu0 0.0
    %356 = vmatprep.subr.mxu0 0.0
    %357 = vmatpush2.msra.mxu0 0.0
    %358 = vmatprep.subr.mxu0 0.0
    %359 = vmatpush2.msra.mxu0 0.0
    %360 = vmatprep.subr.mxu0 0.0
    %361 = vmatpush2.msra.mxu0 0.0
    %362 = vmatprep.subr.mxu0 0.0
    %363 = vmatpush2.msra.mxu0 0.0
    %364 = vmatprep.subr.mxu0 0.0
    %365 = vmatpush2.msra.mxu0 0.0
    %366 = vmatprep.subr.mxu0 0.0
    %367 = vmatpush2.msra.mxu0 0.0
    %368 = vmatprep.subr.mxu0 0.0
    %369 = vmatpush2.msra.mxu0 0.0
    %370 = vmatprep.mubr.f32.mxu0 0.0
    %371 = vmatmul.mubr.f32.gmra.mxu0 %v213
    %v372 = vpop.f32.mrf.mxu0
    %v373 = vadd.f32 0.0, %v372
    %v374 = vpop.f32.mrf.mxu0
    %v375 = vadd.f32 0.0, %v374
    %376 = vmatprep.mubr.f32.mxu0 0.0
    %377 = vmatmul.mubr.f32.gmra.mxu0 %v215
    %v378 = vpop.f32.mrf.mxu0
    %v379 = vadd.f32 0.0, %v378
    %v380 = vpop.f32.mrf.mxu0
    %v381 = vadd.f32 0.0, %v380
    %382 = vmatprep.mubr.f32.mxu0 0.0
    %383 = vmatmul.mubr.f32.gmra.mxu0 %v217
    %v384 = vpop.f32.mrf.mxu0
    %v385 = vadd.f32 0.0, %v384
    %v386 = vpop.f32.mrf.mxu0
    %v387 = vadd.f32 0.0, %v386
    %388 = vmatprep.mubr.f32.mxu0 0.0
    %389 = vmatmul.mubr.f32.gmra.mxu0 %v219
    %v390 = vpop.f32.mrf.mxu0
    %v391 = vadd.f32 0.0, %v390
    %v392 = vpop.f32.mrf.mxu0
    %v393 = vadd.f32 0.0, %v392
    %394 = vmatprep.mubr.f32.mxu0 0.0
    %395 = vmatmul.mubr.f32.gmra.mxu0 %v221
    %v396 = vpop.f32.mrf.mxu0
    %v397 = vadd.f32 0.0, %v396
    %v398 = vpop.f32.mrf.mxu0
    %v399 = vadd.f32 0.0, %v398
    %400 = vmatprep.mubr.f32.mxu0 0.0
    %401 = vmatmul.mubr.f32.gmra.mxu0 %v223
    %v402 = vpop.f32.mrf.mxu0
    %v403 = vadd.f32 0.0, %v402
    %v404 = vpop.f32.mrf.mxu0
    %v405 = vadd.f32 0.0, %v404
    %406 = vmatprep.mubr.f32.mxu0 0.0
    %407 = vmatmul.mubr.f32.gmra.mxu0 %v225
    %v408 = vpop.f32.mrf.mxu0
    %v409 = vadd.f32 0.0, %v408
    %v410 = vpop.f32.mrf.mxu0
    %v411 = vadd.f32 0.0, %v410
    %412 = vmatprep.mubr.f32.mxu0 0.0
    %413 = vmatmul.mubr.f32.gmra.mxu0 %v227
    %v414 = vpop.f32.mrf.mxu0
    %v415 = vadd.f32 0.0, %v414
    %v416 = vpop.f32.mrf.mxu0
    %v417 = vadd.f32 0.0, %v416
    %418 = vmatprep.mubr.f32.mxu0 0.0
    %419 = vmatmul.mubr.f32.gmra.mxu0 %v229
    %v420 = vpop.f32.mrf.mxu0
    %v421 = vadd.f32 0.0, %v420
    %v422 = vpop.f32.mrf.mxu0
    %v423 = vadd.f32 0.0, %v422
    %424 = vmatprep.mubr.f32.mxu0 0.0
    %425 = vmatmul.mubr.f32.gmra.mxu0 %v231
    %v426 = vpop.f32.mrf.mxu0
    %v427 = vadd.f32 0.0, %v426
    %v428 = vpop.f32.mrf.mxu0
    %v429 = vadd.f32 0.0, %v428
    %430 = vmatprep.mubr.f32.mxu0 0.0
    %431 = vmatmul.mubr.f32.gmra.mxu0 %v233
    %v432 = vpop.f32.mrf.mxu0
    %v433 = vadd.f32 0.0, %v432
    %v434 = vpop.f32.mrf.mxu0
    %v435 = vadd.f32 0.0, %v434
    %436 = vmatprep.mubr.f32.mxu0 0.0
    %437 = vmatmul.mubr.f32.gmra.mxu0 %v235
    %v438 = vpop.f32.mrf.mxu0
    %v439 = vadd.f32 0.0, %v438
    %v440 = vpop.f32.mrf.mxu0
    %v441 = vadd.f32 0.0, %v440
    %442 = vmatprep.mubr.f32.mxu0 0.0
    %443 = vmatmul.mubr.f32.gmra.mxu0 %v237
    %v444 = vpop.f32.mrf.mxu0
    %v445 = vadd.f32 0.0, %v444
    %v446 = vpop.f32.mrf.mxu0
    %v447 = vadd.f32 0.0, %v446
    %448 = vmatprep.mubr.f32.mxu0 0.0
    %449 = vmatmul.mubr.f32.gmra.mxu0 %v239
    %v450 = vpop.f32.mrf.mxu0
    %v451 = vadd.f32 0.0, %v450
    %v452 = vpop.f32.mrf.mxu0
    %v453 = vadd.f32 0.0, %v452
    %454 = vmatprep.mubr.f32.mxu0 0.0
    %455 = vmatmul.mubr.f32.gmra.mxu0 %v241
    %v456 = vpop.f32.mrf.mxu0
    %v457 = vadd.f32 0.0, %v456
    %v458 = vpop.f32.mrf.mxu0
    %v459 = vadd.f32 0.0, %v458
    %460 = vmatprep.mubr.f32.mxu0 0.0
    %461 = vmatmul.mubr.f32.gmra.mxu0 %v243
    %v462 = vpop.f32.mrf.mxu0
    %v463 = vadd.f32 0.0, %v462
    %v464 = vpop.f32.mrf.mxu0
    %v465 = vadd.f32 0.0, %v464
    %466 = vmatprep.mubr.f32.mxu0 0.0
    %467 = vmatmul.mubr.f32.gmra.mxu0 %v245
    %v468 = vpop.f32.mrf.mxu0
    %v469 = vadd.f32 0.0, %v468
    %v470 = vpop.f32.mrf.mxu0
    %v471 = vadd.f32 0.0, %v470
    %472 = vmatprep.mubr.f32.mxu0 0.0
    %473 = vmatmul.mubr.f32.gmra.mxu0 %v247
    %v474 = vpop.f32.mrf.mxu0
    %v475 = vadd.f32 0.0, %v474
    %v476 = vpop.f32.mrf.mxu0
    %v477 = vadd.f32 0.0, %v476
    %478 = vmatprep.mubr.f32.mxu0 0.0
    %479 = vmatmul.mubr.f32.gmra.mxu0 %v249
    %v480 = vpop.f32.mrf.mxu0
    %v481 = vadd.f32 0.0, %v480
    %v482 = vpop.f32.mrf.mxu0
    %v483 = vadd.f32 0.0, %v482
    %484 = vmatprep.mubr.f32.mxu0 0.0
    %485 = vmatmul.mubr.f32.gmra.mxu0 %v251
    %v486 = vpop.f32.mrf.mxu0
    %v487 = vadd.f32 0.0, %v486
    %v488 = vpop.f32.mrf.mxu0
    %v489 = vadd.f32 0.0, %v488
    %490 = vmatprep.mubr.f32.mxu0 0.0
    %491 = vmatmul.mubr.f32.gmra.mxu0 %v253
    %v492 = vpop.f32.mrf.mxu0
    %v493 = vadd.f32 0.0, %v492
    %v494 = vpop.f32.mrf.mxu0
    %v495 = vadd.f32 0.0, %v494
    %496 = vmatprep.mubr.f32.mxu0 0.0
    %497 = vmatmul.mubr.f32.gmra.mxu0 %v255
    %v498 = vpop.f32.mrf.mxu0
    %v499 = vadd.f32 0.0, %v498
    %v500 = vpop.f32.mrf.mxu0
    %v501 = vadd.f32 0.0, %v500
    %502 = vmatprep.mubr.f32.mxu0 0.0
    %503 = vmatmul.mubr.f32.gmra.mxu0 %v257
    %v504 = vpop.f32.mrf.mxu0
    %v505 = vadd.f32 0.0, %v504
    %v506 = vpop.f32.mrf.mxu0
    %v507 = vadd.f32 0.0, %v506
    %508 = vmatprep.mubr.f32.mxu0 0.0
    %509 = vmatmul.mubr.f32.gmra.mxu0 %v259
    %v510 = vpop.f32.mrf.mxu0
    %v511 = vadd.f32 0.0, %v510
    %v512 = vpop.f32.mrf.mxu0
    %v513 = vadd.f32 0.0, %v512
    %514 = vmatprep.mubr.f32.mxu0 0.0
    %515 = vmatmul.mubr.f32.gmra.mxu0 %v261
    %v516 = vpop.f32.mrf.mxu0
    %v517 = vadd.f32 0.0, %v516
    %v518 = vpop.f32.mrf.mxu0
    %v519 = vadd.f32 0.0, %v518
    %520 = vmatprep.mubr.f32.mxu0 0.0
    %521 = vmatmul.mubr.f32.gmra.mxu0 %v263
    %v522 = vpop.f32.mrf.mxu0
    %v523 = vadd.f32 0.0, %v522
    %v524 = vpop.f32.mrf.mxu0
    %v525 = vadd.f32 0.0, %v524
    %526 = vmatprep.mubr.f32.mxu0 0.0
    %527 = vmatmul.mubr.f32.gmra.mxu0 %v265
    %v528 = vpop.f32.mrf.mxu0
    %v529 = vadd.f32 0.0, %v528
    %v530 = vpop.f32.mrf.mxu0
    %v531 = vadd.f32 0.0, %v530
    %532 = vmatprep.mubr.f32.mxu0 0.0
    %533 = vmatmul.mubr.f32.gmra.mxu0 %v267
    %v534 = vpop.f32.mrf.mxu0
    %v535 = vadd.f32 0.0, %v534
    %v536 = vpop.f32.mrf.mxu0
    %v537 = vadd.f32 0.0, %v536
    %538 = vmatprep.mubr.f32.mxu0 0.0
    %539 = vmatmul.mubr.f32.gmra.mxu0 %v269
    %v540 = vpop.f32.mrf.mxu0
    %v541 = vadd.f32 0.0, %v540
    %v542 = vpop.f32.mrf.mxu0
    %v543 = vadd.f32 0.0, %v542
    %544 = vmatprep.mubr.f32.mxu0 0.0
    %545 = vmatmul.mubr.f32.gmra.mxu0 %v271
    %v546 = vpop.f32.mrf.mxu0
    %v547 = vadd.f32 0.0, %v546
    %v548 = vpop.f32.mrf.mxu0
    %v549 = vadd.f32 0.0, %v548
    %550 = vmatprep.mubr.f32.mxu0 0.0
    %551 = vmatmul.mubr.f32.gmra.mxu0 %v273
    %v552 = vpop.f32.mrf.mxu0
    %v553 = vadd.f32 0.0, %v552
    %v554 = vpop.f32.mrf.mxu0
    %v555 = vadd.f32 0.0, %v554
    %556 = vmatprep.mubr.f32.mxu0 0.0
    %557 = vmatmul.mubr.f32.gmra.mxu0 %v272
    %v558 = vpop.f32.mrf.mxu0
    %v559 = vadd.f32 0.0, %v558
    %v560 = vpop.f32.mrf.mxu0
    %v561 = vadd.f32 0.0, %v560
    %562 = vdwg.mxu0
    %563 = vmatprep.subr.mxu0 %v144
    %564 = vmatpush1.msra.mxu0 %v143
    %565 = vmatprep.subr.mxu0 %v142
    %566 = vmatpush1.msra.mxu0 %v141
    %567 = vmatprep.subr.mxu0 %v140
    %568 = vmatpush1.msra.mxu0 %v139
    %569 = vmatprep.subr.mxu0 %v138
    %570 = vmatpush1.msra.mxu0 %v137
    %571 = vmatprep.subr.mxu0 %v136
    %572 = vmatpush1.msra.mxu0 %v135
    %573 = vmatprep.subr.mxu0 %v134
    %574 = vmatpush1.msra.mxu0 %v133
    %575 = vmatprep.subr.mxu0 %v132
    %576 = vmatpush1.msra.mxu0 %v131
    %577 = vmatprep.subr.mxu0 %v130
    %578 = vmatpush1.msra.mxu0 %v129
    %579 = vmatprep.subr.mxu0 %v128
    %580 = vmatpush1.msra.mxu0 %v127
    %581 = vmatprep.subr.mxu0 %v126
    %582 = vmatpush1.msra.mxu0 %v125
    %583 = vmatprep.subr.mxu0 %v124
    %584 = vmatpush1.msra.mxu0 %v123
    %585 = vmatprep.subr.mxu0 %v122
    %586 = vmatpush1.msra.mxu0 %v121
    %587 = vmatprep.subr.mxu0 %v120
    %588 = vmatpush1.msra.mxu0 %v119
    %589 = vmatprep.subr.mxu0 %v118
    %590 = vmatpush1.msra.mxu0 %v117
    %591 = vmatprep.subr.mxu0 %v116
    %592 = vmatpush1.msra.mxu0 %v115
    %593 = vmatprep.subr.mxu0 %v114
    %594 = vmatpush1.msra.mxu0 %v113
    %595 = vmatprep.subr.mxu0 0.0
    %596 = vmatpush2.msra.mxu0 0.0
    %597 = vmatprep.subr.mxu0 0.0
    %598 = vmatpush2.msra.mxu0 0.0
    %599 = vmatprep.subr.mxu0 0.0
    %600 = vmatpush2.msra.mxu0 0.0
    %601 = vmatprep.subr.mxu0 0.0
    %602 = vmatpush2.msra.mxu0 0.0
    %603 = vmatprep.subr.mxu0 0.0
    %604 = vmatpush2.msra.mxu0 0.0
    %605 = vmatprep.subr.mxu0 0.0
    %606 = vmatpush2.msra.mxu0 0.0
    %607 = vmatprep.subr.mxu0 0.0
    %608 = vmatpush2.msra.mxu0 0.0
    %609 = vmatprep.subr.mxu0 0.0
    %610 = vmatpush2.msra.mxu0 0.0
    %611 = vmatprep.subr.mxu0 0.0
    %612 = vmatpush2.msra.mxu0 0.0
    %613 = vmatprep.subr.mxu0 0.0
    %614 = vmatpush2.msra.mxu0 0.0
    %615 = vmatprep.subr.mxu0 0.0
    %616 = vmatpush2.msra.mxu0 0.0
    %617 = vmatprep.subr.mxu0 0.0
    %618 = vmatpush2.msra.mxu0 0.0
    %619 = vmatprep.subr.mxu0 0.0
    %620 = vmatpush2.msra.mxu0 0.0
    %621 = vmatprep.subr.mxu0 0.0
    %622 = vmatpush2.msra.mxu0 0.0
    %623 = vmatprep.subr.mxu0 0.0
    %624 = vmatpush2.msra.mxu0 0.0
    %625 = vmatprep.subr.mxu0 0.0
    %626 = vmatpush2.msra.mxu0 0.0
    %627 = vmatprep.mubr.f32.mxu0 0.0
    %628 = vmatmul.mubr.f32.gmra.mxu0 %v81
    %v629 = vpop.f32.mrf.mxu0
    %v630 = vadd.f32 %v373, %v629
    %v631 = vpop.f32.mrf.mxu0
    %v632 = vadd.f32 %v375, %v631
    %633 = vmatprep.mubr.f32.mxu0 0.0
    %634 = vmatmul.mubr.f32.gmra.mxu0 %v82
    %v635 = vpop.f32.mrf.mxu0
    %v636 = vadd.f32 %v379, %v635
    %v637 = vpop.f32.mrf.mxu0
    %v638 = vadd.f32 %v381, %v637
    %639 = vmatprep.mubr.f32.mxu0 0.0
    %640 = vmatmul.mubr.f32.gmra.mxu0 %v83
    %v641 = vpop.f32.mrf.mxu0
    %v642 = vadd.f32 %v385, %v641
    %v643 = vpop.f32.mrf.mxu0
    %v644 = vadd.f32 %v387, %v643
    %645 = vmatprep.mubr.f32.mxu0 0.0
    %646 = vmatmul.mubr.f32.gmra.mxu0 %v84
    %v647 = vpop.f32.mrf.mxu0
    %v648 = vadd.f32 %v391, %v647
    %v649 = vpop.f32.mrf.mxu0
    %v650 = vadd.f32 %v393, %v649
    %651 = vmatprep.mubr.f32.mxu0 0.0
    %652 = vmatmul.mubr.f32.gmra.mxu0 %v85
    %v653 = vpop.f32.mrf.mxu0
    %v654 = vadd.f32 %v397, %v653
    %v655 = vpop.f32.mrf.mxu0
    %v656 = vadd.f32 %v399, %v655
    %657 = vmatprep.mubr.f32.mxu0 0.0
    %658 = vmatmul.mubr.f32.gmra.mxu0 %v86
    %v659 = vpop.f32.mrf.mxu0
    %v660 = vadd.f32 %v403, %v659
    %v661 = vpop.f32.mrf.mxu0
    %v662 = vadd.f32 %v405, %v661
    %663 = vmatprep.mubr.f32.mxu0 0.0
    %664 = vmatmul.mubr.f32.gmra.mxu0 %v87
    %v665 = vpop.f32.mrf.mxu0
    %v666 = vadd.f32 %v409, %v665
    %v667 = vpop.f32.mrf.mxu0
    %v668 = vadd.f32 %v411, %v667
    %669 = vmatprep.mubr.f32.mxu0 0.0
    %670 = vmatmul.mubr.f32.gmra.mxu0 %v88
    %v671 = vpop.f32.mrf.mxu0
    %v672 = vadd.f32 %v415, %v671
    %v673 = vpop.f32.mrf.mxu0
    %v674 = vadd.f32 %v417, %v673
    %675 = vmatprep.mubr.f32.mxu0 0.0
    %676 = vmatmul.mubr.f32.gmra.mxu0 %v89
    %v677 = vpop.f32.mrf.mxu0
    %v678 = vadd.f32 %v421, %v677
    %v679 = vpop.f32.mrf.mxu0
    %v680 = vadd.f32 %v423, %v679
    %681 = vmatprep.mubr.f32.mxu0 0.0
    %682 = vmatmul.mubr.f32.gmra.mxu0 %v90
    %v683 = vpop.f32.mrf.mxu0
    %v684 = vadd.f32 %v427, %v683
    %v685 = vpop.f32.mrf.mxu0
    %v686 = vadd.f32 %v429, %v685
    %687 = vmatprep.mubr.f32.mxu0 0.0
    %688 = vmatmul.mubr.f32.gmra.mxu0 %v91
    %v689 = vpop.f32.mrf.mxu0
    %v690 = vadd.f32 %v433, %v689
    %v691 = vpop.f32.mrf.mxu0
    %v692 = vadd.f32 %v435, %v691
    %693 = vmatprep.mubr.f32.mxu0 0.0
    %694 = vmatmul.mubr.f32.gmra.mxu0 %v92
    %v695 = vpop.f32.mrf.mxu0
    %v696 = vadd.f32 %v439, %v695
    %v697 = vpop.f32.mrf.mxu0
    %v698 = vadd.f32 %v441, %v697
    %699 = vmatprep.mubr.f32.mxu0 0.0
    %700 = vmatmul.mubr.f32.gmra.mxu0 %v93
    %v701 = vpop.f32.mrf.mxu0
    %v702 = vadd.f32 %v445, %v701
    %v703 = vpop.f32.mrf.mxu0
    %v704 = vadd.f32 %v447, %v703
    %705 = vmatprep.mubr.f32.mxu0 0.0
    %706 = vmatmul.mubr.f32.gmra.mxu0 %v94
    %v707 = vpop.f32.mrf.mxu0
    %v708 = vadd.f32 %v451, %v707
    %v709 = vpop.f32.mrf.mxu0
    %v710 = vadd.f32 %v453, %v709
    %711 = vmatprep.mubr.f32.mxu0 0.0
    %712 = vmatmul.mubr.f32.gmra.mxu0 %v95
    %v713 = vpop.f32.mrf.mxu0
    %v714 = vadd.f32 %v457, %v713
    %v715 = vpop.f32.mrf.mxu0
    %v716 = vadd.f32 %v459, %v715
    %717 = vmatprep.mubr.f32.mxu0 0.0
    %718 = vmatmul.mubr.f32.gmra.mxu0 %v96
    %v719 = vpop.f32.mrf.mxu0
    %v720 = vadd.f32 %v463, %v719
    %v721 = vpop.f32.mrf.mxu0
    %v722 = vadd.f32 %v465, %v721
    %723 = vmatprep.mubr.f32.mxu0 0.0
    %724 = vmatmul.mubr.f32.gmra.mxu0 %v97
    %v725 = vpop.f32.mrf.mxu0
    %v726 = vadd.f32 %v469, %v725
    %v727 = vpop.f32.mrf.mxu0
    %v728 = vadd.f32 %v471, %v727
    %729 = vmatprep.mubr.f32.mxu0 0.0
    %730 = vmatmul.mubr.f32.gmra.mxu0 %v98
    %v731 = vpop.f32.mrf.mxu0
    %v732 = vadd.f32 %v475, %v731
    %v733 = vpop.f32.mrf.mxu0
    %v734 = vadd.f32 %v477, %v733
    %735 = vmatprep.mubr.f32.mxu0 0.0
    %736 = vmatmul.mubr.f32.gmra.mxu0 %v99
    %v737 = vpop.f32.mrf.mxu0
    %v738 = vadd.f32 %v481, %v737
    %v739 = vpop.f32.mrf.mxu0
    %v740 = vadd.f32 %v483, %v739
    %741 = vmatprep.mubr.f32.mxu0 0.0
    %742 = vmatmul.mubr.f32.gmra.mxu0 %v100
    %v743 = vpop.f32.mrf.mxu0
    %v744 = vadd.f32 %v487, %v743
    %v745 = vpop.f32.mrf.mxu0
    %v746 = vadd.f32 %v489, %v745
    %747 = vmatprep.mubr.f32.mxu0 0.0
    %748 = vmatmul.mubr.f32.gmra.mxu0 %v101
    %v749 = vpop.f32.mrf.mxu0
    %v750 = vadd.f32 %v493, %v749
    %v751 = vpop.f32.mrf.mxu0
    %v752 = vadd.f32 %v495, %v751
    %753 = vmatprep.mubr.f32.mxu0 0.0
    %754 = vmatmul.mubr.f32.gmra.mxu0 %v102
    %v755 = vpop.f32.mrf.mxu0
    %v756 = vadd.f32 %v499, %v755
    %v757 = vpop.f32.mrf.mxu0
    %v758 = vadd.f32 %v501, %v757
    %759 = vmatprep.mubr.f32.mxu0 0.0
    %760 = vmatmul.mubr.f32.gmra.mxu0 %v103
    %v761 = vpop.f32.mrf.mxu0
    %v762 = vadd.f32 %v505, %v761
    %v763 = vpop.f32.mrf.mxu0
    %v764 = vadd.f32 %v507, %v763
    %765 = vmatprep.mubr.f32.mxu0 0.0
    %766 = vmatmul.mubr.f32.gmra.mxu0 %v104
    %v767 = vpop.f32.mrf.mxu0
    %v768 = vadd.f32 %v511, %v767
    %v769 = vpop.f32.mrf.mxu0
    %v770 = vadd.f32 %v513, %v769
    %771 = vmatprep.mubr.f32.mxu0 0.0
    %772 = vmatmul.mubr.f32.gmra.mxu0 %v105
    %v773 = vpop.f32.mrf.mxu0
    %v774 = vadd.f32 %v517, %v773
    %v775 = vpop.f32.mrf.mxu0
    %v776 = vadd.f32 %v519, %v775
    %777 = vmatprep.mubr.f32.mxu0 0.0
    %778 = vmatmul.mubr.f32.gmra.mxu0 %v106
    %v779 = vpop.f32.mrf.mxu0
    %v780 = vadd.f32 %v523, %v779
    %v781 = vpop.f32.mrf.mxu0
    %v782 = vadd.f32 %v525, %v781
    %783 = vmatprep.mubr.f32.mxu0 0.0
    %784 = vmatmul.mubr.f32.gmra.mxu0 %v107
    %v785 = vpop.f32.mrf.mxu0
    %v786 = vadd.f32 %v529, %v785
    %v787 = vpop.f32.mrf.mxu0
    %v788 = vadd.f32 %v531, %v787
    %789 = vmatprep.mubr.f32.mxu0 0.0
    %790 = vmatmul.mubr.f32.gmra.mxu0 %v108
    %v791 = vpop.f32.mrf.mxu0
    %v792 = vadd.f32 %v535, %v791
    %v793 = vpop.f32.mrf.mxu0
    %v794 = vadd.f32 %v537, %v793
    %795 = vmatprep.mubr.f32.mxu0 0.0
    %796 = vmatmul.mubr.f32.gmra.mxu0 %v109
    %v797 = vpop.f32.mrf.mxu0
    %v798 = vadd.f32 %v541, %v797
    %v799 = vpop.f32.mrf.mxu0
    %v800 = vadd.f32 %v543, %v799
    %801 = vmatprep.mubr.f32.mxu0 0.0
    %802 = vmatmul.mubr.f32.gmra.mxu0 %v110
    %v803 = vpop.f32.mrf.mxu0
    %v804 = vadd.f32 %v547, %v803
    %v805 = vpop.f32.mrf.mxu0
    %v806 = vadd.f32 %v549, %v805
    %807 = vmatprep.mubr.f32.mxu0 0.0
    %808 = vmatmul.mubr.f32.gmra.mxu0 %v111
    %v809 = vpop.f32.mrf.mxu0
    %v810 = vadd.f32 %v553, %v809
    %v811 = vpop.f32.mrf.mxu0
    %v812 = vadd.f32 %v555, %v811
    %813 = vmatprep.mubr.f32.mxu0 0.0
    %814 = vmatmul.mubr.f32.gmra.mxu0 %v112
    %v815 = vpop.f32.mrf.mxu0
    %v816 = vadd.f32 %v559, %v815
    %v817 = vpop.f32.mrf.mxu0
    %v818 = vadd.f32 %v561, %v817
    %819 = vdwg.mxu0
    %s820 = scalar_lea.vmem %s1, 512
    %v821 = vld [vmem:[%s820] sm:$0xff]
    %v822 = vld [vmem:[%s820 + $0x8] sm:$0xff]
    %v823 = vld [vmem:[%s820 + $0x10] sm:$0xff]
    %v824 = vld [vmem:[%s820 + $0x18] sm:$0xff]
    %v825 = vld [vmem:[%s820 + $0x20] sm:$0xff]
    %v826 = vld [vmem:[%s820 + $0x28] sm:$0xff]
    %v827 = vld [vmem:[%s820 + $0x30] sm:$0xff]
    %v828 = vld [vmem:[%s820 + $0x38] sm:$0xff]
    %v829 = vld [vmem:[%s820 + $0x40] sm:$0xff]
    %v830 = vld [vmem:[%s820 + $0x48] sm:$0xff]
    %v831 = vld [vmem:[%s820 + $0x50] sm:$0xff]
    %v832 = vld [vmem:[%s820 + $0x58] sm:$0xff]
    %v833 = vld [vmem:[%s820 + $0x60] sm:$0xff]
    %v834 = vld [vmem:[%s820 + $0x68] sm:$0xff]
    %v835 = vld [vmem:[%s820 + $0x70] sm:$0xff]
    %v836 = vld [vmem:[%s820 + $0x78] sm:$0xff]
    %v837 = vld [vmem:[%s820 + $0x80] sm:$0xff]
    %v838 = vld [vmem:[%s820 + $0x88] sm:$0xff]
    %v839 = vld [vmem:[%s820 + $0x90] sm:$0xff]
    %v840 = vld [vmem:[%s820 + $0x98] sm:$0xff]
    %v841 = vld [vmem:[%s820 + $0xa0] sm:$0xff]
    %v842 = vld [vmem:[%s820 + $0xa8] sm:$0xff]
    %v843 = vld [vmem:[%s820 + $0xb0] sm:$0xff]
    %v844 = vld [vmem:[%s820 + $0xb8] sm:$0xff]
    %v845 = vld [vmem:[%s820 + $0xc0] sm:$0xff]
    %v846 = vld [vmem:[%s820 + $0xc8] sm:$0xff]
    %v847 = vld [vmem:[%s820 + $0xd0] sm:$0xff]
    %v848 = vld [vmem:[%s820 + $0xd8] sm:$0xff]
    %v849 = vld [vmem:[%s820 + $0xe0] sm:$0xff]
    %v850 = vld [vmem:[%s820 + $0xe8] sm:$0xff]
    %v851 = vld [vmem:[%s820 + $0xf0] sm:$0xff]
    %v852 = vld [vmem:[%s820 + $0xf8] sm:$0xff]
    %vm853 = vcmask 1045504
    %v854 = vrot.slane %v81, 2
    %v855 = vrot.slane %v82, 2
    %v856 = vsel %vm853, %v854, %v855
    %v857 = vrot.slane %v83, 2
    %v858 = vsel %vm853, %v855, %v857
    %v859 = vrot.slane %v84, 2
    %v860 = vsel %vm853, %v857, %v859
    %v861 = vrot.slane %v85, 2
    %v862 = vsel %vm853, %v859, %v861
    %v863 = vrot.slane %v86, 2
    %v864 = vsel %vm853, %v861, %v863
    %v865 = vrot.slane %v87, 2
    %v866 = vsel %vm853, %v863, %v865
    %v867 = vrot.slane %v88, 2
    %v868 = vsel %vm853, %v865, %v867
    %v869 = vrot.slane %v89, 2
    %v870 = vsel %vm853, %v867, %v869
    %v871 = vrot.slane %v90, 2
    %v872 = vsel %vm853, %v869, %v871
    %v873 = vrot.slane %v91, 2
    %v874 = vsel %vm853, %v871, %v873
    %v875 = vrot.slane %v92, 2
    %v876 = vsel %vm853, %v873, %v875
    %v877 = vrot.slane %v93, 2
    %v878 = vsel %vm853, %v875, %v877
    %v879 = vrot.slane %v94, 2
    %v880 = vsel %vm853, %v877, %v879
    %v881 = vrot.slane %v95, 2
    %v882 = vsel %vm853, %v879, %v881
    %v883 = vrot.slane %v96, 2
    %v884 = vsel %vm853, %v881, %v883
    %v885 = vrot.slane %v97, 2
    %v886 = vsel %vm853, %v883, %v885
    %v887 = vrot.slane %v98, 2
    %v888 = vsel %vm853, %v885, %v887
    %v889 = vrot.slane %v99, 2
    %v890 = vsel %vm853, %v887, %v889
    %v891 = vrot.slane %v100, 2
    %v892 = vsel %vm853, %v889, %v891
    %v893 = vrot.slane %v101, 2
    %v894 = vsel %vm853, %v891, %v893
    %v895 = vrot.slane %v102, 2
    %v896 = vsel %vm853, %v893, %v895
    %v897 = vrot.slane %v103, 2
    %v898 = vsel %vm853, %v895, %v897
    %v899 = vrot.slane %v104, 2
    %v900 = vsel %vm853, %v897, %v899
    %v901 = vrot.slane %v105, 2
    %v902 = vsel %vm853, %v899, %v901
    %v903 = vrot.slane %v106, 2
    %v904 = vsel %vm853, %v901, %v903
    %v905 = vrot.slane %v107, 2
    %v906 = vsel %vm853, %v903, %v905
    %v907 = vrot.slane %v108, 2
    %v908 = vsel %vm853, %v905, %v907
    %v909 = vrot.slane %v109, 2
    %v910 = vsel %vm853, %v907, %v909
    %v911 = vrot.slane %v110, 2
    %v912 = vsel %vm853, %v909, %v911
    %v913 = vrot.slane %v111, 2
    %v914 = vsel %vm853, %v911, %v913
    %v915 = vrot.slane %v112, 2
    %v916 = vsel %vm853, %v913, %v915
    %949 = vmatprep.subr.mxu0 %v852
    %950 = vmatpush1.msra.mxu0 %v851
    %951 = vmatprep.subr.mxu0 %v850
    %952 = vmatpush1.msra.mxu0 %v849
    %953 = vmatprep.subr.mxu0 %v848
    %954 = vmatpush1.msra.mxu0 %v847
    %955 = vmatprep.subr.mxu0 %v846
    %956 = vmatpush1.msra.mxu0 %v845
    %957 = vmatprep.subr.mxu0 %v844
    %958 = vmatpush1.msra.mxu0 %v843
    %959 = vmatprep.subr.mxu0 %v842
    %960 = vmatpush1.msra.mxu0 %v841
    %961 = vmatprep.subr.mxu0 %v840
    %962 = vmatpush1.msra.mxu0 %v839
    %963 = vmatprep.subr.mxu0 %v838
    %964 = vmatpush1.msra.mxu0 %v837
    %965 = vmatprep.subr.mxu0 %v836
    %966 = vmatpush1.msra.mxu0 %v835
    %967 = vmatprep.subr.mxu0 %v834
    %968 = vmatpush1.msra.mxu0 %v833
    %969 = vmatprep.subr.mxu0 %v832
    %970 = vmatpush1.msra.mxu0 %v831
    %971 = vmatprep.subr.mxu0 %v830
    %972 = vmatpush1.msra.mxu0 %v829
    %973 = vmatprep.subr.mxu0 %v828
    %974 = vmatpush1.msra.mxu0 %v827
    %975 = vmatprep.subr.mxu0 %v826
    %976 = vmatpush1.msra.mxu0 %v825
    %977 = vmatprep.subr.mxu0 %v824
    %978 = vmatpush1.msra.mxu0 %v823
    %979 = vmatprep.subr.mxu0 %v822
    %980 = vmatpush1.msra.mxu0 %v821
    %981 = vmatprep.subr.mxu0 0.0
    %982 = vmatpush2.msra.mxu0 0.0
    %983 = vmatprep.subr.mxu0 0.0
    %984 = vmatpush2.msra.mxu0 0.0
    %985 = vmatprep.subr.mxu0 0.0
    %986 = vmatpush2.msra.mxu0 0.0
    %987 = vmatprep.subr.mxu0 0.0
    %988 = vmatpush2.msra.mxu0 0.0
    %989 = vmatprep.subr.mxu0 0.0
    %990 = vmatpush2.msra.mxu0 0.0
    %991 = vmatprep.subr.mxu0 0.0
    %992 = vmatpush2.msra.mxu0 0.0
    %993 = vmatprep.subr.mxu0 0.0
    %994 = vmatpush2.msra.mxu0 0.0
    %995 = vmatprep.subr.mxu0 0.0
    %996 = vmatpush2.msra.mxu0 0.0
    %997 = vmatprep.subr.mxu0 0.0
    %998 = vmatpush2.msra.mxu0 0.0
    %999 = vmatprep.subr.mxu0 0.0
    %1000 = vmatpush2.msra.mxu0 0.0
    %1001 = vmatprep.subr.mxu0 0.0
    %1002 = vmatpush2.msra.mxu0 0.0
    %1003 = vmatprep.subr.mxu0 0.0
    %1004 = vmatpush2.msra.mxu0 0.0
    %1005 = vmatprep.subr.mxu0 0.0
    %1006 = vmatpush2.msra.mxu0 0.0
    %1007 = vmatprep.subr.mxu0 0.0
    %1008 = vmatpush2.msra.mxu0 0.0
    %1009 = vmatprep.subr.mxu0 0.0
    %1010 = vmatpush2.msra.mxu0 0.0
    %1011 = vmatprep.subr.mxu0 0.0
    %1012 = vmatpush2.msra.mxu0 0.0
    %1013 = vmatprep.mubr.f32.mxu0 0.0
    %1014 = vmatmul.mubr.f32.gmra.mxu0 %v856
    %v1015 = vpop.f32.mrf.mxu0
    %v1016 = vadd.f32 0.0, %v1015
    %v1017 = vpop.f32.mrf.mxu0
    %v1018 = vadd.f32 0.0, %v1017
    %1019 = vmatprep.mubr.f32.mxu0 0.0
    %1020 = vmatmul.mubr.f32.gmra.mxu0 %v858
    %v1021 = vpop.f32.mrf.mxu0
    %v1022 = vadd.f32 0.0, %v1021
    %v1023 = vpop.f32.mrf.mxu0
    %v1024 = vadd.f32 0.0, %v1023
    %1025 = vmatprep.mubr.f32.mxu0 0.0
    %1026 = vmatmul.mubr.f32.gmra.mxu0 %v860
    %v1027 = vpop.f32.mrf.mxu0
    %v1028 = vadd.f32 0.0, %v1027
    %v1029 = vpop.f32.mrf.mxu0
    %v1030 = vadd.f32 0.0, %v1029
    %1031 = vmatprep.mubr.f32.mxu0 0.0
    %1032 = vmatmul.mubr.f32.gmra.mxu0 %v862
    %v1033 = vpop.f32.mrf.mxu0
    %v1034 = vadd.f32 0.0, %v1033
    %v1035 = vpop.f32.mrf.mxu0
    %v1036 = vadd.f32 0.0, %v1035
    %1037 = vmatprep.mubr.f32.mxu0 0.0
    %1038 = vmatmul.mubr.f32.gmra.mxu0 %v864
    %v1039 = vpop.f32.mrf.mxu0
    %v1040 = vadd.f32 0.0, %v1039
    %v1041 = vpop.f32.mrf.mxu0
    %v1042 = vadd.f32 0.0, %v1041
    %1043 = vmatprep.mubr.f32.mxu0 0.0
    %1044 = vmatmul.mubr.f32.gmra.mxu0 %v866
    %v1045 = vpop.f32.mrf.mxu0
    %v1046 = vadd.f32 0.0, %v1045
    %v1047 = vpop.f32.mrf.mxu0
    %v1048 = vadd.f32 0.0, %v1047
    %1049 = vmatprep.mubr.f32.mxu0 0.0
    %1050 = vmatmul.mubr.f32.gmra.mxu0 %v868
    %v1051 = vpop.f32.mrf.mxu0
    %v1052 = vadd.f32 0.0, %v1051
    %v1053 = vpop.f32.mrf.mxu0
    %v1054 = vadd.f32 0.0, %v1053
    %1055 = vmatprep.mubr.f32.mxu0 0.0
    %1056 = vmatmul.mubr.f32.gmra.mxu0 %v870
    %v1057 = vpop.f32.mrf.mxu0
    %v1058 = vadd.f32 0.0, %v1057
    %v1059 = vpop.f32.mrf.mxu0
    %v1060 = vadd.f32 0.0, %v1059
    %1061 = vmatprep.mubr.f32.mxu0 0.0
    %1062 = vmatmul.mubr.f32.gmra.mxu0 %v872
    %v1063 = vpop.f32.mrf.mxu0
    %v1064 = vadd.f32 0.0, %v1063
    %v1065 = vpop.f32.mrf.mxu0
    %v1066 = vadd.f32 0.0, %v1065
    %1067 = vmatprep.mubr.f32.mxu0 0.0
    %1068 = vmatmul.mubr.f32.gmra.mxu0 %v874
    %v1069 = vpop.f32.mrf.mxu0
    %v1070 = vadd.f32 0.0, %v1069
    %v1071 = vpop.f32.mrf.mxu0
    %v1072 = vadd.f32 0.0, %v1071
    %1073 = vmatprep.mubr.f32.mxu0 0.0
    %1074 = vmatmul.mubr.f32.gmra.mxu0 %v876
    %v1075 = vpop.f32.mrf.mxu0
    %v1076 = vadd.f32 0.0, %v1075
    %v1077 = vpop.f32.mrf.mxu0
    %v1078 = vadd.f32 0.0, %v1077
    %1079 = vmatprep.mubr.f32.mxu0 0.0
    %1080 = vmatmul.mubr.f32.gmra.mxu0 %v878
    %v1081 = vpop.f32.mrf.mxu0
    %v1082 = vadd.f32 0.0, %v1081
    %v1083 = vpop.f32.mrf.mxu0
    %v1084 = vadd.f32 0.0, %v1083
    %1085 = vmatprep.mubr.f32.mxu0 0.0
    %1086 = vmatmul.mubr.f32.gmra.mxu0 %v880
    %v1087 = vpop.f32.mrf.mxu0
    %v1088 = vadd.f32 0.0, %v1087
    %v1089 = vpop.f32.mrf.mxu0
    %v1090 = vadd.f32 0.0, %v1089
    %1091 = vmatprep.mubr.f32.mxu0 0.0
    %1092 = vmatmul.mubr.f32.gmra.mxu0 %v882
    %v1093 = vpop.f32.mrf.mxu0
    %v1094 = vadd.f32 0.0, %v1093
    %v1095 = vpop.f32.mrf.mxu0
    %v1096 = vadd.f32 0.0, %v1095
    %1097 = vmatprep.mubr.f32.mxu0 0.0
    %1098 = vmatmul.mubr.f32.gmra.mxu0 %v884
    %v1099 = vpop.f32.mrf.mxu0
    %v1100 = vadd.f32 0.0, %v1099
    %v1101 = vpop.f32.mrf.mxu0
    %v1102 = vadd.f32 0.0, %v1101
    %1103 = vmatprep.mubr.f32.mxu0 0.0
    %1104 = vmatmul.mubr.f32.gmra.mxu0 %v886
    %v1105 = vpop.f32.mrf.mxu0
    %v1106 = vadd.f32 0.0, %v1105
    %v1107 = vpop.f32.mrf.mxu0
    %v1108 = vadd.f32 0.0, %v1107
    %1109 = vmatprep.mubr.f32.mxu0 0.0
    %1110 = vmatmul.mubr.f32.gmra.mxu0 %v888
    %v1111 = vpop.f32.mrf.mxu0
    %v1112 = vadd.f32 0.0, %v1111
    %v1113 = vpop.f32.mrf.mxu0
    %v1114 = vadd.f32 0.0, %v1113
    %1115 = vmatprep.mubr.f32.mxu0 0.0
    %1116 = vmatmul.mubr.f32.gmra.mxu0 %v890
    %v1117 = vpop.f32.mrf.mxu0
    %v1118 = vadd.f32 0.0, %v1117
    %v1119 = vpop.f32.mrf.mxu0
    %v1120 = vadd.f32 0.0, %v1119
    %1121 = vmatprep.mubr.f32.mxu0 0.0
    %1122 = vmatmul.mubr.f32.gmra.mxu0 %v892
    %v1123 = vpop.f32.mrf.mxu0
    %v1124 = vadd.f32 0.0, %v1123
    %v1125 = vpop.f32.mrf.mxu0
    %v1126 = vadd.f32 0.0, %v1125
    %1127 = vmatprep.mubr.f32.mxu0 0.0
    %1128 = vmatmul.mubr.f32.gmra.mxu0 %v894
    %v1129 = vpop.f32.mrf.mxu0
    %v1130 = vadd.f32 0.0, %v1129
    %v1131 = vpop.f32.mrf.mxu0
    %v1132 = vadd.f32 0.0, %v1131
    %1133 = vmatprep.mubr.f32.mxu0 0.0
    %1134 = vmatmul.mubr.f32.gmra.mxu0 %v896
    %v1135 = vpop.f32.mrf.mxu0
    %v1136 = vadd.f32 0.0, %v1135
    %v1137 = vpop.f32.mrf.mxu0
    %v1138 = vadd.f32 0.0, %v1137
    %1139 = vmatprep.mubr.f32.mxu0 0.0
    %1140 = vmatmul.mubr.f32.gmra.mxu0 %v898
    %v1141 = vpop.f32.mrf.mxu0
    %v1142 = vadd.f32 0.0, %v1141
    %v1143 = vpop.f32.mrf.mxu0
    %v1144 = vadd.f32 0.0, %v1143
    %1145 = vmatprep.mubr.f32.mxu0 0.0
    %1146 = vmatmul.mubr.f32.gmra.mxu0 %v900
    %v1147 = vpop.f32.mrf.mxu0
    %v1148 = vadd.f32 0.0, %v1147
    %v1149 = vpop.f32.mrf.mxu0
    %v1150 = vadd.f32 0.0, %v1149
    %1151 = vmatprep.mubr.f32.mxu0 0.0
    %1152 = vmatmul.mubr.f32.gmra.mxu0 %v902
    %v1153 = vpop.f32.mrf.mxu0
    %v1154 = vadd.f32 0.0, %v1153
    %v1155 = vpop.f32.mrf.mxu0
    %v1156 = vadd.f32 0.0, %v1155
    %1157 = vmatprep.mubr.f32.mxu0 0.0
    %1158 = vmatmul.mubr.f32.gmra.mxu0 %v904
    %v1159 = vpop.f32.mrf.mxu0
    %v1160 = vadd.f32 0.0, %v1159
    %v1161 = vpop.f32.mrf.mxu0
    %v1162 = vadd.f32 0.0, %v1161
    %1163 = vmatprep.mubr.f32.mxu0 0.0
    %1164 = vmatmul.mubr.f32.gmra.mxu0 %v906
    %v1165 = vpop.f32.mrf.mxu0
    %v1166 = vadd.f32 0.0, %v1165
    %v1167 = vpop.f32.mrf.mxu0
    %v1168 = vadd.f32 0.0, %v1167
    %1169 = vmatprep.mubr.f32.mxu0 0.0
    %1170 = vmatmul.mubr.f32.gmra.mxu0 %v908
    %v1171 = vpop.f32.mrf.mxu0
    %v1172 = vadd.f32 0.0, %v1171
    %v1173 = vpop.f32.mrf.mxu0
    %v1174 = vadd.f32 0.0, %v1173
    %1175 = vmatprep.mubr.f32.mxu0 0.0
    %1176 = vmatmul.mubr.f32.gmra.mxu0 %v910
    %v1177 = vpop.f32.mrf.mxu0
    %v1178 = vadd.f32 0.0, %v1177
    %v1179 = vpop.f32.mrf.mxu0
    %v1180 = vadd.f32 0.0, %v1179
    %1181 = vmatprep.mubr.f32.mxu0 0.0
    %1182 = vmatmul.mubr.f32.gmra.mxu0 %v912
    %v1183 = vpop.f32.mrf.mxu0
    %v1184 = vadd.f32 0.0, %v1183
    %v1185 = vpop.f32.mrf.mxu0
    %v1186 = vadd.f32 0.0, %v1185
    %1187 = vmatprep.mubr.f32.mxu0 0.0
    %1188 = vmatmul.mubr.f32.gmra.mxu0 %v914
    %v1189 = vpop.f32.mrf.mxu0
    %v1190 = vadd.f32 0.0, %v1189
    %v1191 = vpop.f32.mrf.mxu0
    %v1192 = vadd.f32 0.0, %v1191
    %1193 = vmatprep.mubr.f32.mxu0 0.0
    %1194 = vmatmul.mubr.f32.gmra.mxu0 %v916
    %v1195 = vpop.f32.mrf.mxu0
    %v1196 = vadd.f32 0.0, %v1195
    %v1197 = vpop.f32.mrf.mxu0
    %v1198 = vadd.f32 0.0, %v1197
    %1199 = vmatprep.mubr.f32.mxu0 0.0
    %1200 = vmatmul.mubr.f32.gmra.mxu0 %v915
    %v1201 = vpop.f32.mrf.mxu0
    %v1202 = vadd.f32 0.0, %v1201
    %v1203 = vpop.f32.mrf.mxu0
    %v1204 = vadd.f32 0.0, %v1203
    %1205 = vdwg.mxu0
    %v1206 = vadd.f32 %v630, %v1016
    %v1207 = vadd.f32 %v632, %v1018
    %v1208 = vadd.f32 %v636, %v1022
    %v1209 = vadd.f32 %v638, %v1024
    %v1210 = vadd.f32 %v642, %v1028
    %v1211 = vadd.f32 %v644, %v1030
    %v1212 = vadd.f32 %v648, %v1034
    %v1213 = vadd.f32 %v650, %v1036
    %v1214 = vadd.f32 %v654, %v1040
    %v1215 = vadd.f32 %v656, %v1042
    %v1216 = vadd.f32 %v660, %v1046
    %v1217 = vadd.f32 %v662, %v1048
    %v1218 = vadd.f32 %v666, %v1052
    %v1219 = vadd.f32 %v668, %v1054
    %v1220 = vadd.f32 %v672, %v1058
    %v1221 = vadd.f32 %v674, %v1060
    %v1222 = vadd.f32 %v678, %v1064
    %v1223 = vadd.f32 %v680, %v1066
    %v1224 = vadd.f32 %v684, %v1070
    %v1225 = vadd.f32 %v686, %v1072
    %v1226 = vadd.f32 %v690, %v1076
    %v1227 = vadd.f32 %v692, %v1078
    %v1228 = vadd.f32 %v696, %v1082
    %v1229 = vadd.f32 %v698, %v1084
    %v1230 = vadd.f32 %v702, %v1088
    %v1231 = vadd.f32 %v704, %v1090
    %v1232 = vadd.f32 %v708, %v1094
    %v1233 = vadd.f32 %v710, %v1096
    %v1234 = vadd.f32 %v714, %v1100
    %v1235 = vadd.f32 %v716, %v1102
    %v1236 = vadd.f32 %v720, %v1106
    %v1237 = vadd.f32 %v722, %v1108
    %v1238 = vadd.f32 %v726, %v1112
    %v1239 = vadd.f32 %v728, %v1114
    %v1240 = vadd.f32 %v732, %v1118
    %v1241 = vadd.f32 %v734, %v1120
    %v1242 = vadd.f32 %v738, %v1124
    %v1243 = vadd.f32 %v740, %v1126
    %v1244 = vadd.f32 %v744, %v1130
    %v1245 = vadd.f32 %v746, %v1132
    %v1246 = vadd.f32 %v750, %v1136
    %v1247 = vadd.f32 %v752, %v1138
    %v1248 = vadd.f32 %v756, %v1142
    %v1249 = vadd.f32 %v758, %v1144
    %v1250 = vadd.f32 %v762, %v1148
    %v1251 = vadd.f32 %v764, %v1150
    %v1252 = vadd.f32 %v768, %v1154
    %v1253 = vadd.f32 %v770, %v1156
    %v1254 = vadd.f32 %v774, %v1160
    %v1255 = vadd.f32 %v776, %v1162
    %v1256 = vadd.f32 %v780, %v1166
    %v1257 = vadd.f32 %v782, %v1168
    %v1258 = vadd.f32 %v786, %v1172
    %v1259 = vadd.f32 %v788, %v1174
    %v1260 = vadd.f32 %v792, %v1178
    %v1261 = vadd.f32 %v794, %v1180
    %v1262 = vadd.f32 %v798, %v1184
    %v1263 = vadd.f32 %v800, %v1186
    %v1264 = vadd.f32 %v804, %v1190
    %v1265 = vadd.f32 %v806, %v1192
    %v1266 = vadd.f32 %v810, %v1196
    %v1267 = vadd.f32 %v812, %v1198
    %v1268 = vadd.f32 %v816, %v1202
    %v1269 = vadd.f32 %v818, %v1204
    %v1270 = vld [vmem:[%s2] sm:$0x3]
    %v1272 = vlaneseq
    %v1273 = vshrl.u32 %v1272, 7
    %v1274 = vsub.s32 0, %v1273
    %v1275 = vrot.slane %v1270, %v1274
    %v1276 = vlaneseq
    %v1277 = vshrl.u32 %v1276, 7
    %v1278 = vsub.s32 1, %v1277
    %v1279 = vrot.slane %v1270, %v1278
    %v1282 = vadd.f32 %v1206, %v1275
    %v1283 = vadd.f32 %v1207, %v1279
    %v1284 = vadd.f32 %v1208, %v1275
    %v1285 = vadd.f32 %v1209, %v1279
    %v1286 = vadd.f32 %v1210, %v1275
    %v1287 = vadd.f32 %v1211, %v1279
    %v1288 = vadd.f32 %v1212, %v1275
    %v1289 = vadd.f32 %v1213, %v1279
    %v1290 = vadd.f32 %v1214, %v1275
    %v1291 = vadd.f32 %v1215, %v1279
    %v1292 = vadd.f32 %v1216, %v1275
    %v1293 = vadd.f32 %v1217, %v1279
    %v1294 = vadd.f32 %v1218, %v1275
    %v1295 = vadd.f32 %v1219, %v1279
    %v1296 = vadd.f32 %v1220, %v1275
    %v1297 = vadd.f32 %v1221, %v1279
    %v1298 = vadd.f32 %v1222, %v1275
    %v1299 = vadd.f32 %v1223, %v1279
    %v1300 = vadd.f32 %v1224, %v1275
    %v1301 = vadd.f32 %v1225, %v1279
    %v1302 = vadd.f32 %v1226, %v1275
    %v1303 = vadd.f32 %v1227, %v1279
    %v1304 = vadd.f32 %v1228, %v1275
    %v1305 = vadd.f32 %v1229, %v1279
    %v1306 = vadd.f32 %v1230, %v1275
    %v1307 = vadd.f32 %v1231, %v1279
    %v1308 = vadd.f32 %v1232, %v1275
    %v1309 = vadd.f32 %v1233, %v1279
    %v1310 = vadd.f32 %v1234, %v1275
    %v1311 = vadd.f32 %v1235, %v1279
    %v1312 = vadd.f32 %v1236, %v1275
    %v1313 = vadd.f32 %v1237, %v1279
    %v1314 = vadd.f32 %v1238, %v1275
    %v1315 = vadd.f32 %v1239, %v1279
    %v1316 = vadd.f32 %v1240, %v1275
    %v1317 = vadd.f32 %v1241, %v1279
    %v1318 = vadd.f32 %v1242, %v1275
    %v1319 = vadd.f32 %v1243, %v1279
    %v1320 = vadd.f32 %v1244, %v1275
    %v1321 = vadd.f32 %v1245, %v1279
    %v1322 = vadd.f32 %v1246, %v1275
    %v1323 = vadd.f32 %v1247, %v1279
    %v1324 = vadd.f32 %v1248, %v1275
    %v1325 = vadd.f32 %v1249, %v1279
    %v1326 = vadd.f32 %v1250, %v1275
    %v1327 = vadd.f32 %v1251, %v1279
    %v1328 = vadd.f32 %v1252, %v1275
    %v1329 = vadd.f32 %v1253, %v1279
    %v1330 = vadd.f32 %v1254, %v1275
    %v1331 = vadd.f32 %v1255, %v1279
    %v1332 = vadd.f32 %v1256, %v1275
    %v1333 = vadd.f32 %v1257, %v1279
    %v1334 = vadd.f32 %v1258, %v1275
    %v1335 = vadd.f32 %v1259, %v1279
    %v1336 = vadd.f32 %v1260, %v1275
    %v1337 = vadd.f32 %v1261, %v1279
    %v1338 = vadd.f32 %v1262, %v1275
    %v1339 = vadd.f32 %v1263, %v1279
    %v1340 = vadd.f32 %v1264, %v1275
    %v1341 = vadd.f32 %v1265, %v1279
    %v1342 = vadd.f32 %v1266, %v1275
    %v1343 = vadd.f32 %v1267, %v1279
    %v1344 = vadd.f32 %v1268, %v1275
    %v1345 = vadd.f32 %v1269, %v1279
    %v1346 = vmax.f32 %v1282, 0.0
    %v1347 = vmax.f32 %v1283, 0.0
    %v1348 = vmax.f32 %v1284, 0.0
    %v1349 = vmax.f32 %v1285, 0.0
    %v1350 = vmax.f32 %v1286, 0.0
    %v1351 = vmax.f32 %v1287, 0.0
    %v1352 = vmax.f32 %v1288, 0.0
    %v1353 = vmax.f32 %v1289, 0.0
    %v1354 = vmax.f32 %v1290, 0.0
    %v1355 = vmax.f32 %v1291, 0.0
    %v1356 = vmax.f32 %v1292, 0.0
    %v1357 = vmax.f32 %v1293, 0.0
    %v1358 = vmax.f32 %v1294, 0.0
    %v1359 = vmax.f32 %v1295, 0.0
    %v1360 = vmax.f32 %v1296, 0.0
    %v1361 = vmax.f32 %v1297, 0.0
    %v1362 = vmax.f32 %v1298, 0.0
    %v1363 = vmax.f32 %v1299, 0.0
    %v1364 = vmax.f32 %v1300, 0.0
    %v1365 = vmax.f32 %v1301, 0.0
    %v1366 = vmax.f32 %v1302, 0.0
    %v1367 = vmax.f32 %v1303, 0.0
    %v1368 = vmax.f32 %v1304, 0.0
    %v1369 = vmax.f32 %v1305, 0.0
    %v1370 = vmax.f32 %v1306, 0.0
    %v1371 = vmax.f32 %v1307, 0.0
    %v1372 = vmax.f32 %v1308, 0.0
    %v1373 = vmax.f32 %v1309, 0.0
    %v1374 = vmax.f32 %v1310, 0.0
    %v1375 = vmax.f32 %v1311, 0.0
    %v1376 = vmax.f32 %v1312, 0.0
    %v1377 = vmax.f32 %v1313, 0.0
    %v1378 = vmax.f32 %v1314, 0.0
    %v1379 = vmax.f32 %v1315, 0.0
    %v1380 = vmax.f32 %v1316, 0.0
    %v1381 = vmax.f32 %v1317, 0.0
    %v1382 = vmax.f32 %v1318, 0.0
    %v1383 = vmax.f32 %v1319, 0.0
    %v1384 = vmax.f32 %v1320, 0.0
    %v1385 = vmax.f32 %v1321, 0.0
    %v1386 = vmax.f32 %v1322, 0.0
    %v1387 = vmax.f32 %v1323, 0.0
    %v1388 = vmax.f32 %v1324, 0.0
    %v1389 = vmax.f32 %v1325, 0.0
    %v1390 = vmax.f32 %v1326, 0.0
    %v1391 = vmax.f32 %v1327, 0.0
    %v1392 = vmax.f32 %v1328, 0.0
    %v1393 = vmax.f32 %v1329, 0.0
    %v1394 = vmax.f32 %v1330, 0.0
    %v1395 = vmax.f32 %v1331, 0.0
    %v1396 = vmax.f32 %v1332, 0.0
    %v1397 = vmax.f32 %v1333, 0.0
    %v1398 = vmax.f32 %v1334, 0.0
    %v1399 = vmax.f32 %v1335, 0.0
    %v1400 = vmax.f32 %v1336, 0.0
    %v1401 = vmax.f32 %v1337, 0.0
    %v1402 = vmax.f32 %v1338, 0.0
    %v1403 = vmax.f32 %v1339, 0.0
    %v1404 = vmax.f32 %v1340, 0.0
    %v1405 = vmax.f32 %v1341, 0.0
    %v1406 = vmax.f32 %v1342, 0.0
    %v1407 = vmax.f32 %v1343, 0.0
    %v1408 = vmax.f32 %v1344, 0.0
    %v1409 = vmax.f32 %v1345, 0.0
    %v1474 = vrot.slane %v1346, 1
    %v1475 = vrot.slane %v1348, 1
    %v1476 = vsel %vm210, %v1474, %v1475
    %v1477 = vrot.slane %v1347, 1
    %v1478 = vrot.slane %v1349, 1
    %v1479 = vsel %vm210, %v1477, %v1478
    %v1480 = vrot.slane %v1350, 1
    %v1481 = vsel %vm210, %v1475, %v1480
    %v1482 = vrot.slane %v1351, 1
    %v1483 = vsel %vm210, %v1478, %v1482
    %v1484 = vrot.slane %v1352, 1
    %v1485 = vsel %vm210, %v1480, %v1484
    %v1486 = vrot.slane %v1353, 1
    %v1487 = vsel %vm210, %v1482, %v1486
    %v1488 = vrot.slane %v1354, 1
    %v1489 = vsel %vm210, %v1484, %v1488
    %v1490 = vrot.slane %v1355, 1
    %v1491 = vsel %vm210, %v1486, %v1490
    %v1492 = vrot.slane %v1356, 1
    %v1493 = vsel %vm210, %v1488, %v1492
    %v1494 = vrot.slane %v1357, 1
    %v1495 = vsel %vm210, %v1490, %v1494
    %v1496 = vrot.slane %v1358, 1
    %v1497 = vsel %vm210, %v1492, %v1496
    %v1498 = vrot.slane %v1359, 1
    %v1499 = vsel %vm210, %v1494, %v1498
    %v1500 = vrot.slane %v1360, 1
    %v1501 = vsel %vm210, %v1496, %v1500
    %v1502 = vrot.slane %v1361, 1
    %v1503 = vsel %vm210, %v1498, %v1502
    %v1504 = vrot.slane %v1362, 1
    %v1505 = vsel %vm210, %v1500, %v1504
    %v1506 = vrot.slane %v1363, 1
    %v1507 = vsel %vm210, %v1502, %v1506
    %v1508 = vrot.slane %v1364, 1
    %v1509 = vsel %vm210, %v1504, %v1508
    %v1510 = vrot.slane %v1365, 1
    %v1511 = vsel %vm210, %v1506, %v1510
    %v1512 = vrot.slane %v1366, 1
    %v1513 = vsel %vm210, %v1508, %v1512
    %v1514 = vrot.slane %v1367, 1
    %v1515 = vsel %vm210, %v1510, %v1514
    %v1516 = vrot.slane %v1368, 1
    %v1517 = vsel %vm210, %v1512, %v1516
    %v1518 = vrot.slane %v1369, 1
    %v1519 = vsel %vm210, %v1514, %v1518
    %v1520 = vrot.slane %v1370, 1
    %v1521 = vsel %vm210, %v1516, %v1520
    %v1522 = vrot.slane %v1371, 1
    %v1523 = vsel %vm210, %v1518, %v1522
    %v1524 = vrot.slane %v1372, 1
    %v1525 = vsel %vm210, %v1520, %v1524
    %v1526 = vrot.slane %v1373, 1
    %v1527 = vsel %vm210, %v1522, %v1526
    %v1528 = vrot.slane %v1374, 1
    %v1529 = vsel %vm210, %v1524, %v1528
    %v1530 = vrot.slane %v1375, 1
    %v1531 = vsel %vm210, %v1526, %v1530
    %v1532 = vrot.slane %v1376, 1
    %v1533 = vsel %vm210, %v1528, %v1532
    %v1534 = vrot.slane %v1377, 1
    %v1535 = vsel %vm210, %v1530, %v1534
    %v1536 = vrot.slane %v1378, 1
    %v1537 = vsel %vm210, %v1532, %v1536
    %v1538 = vrot.slane %v1379, 1
    %v1539 = vsel %vm210, %v1534, %v1538
    %v1540 = vrot.slane %v1380, 1
    %v1541 = vsel %vm210, %v1536, %v1540
    %v1542 = vrot.slane %v1381, 1
    %v1543 = vsel %vm210, %v1538, %v1542
    %v1544 = vrot.slane %v1382, 1
    %v1545 = vsel %vm210, %v1540, %v1544
    %v1546 = vrot.slane %v1383, 1
    %v1547 = vsel %vm210, %v1542, %v1546
    %v1548 = vrot.slane %v1384, 1
    %v1549 = vsel %vm210, %v1544, %v1548
    %v1550 = vrot.slane %v1385, 1
    %v1551 = vsel %vm210, %v1546, %v1550
    %v1552 = vrot.slane %v1386, 1
    %v1553 = vsel %vm210, %v1548, %v1552
    %v1554 = vrot.slane %v1387, 1
    %v1555 = vsel %vm210, %v1550, %v1554
    %v1556 = vrot.slane %v1388, 1
    %v1557 = vsel %vm210, %v1552, %v1556
    %v1558 = vrot.slane %v1389, 1
    %v1559 = vsel %vm210, %v1554, %v1558
    %v1560 = vrot.slane %v1390, 1
    %v1561 = vsel %vm210, %v1556, %v1560
    %v1562 = vrot.slane %v1391, 1
    %v1563 = vsel %vm210, %v1558, %v1562
    %v1564 = vrot.slane %v1392, 1
    %v1565 = vsel %vm210, %v1560, %v1564
    %v1566 = vrot.slane %v1393, 1
    %v1567 = vsel %vm210, %v1562, %v1566
    %v1568 = vrot.slane %v1394, 1
    %v1569 = vsel %vm210, %v1564, %v1568
    %v1570 = vrot.slane %v1395, 1
    %v1571 = vsel %vm210, %v1566, %v1570
    %v1572 = vrot.slane %v1396, 1
    %v1573 = vsel %vm210, %v1568, %v1572
    %v1574 = vrot.slane %v1397, 1
    %v1575 = vsel %vm210, %v1570, %v1574
    %v1576 = vrot.slane %v1398, 1
    %v1577 = vsel %vm210, %v1572, %v1576
    %v1578 = vrot.slane %v1399, 1
    %v1579 = vsel %vm210, %v1574, %v1578
    %v1580 = vrot.slane %v1400, 1
    %v1581 = vsel %vm210, %v1576, %v1580
    %v1582 = vrot.slane %v1401, 1
    %v1583 = vsel %vm210, %v1578, %v1582
    %v1584 = vrot.slane %v1402, 1
    %v1585 = vsel %vm210, %v1580, %v1584
    %v1586 = vrot.slane %v1403, 1
    %v1587 = vsel %vm210, %v1582, %v1586
    %v1588 = vrot.slane %v1404, 1
    %v1589 = vsel %vm210, %v1584, %v1588
    %v1590 = vrot.slane %v1405, 1
    %v1591 = vsel %vm210, %v1586, %v1590
    %v1592 = vrot.slane %v1406, 1
    %v1593 = vsel %vm210, %v1588, %v1592
    %v1594 = vrot.slane %v1407, 1
    %v1595 = vsel %vm210, %v1590, %v1594
    %v1596 = vrot.slane %v1408, 1
    %v1597 = vsel %vm210, %v1592, %v1596
    %v1598 = vrot.slane %v1409, 1
    %v1599 = vsel %vm210, %v1594, %v1598
    %v1664 = vmax.f32 %v1346, %v1476
    %v1665 = vmax.f32 %v1347, %v1479
    %v1666 = vmax.f32 %v1348, %v1481
    %v1667 = vmax.f32 %v1349, %v1483
    %v1668 = vmax.f32 %v1350, %v1485
    %v1669 = vmax.f32 %v1351, %v1487
    %v1670 = vmax.f32 %v1352, %v1489
    %v1671 = vmax.f32 %v1353, %v1491
    %v1672 = vmax.f32 %v1354, %v1493
    %v1673 = vmax.f32 %v1355, %v1495
    %v1674 = vmax.f32 %v1356, %v1497
    %v1675 = vmax.f32 %v1357, %v1499
    %v1676 = vmax.f32 %v1358, %v1501
    %v1677 = vmax.f32 %v1359, %v1503
    %v1678 = vmax.f32 %v1360, %v1505
    %v1679 = vmax.f32 %v1361, %v1507
    %v1680 = vmax.f32 %v1362, %v1509
    %v1681 = vmax.f32 %v1363, %v1511
    %v1682 = vmax.f32 %v1364, %v1513
    %v1683 = vmax.f32 %v1365, %v1515
    %v1684 = vmax.f32 %v1366, %v1517
    %v1685 = vmax.f32 %v1367, %v1519
    %v1686 = vmax.f32 %v1368, %v1521
    %v1687 = vmax.f32 %v1369, %v1523
    %v1688 = vmax.f32 %v1370, %v1525
    %v1689 = vmax.f32 %v1371, %v1527
    %v1690 = vmax.f32 %v1372, %v1529
    %v1691 = vmax.f32 %v1373, %v1531
    %v1692 = vmax.f32 %v1374, %v1533
    %v1693 = vmax.f32 %v1375, %v1535
    %v1694 = vmax.f32 %v1376, %v1537
    %v1695 = vmax.f32 %v1377, %v1539
    %v1696 = vmax.f32 %v1378, %v1541
    %v1697 = vmax.f32 %v1379, %v1543
    %v1698 = vmax.f32 %v1380, %v1545
    %v1699 = vmax.f32 %v1381, %v1547
    %v1700 = vmax.f32 %v1382, %v1549
    %v1701 = vmax.f32 %v1383, %v1551
    %v1702 = vmax.f32 %v1384, %v1553
    %v1703 = vmax.f32 %v1385, %v1555
    %v1704 = vmax.f32 %v1386, %v1557
    %v1705 = vmax.f32 %v1387, %v1559
    %v1706 = vmax.f32 %v1388, %v1561
    %v1707 = vmax.f32 %v1389, %v1563
    %v1708 = vmax.f32 %v1390, %v1565
    %v1709 = vmax.f32 %v1391, %v1567
    %v1710 = vmax.f32 %v1392, %v1569
    %v1711 = vmax.f32 %v1393, %v1571
    %v1712 = vmax.f32 %v1394, %v1573
    %v1713 = vmax.f32 %v1395, %v1575
    %v1714 = vmax.f32 %v1396, %v1577
    %v1715 = vmax.f32 %v1397, %v1579
    %v1716 = vmax.f32 %v1398, %v1581
    %v1717 = vmax.f32 %v1399, %v1583
    %v1718 = vmax.f32 %v1400, %v1585
    %v1719 = vmax.f32 %v1401, %v1587
    %v1720 = vmax.f32 %v1402, %v1589
    %v1721 = vmax.f32 %v1403, %v1591
    %v1722 = vmax.f32 %v1404, %v1593
    %v1723 = vmax.f32 %v1405, %v1595
    %v1724 = vmax.f32 %v1406, %v1597
    %v1725 = vmax.f32 %v1407, %v1599
    %v1726 = vmax.f32 %v1408, %v1596
    %v1727 = vmax.f32 %v1409, %v1598
    %1792 = vrot.lane.b32.xlu0 %v1664, 122
    %v1793 = vpop.permute.xlu0 %1792
    %1794 = vrot.lane.b32.xlu0 %v1665, 122
    %v1795 = vpop.permute.xlu0 %1794
    %1796 = vrot.lane.b32.xlu0 %v1666, 122
    %v1797 = vpop.permute.xlu0 %1796
    %1798 = vrot.lane.b32.xlu0 %v1667, 122
    %v1799 = vpop.permute.xlu0 %1798
    %1800 = vrot.lane.b32.xlu0 %v1668, 122
    %v1801 = vpop.permute.xlu0 %1800
    %1802 = vrot.lane.b32.xlu0 %v1669, 122
    %v1803 = vpop.permute.xlu0 %1802
    %1804 = vrot.lane.b32.xlu0 %v1670, 122
    %v1805 = vpop.permute.xlu0 %1804
    %1806 = vrot.lane.b32.xlu0 %v1671, 122
    %v1807 = vpop.permute.xlu0 %1806
    %1808 = vrot.lane.b32.xlu0 %v1672, 122
    %v1809 = vpop.permute.xlu0 %1808
    %1810 = vrot.lane.b32.xlu0 %v1673, 122
    %v1811 = vpop.permute.xlu0 %1810
    %1812 = vrot.lane.b32.xlu0 %v1674, 122
    %v1813 = vpop.permute.xlu0 %1812
    %1814 = vrot.lane.b32.xlu0 %v1675, 122
    %v1815 = vpop.permute.xlu0 %1814
    %1816 = vrot.lane.b32.xlu0 %v1676, 122
    %v1817 = vpop.permute.xlu0 %1816
    %1818 = vrot.lane.b32.xlu0 %v1677, 122
    %v1819 = vpop.permute.xlu0 %1818
    %1820 = vrot.lane.b32.xlu0 %v1678, 122
    %v1821 = vpop.permute.xlu0 %1820
    %1822 = vrot.lane.b32.xlu0 %v1679, 122
    %v1823 = vpop.permute.xlu0 %1822
    %1824 = vrot.lane.b32.xlu0 %v1680, 122
    %v1825 = vpop.permute.xlu0 %1824
    %1826 = vrot.lane.b32.xlu0 %v1681, 122
    %v1827 = vpop.permute.xlu0 %1826
    %1828 = vrot.lane.b32.xlu0 %v1682, 122
    %v1829 = vpop.permute.xlu0 %1828
    %1830 = vrot.lane.b32.xlu0 %v1683, 122
    %v1831 = vpop.permute.xlu0 %1830
    %1832 = vrot.lane.b32.xlu0 %v1684, 122
    %v1833 = vpop.permute.xlu0 %1832
    %1834 = vrot.lane.b32.xlu0 %v1685, 122
    %v1835 = vpop.permute.xlu0 %1834
    %1836 = vrot.lane.b32.xlu0 %v1686, 122
    %v1837 = vpop.permute.xlu0 %1836
    %1838 = vrot.lane.b32.xlu0 %v1687, 122
    %v1839 = vpop.permute.xlu0 %1838
    %1840 = vrot.lane.b32.xlu0 %v1688, 122
    %v1841 = vpop.permute.xlu0 %1840
    %1842 = vrot.lane.b32.xlu0 %v1689, 122
    %v1843 = vpop.permute.xlu0 %1842
    %1844 = vrot.lane.b32.xlu0 %v1690, 122
    %v1845 = vpop.permute.xlu0 %1844
    %1846 = vrot.lane.b32.xlu0 %v1691, 122
    %v1847 = vpop.permute.xlu0 %1846
    %1848 = vrot.lane.b32.xlu0 %v1692, 122
    %v1849 = vpop.permute.xlu0 %1848
    %1850 = vrot.lane.b32.xlu0 %v1693, 122
    %v1851 = vpop.permute.xlu0 %1850
    %1852 = vrot.lane.b32.xlu0 %v1694, 122
    %v1853 = vpop.permute.xlu0 %1852
    %1854 = vrot.lane.b32.xlu0 %v1695, 122
    %v1855 = vpop.permute.xlu0 %1854
    %1856 = vrot.lane.b32.xlu0 %v1696, 122
    %v1857 = vpop.permute.xlu0 %1856
    %1858 = vrot.lane.b32.xlu0 %v1697, 122
    %v1859 = vpop.permute.xlu0 %1858
    %1860 = vrot.lane.b32.xlu0 %v1698, 122
    %v1861 = vpop.permute.xlu0 %1860
    %1862 = vrot.lane.b32.xlu0 %v1699, 122
    %v1863 = vpop.permute.xlu0 %1862
    %1864 = vrot.lane.b32.xlu0 %v1700, 122
    %v1865 = vpop.permute.xlu0 %1864
    %1866 = vrot.lane.b32.xlu0 %v1701, 122
    %v1867 = vpop.permute.xlu0 %1866
    %1868 = vrot.lane.b32.xlu0 %v1702, 122
    %v1869 = vpop.permute.xlu0 %1868
    %1870 = vrot.lane.b32.xlu0 %v1703, 122
    %v1871 = vpop.permute.xlu0 %1870
    %1872 = vrot.lane.b32.xlu0 %v1704, 122
    %v1873 = vpop.permute.xlu0 %1872
    %1874 = vrot.lane.b32.xlu0 %v1705, 122
    %v1875 = vpop.permute.xlu0 %1874
    %1876 = vrot.lane.b32.xlu0 %v1706, 122
    %v1877 = vpop.permute.xlu0 %1876
    %1878 = vrot.lane.b32.xlu0 %v1707, 122
    %v1879 = vpop.permute.xlu0 %1878
    %1880 = vrot.lane.b32.xlu0 %v1708, 122
    %v1881 = vpop.permute.xlu0 %1880
    %1882 = vrot.lane.b32.xlu0 %v1709, 122
    %v1883 = vpop.permute.xlu0 %1882
    %1884 = vrot.lane.b32.xlu0 %v1710, 122
    %v1885 = vpop.permute.xlu0 %1884
    %1886 = vrot.lane.b32.xlu0 %v1711, 122
    %v1887 = vpop.permute.xlu0 %1886
    %1888 = vrot.lane.b32.xlu0 %v1712, 122
    %v1889 = vpop.permute.xlu0 %1888
    %1890 = vrot.lane.b32.xlu0 %v1713, 122
    %v1891 = vpop.permute.xlu0 %1890
    %1892 = vrot.lane.b32.xlu0 %v1714, 122
    %v1893 = vpop.permute.xlu0 %1892
    %1894 = vrot.lane.b32.xlu0 %v1715, 122
    %v1895 = vpop.permute.xlu0 %1894
    %1896 = vrot.lane.b32.xlu0 %v1716, 122
    %v1897 = vpop.permute.xlu0 %1896
    %1898 = vrot.lane.b32.xlu0 %v1717, 122
    %v1899 = vpop.permute.xlu0 %1898
    %1900 = vrot.lane.b32.xlu0 %v1718, 122
    %v1901 = vpop.permute.xlu0 %1900
    %1902 = vrot.lane.b32.xlu0 %v1719, 122
    %v1903 = vpop.permute.xlu0 %1902
    %1904 = vrot.lane.b32.xlu0 %v1720, 122
    %v1905 = vpop.permute.xlu0 %1904
    %1906 = vrot.lane.b32.xlu0 %v1721, 122
    %v1907 = vpop.permute.xlu0 %1906
    %1908 = vrot.lane.b32.xlu0 %v1722, 122
    %v1909 = vpop.permute.xlu0 %1908
    %1910 = vrot.lane.b32.xlu0 %v1723, 122
    %v1911 = vpop.permute.xlu0 %1910
    %1912 = vrot.lane.b32.xlu0 %v1724, 122
    %v1913 = vpop.permute.xlu0 %1912
    %1914 = vrot.lane.b32.xlu0 %v1725, 122
    %v1915 = vpop.permute.xlu0 %1914
    %1916 = vrot.lane.b32.xlu0 %v1726, 122
    %v1917 = vpop.permute.xlu0 %1916
    %1918 = vrot.lane.b32.xlu0 %v1727, 122
    %v1919 = vpop.permute.xlu0 %1918
    %vm1920 = vcmask 998400
    %v1921 = vsel %vm1920, %v1793, %v1795
    %v1922 = vsel %vm1920, %v1797, %v1799
    %v1923 = vsel %vm1920, %v1801, %v1803
    %v1924 = vsel %vm1920, %v1805, %v1807
    %v1925 = vsel %vm1920, %v1809, %v1811
    %v1926 = vsel %vm1920, %v1813, %v1815
    %v1927 = vsel %vm1920, %v1817, %v1819
    %v1928 = vsel %vm1920, %v1821, %v1823
    %v1929 = vsel %vm1920, %v1825, %v1827
    %v1930 = vsel %vm1920, %v1829, %v1831
    %v1931 = vsel %vm1920, %v1833, %v1835
    %v1932 = vsel %vm1920, %v1837, %v1839
    %v1933 = vsel %vm1920, %v1841, %v1843
    %v1934 = vsel %vm1920, %v1845, %v1847
    %v1935 = vsel %vm1920, %v1849, %v1851
    %v1936 = vsel %vm1920, %v1853, %v1855
    %v1937 = vsel %vm1920, %v1857, %v1859
    %v1938 = vsel %vm1920, %v1861, %v1863
    %v1939 = vsel %vm1920, %v1865, %v1867
    %v1940 = vsel %vm1920, %v1869, %v1871
    %v1941 = vsel %vm1920, %v1873, %v1875
    %v1942 = vsel %vm1920, %v1877, %v1879
    %v1943 = vsel %vm1920, %v1881, %v1883
    %v1944 = vsel %vm1920, %v1885, %v1887
    %v1945 = vsel %vm1920, %v1889, %v1891
    %v1946 = vsel %vm1920, %v1893, %v1895
    %v1947 = vsel %vm1920, %v1897, %v1899
    %v1948 = vsel %vm1920, %v1901, %v1903
    %v1949 = vsel %vm1920, %v1905, %v1907
    %v1950 = vsel %vm1920, %v1909, %v1911
    %v1951 = vsel %vm1920, %v1913, %v1915
    %v1952 = vsel %vm1920, %v1917, %v1919
    %v2017 = vmax.f32 %v1664, %v1921
    %v2018 = vmax.f32 %v1665, %v1795
    %v2019 = vmax.f32 %v1666, %v1922
    %v2020 = vmax.f32 %v1667, %v1799
    %v2021 = vmax.f32 %v1668, %v1923
    %v2022 = vmax.f32 %v1669, %v1803
    %v2023 = vmax.f32 %v1670, %v1924
    %v2024 = vmax.f32 %v1671, %v1807
    %v2025 = vmax.f32 %v1672, %v1925
    %v2026 = vmax.f32 %v1673, %v1811
    %v2027 = vmax.f32 %v1674, %v1926
    %v2028 = vmax.f32 %v1675, %v1815
    %v2029 = vmax.f32 %v1676, %v1927
    %v2030 = vmax.f32 %v1677, %v1819
    %v2031 = vmax.f32 %v1678, %v1928
    %v2032 = vmax.f32 %v1679, %v1823
    %v2033 = vmax.f32 %v1680, %v1929
    %v2034 = vmax.f32 %v1681, %v1827
    %v2035 = vmax.f32 %v1682, %v1930
    %v2036 = vmax.f32 %v1683, %v1831
    %v2037 = vmax.f32 %v1684, %v1931
    %v2038 = vmax.f32 %v1685, %v1835
    %v2039 = vmax.f32 %v1686, %v1932
    %v2040 = vmax.f32 %v1687, %v1839
    %v2041 = vmax.f32 %v1688, %v1933
    %v2042 = vmax.f32 %v1689, %v1843
    %v2043 = vmax.f32 %v1690, %v1934
    %v2044 = vmax.f32 %v1691, %v1847
    %v2045 = vmax.f32 %v1692, %v1935
    %v2046 = vmax.f32 %v1693, %v1851
    %v2047 = vmax.f32 %v1694, %v1936
    %v2048 = vmax.f32 %v1695, %v1855
    %v2049 = vmax.f32 %v1696, %v1937
    %v2050 = vmax.f32 %v1697, %v1859
    %v2051 = vmax.f32 %v1698, %v1938
    %v2052 = vmax.f32 %v1699, %v1863
    %v2053 = vmax.f32 %v1700, %v1939
    %v2054 = vmax.f32 %v1701, %v1867
    %v2055 = vmax.f32 %v1702, %v1940
    %v2056 = vmax.f32 %v1703, %v1871
    %v2057 = vmax.f32 %v1704, %v1941
    %v2058 = vmax.f32 %v1705, %v1875
    %v2059 = vmax.f32 %v1706, %v1942
    %v2060 = vmax.f32 %v1707, %v1879
    %v2061 = vmax.f32 %v1708, %v1943
    %v2062 = vmax.f32 %v1709, %v1883
    %v2063 = vmax.f32 %v1710, %v1944
    %v2064 = vmax.f32 %v1711, %v1887
    %v2065 = vmax.f32 %v1712, %v1945
    %v2066 = vmax.f32 %v1713, %v1891
    %v2067 = vmax.f32 %v1714, %v1946
    %v2068 = vmax.f32 %v1715, %v1895
    %v2069 = vmax.f32 %v1716, %v1947
    %v2070 = vmax.f32 %v1717, %v1899
    %v2071 = vmax.f32 %v1718, %v1948
    %v2072 = vmax.f32 %v1719, %v1903
    %v2073 = vmax.f32 %v1720, %v1949
    %v2074 = vmax.f32 %v1721, %v1907
    %v2075 = vmax.f32 %v1722, %v1950
    %v2076 = vmax.f32 %v1723, %v1911
    %v2077 = vmax.f32 %v1724, %v1951
    %v2078 = vmax.f32 %v1725, %v1915
    %v2079 = vmax.f32 %v1726, %v1952
    %v2080 = vmax.f32 %v1727, %v1919
    %v2081 = vld [vmem:[%s5] sm:$0xff]
    %v2082 = vld [vmem:[%s5 + $0x8] sm:$0xff]
    %v2083 = vld [vmem:[%s5 + $0x10] sm:$0xff]
    %v2084 = vld [vmem:[%s5 + $0x18] sm:$0xff]
    %v2085 = vld [vmem:[%s5 + $0x20] sm:$0xff]
    %v2086 = vld [vmem:[%s5 + $0x28] sm:$0xff]
    %v2087 = vld [vmem:[%s5 + $0x30] sm:$0xff]
    %v2088 = vld [vmem:[%s5 + $0x38] sm:$0xff]
    %v2089 = vld [vmem:[%s5 + $0x40] sm:$0xff]
    %v2090 = vld [vmem:[%s5 + $0x48] sm:$0xff]
    %v2091 = vld [vmem:[%s5 + $0x50] sm:$0xff]
    %v2092 = vld [vmem:[%s5 + $0x58] sm:$0xff]
    %v2093 = vld [vmem:[%s5 + $0x60] sm:$0xff]
    %v2094 = vld [vmem:[%s5 + $0x68] sm:$0xff]
    %v2095 = vld [vmem:[%s5 + $0x70] sm:$0xff]
    %v2096 = vld [vmem:[%s5 + $0x78] sm:$0xff]
    %v2097 = vld [vmem:[%s5 + $0x80] sm:$0xff]
    %v2098 = vld [vmem:[%s5 + $0x88] sm:$0xff]
    %v2099 = vld [vmem:[%s5 + $0x90] sm:$0xff]
    %v2100 = vld [vmem:[%s5 + $0x98] sm:$0xff]
    %v2101 = vld [vmem:[%s5 + $0xa0] sm:$0xff]
    %v2102 = vld [vmem:[%s5 + $0xa8] sm:$0xff]
    %v2103 = vld [vmem:[%s5 + $0xb0] sm:$0xff]
    %v2104 = vld [vmem:[%s5 + $0xb8] sm:$0xff]
    %v2105 = vld [vmem:[%s5 + $0xc0] sm:$0xff]
    %v2106 = vld [vmem:[%s5 + $0xc8] sm:$0xff]
    %v2107 = vld [vmem:[%s5 + $0xd0] sm:$0xff]
    %v2108 = vld [vmem:[%s5 + $0xd8] sm:$0xff]
    %v2109 = vld [vmem:[%s5 + $0xe0] sm:$0xff]
    %v2110 = vld [vmem:[%s5 + $0xe8] sm:$0xff]
    %v2111 = vld [vmem:[%s5 + $0xf0] sm:$0x7f]
    %v2112 = vld [vmem:[%s5 + $0xf8] sm:$0x7f]
    %vm2113 = vcmask 1022976
    %v2115 = vsel %vm2113, %v2082, 0
    %v2118 = vsel %vm2113, %v2084, 0
    %v2121 = vsel %vm2113, %v2086, 0
    %v2124 = vsel %vm2113, %v2088, 0
    %v2127 = vsel %vm2113, %v2090, 0
    %v2130 = vsel %vm2113, %v2092, 0
    %v2133 = vsel %vm2113, %v2094, 0
    %v2136 = vsel %vm2113, %v2096, 0
    %v2139 = vsel %vm2113, %v2098, 0
    %v2142 = vsel %vm2113, %v2100, 0
    %v2145 = vsel %vm2113, %v2102, 0
    %v2148 = vsel %vm2113, %v2104, 0
    %v2151 = vsel %vm2113, %v2106, 0
    %v2154 = vsel %vm2113, %v2108, 0
    %v2157 = vsel %vm2113, %v2110, 0
    %v2160 = vsel %vm2113, %v2112, 0
    %vm2162 = vcmask 1044480
    %v2164 = vsel %vm2162, %v2079, 0
    %v2167 = vsel %vm2162, %v2080, 0
    %2169 = vmatprep.subr.mxu0 %v2048
    %2170 = vmatpush1.msra.mxu0 %v2047
    %2171 = vmatprep.subr.mxu0 %v2046
    %2172 = vmatpush1.msra.mxu0 %v2045
    %2173 = vmatprep.subr.mxu0 %v2044
    %2174 = vmatpush1.msra.mxu0 %v2043
    %2175 = vmatprep.subr.mxu0 %v2042
    %2176 = vmatpush1.msra.mxu0 %v2041
    %2177 = vmatprep.subr.mxu0 %v2040
    %2178 = vmatpush1.msra.mxu0 %v2039
    %2179 = vmatprep.subr.mxu0 %v2038
    %2180 = vmatpush1.msra.mxu0 %v2037
    %2181 = vmatprep.subr.mxu0 %v2036
    %2182 = vmatpush1.msra.mxu0 %v2035
    %2183 = vmatprep.subr.mxu0 %v2034
    %2184 = vmatpush1.msra.mxu0 %v2033
    %2185 = vmatprep.subr.mxu0 %v2032
    %2186 = vmatpush1.msra.mxu0 %v2031
    %2187 = vmatprep.subr.mxu0 %v2030
    %2188 = vmatpush1.msra.mxu0 %v2029
    %2189 = vmatprep.subr.mxu0 %v2028
    %2190 = vmatpush1.msra.mxu0 %v2027
    %2191 = vmatprep.subr.mxu0 %v2026
    %2192 = vmatpush1.msra.mxu0 %v2025
    %2193 = vmatprep.subr.mxu0 %v2024
    %2194 = vmatpush1.msra.mxu0 %v2023
    %2195 = vmatprep.subr.mxu0 %v2022
    %2196 = vmatpush1.msra.mxu0 %v2021
    %2197 = vmatprep.subr.mxu0 %v2020
    %2198 = vmatpush1.msra.mxu0 %v2019
    %2199 = vmatprep.subr.mxu0 %v2018
    %2200 = vmatpush1.msra.mxu0 %v2017
    %2201 = vmatprep.subr.mxu0 %v2167
    %2202 = vmatpush2.msra.mxu0 %v2164
    %2203 = vmatprep.subr.mxu0 %v2078
    %2204 = vmatpush2.msra.mxu0 %v2077
    %2205 = vmatprep.subr.mxu0 %v2076
    %2206 = vmatpush2.msra.mxu0 %v2075
    %2207 = vmatprep.subr.mxu0 %v2074
    %2208 = vmatpush2.msra.mxu0 %v2073
    %2209 = vmatprep.subr.mxu0 %v2072
    %2210 = vmatpush2.msra.mxu0 %v2071
    %2211 = vmatprep.subr.mxu0 %v2070
    %2212 = vmatpush2.msra.mxu0 %v2069
    %2213 = vmatprep.subr.mxu0 %v2068
    %2214 = vmatpush2.msra.mxu0 %v2067
    %2215 = vmatprep.subr.mxu0 %v2066
    %2216 = vmatpush2.msra.mxu0 %v2065
    %2217 = vmatprep.subr.mxu0 %v2064
    %2218 = vmatpush2.msra.mxu0 %v2063
    %2219 = vmatprep.subr.mxu0 %v2062
    %2220 = vmatpush2.msra.mxu0 %v2061
    %2221 = vmatprep.subr.mxu0 %v2060
    %2222 = vmatpush2.msra.mxu0 %v2059
    %2223 = vmatprep.subr.mxu0 %v2058
    %2224 = vmatpush2.msra.mxu0 %v2057
    %2225 = vmatprep.subr.mxu0 %v2056
    %2226 = vmatpush2.msra.mxu0 %v2055
    %2227 = vmatprep.subr.mxu0 %v2054
    %2228 = vmatpush2.msra.mxu0 %v2053
    %2229 = vmatprep.subr.mxu0 %v2052
    %2230 = vmatpush2.msra.mxu0 %v2051
    %2231 = vmatprep.subr.mxu0 %v2050
    %2232 = vmatpush2.msra.mxu0 %v2049
    %2233 = vmatprep.mubr.f32.mxu0 %v2115
    %2234 = vmatmul.mubr.f32.gmra.mxu0 %v2081
    %v2235 = vpop.f32.mrf.mxu0
    %v2236 = vadd.f32 0.0, %v2235
    %v2237 = vpop.f32.mrf.mxu0
    %v2238 = vadd.f32 0.0, %v2237
    %2239 = vmatprep.mubr.f32.mxu0 %v2118
    %2240 = vmatmul.mubr.f32.gmra.mxu0 %v2083
    %v2241 = vpop.f32.mrf.mxu0
    %v2242 = vadd.f32 0.0, %v2241
    %v2243 = vpop.f32.mrf.mxu0
    %v2244 = vadd.f32 0.0, %v2243
    %2245 = vmatprep.mubr.f32.mxu0 %v2121
    %2246 = vmatmul.mubr.f32.gmra.mxu0 %v2085
    %v2247 = vpop.f32.mrf.mxu0
    %v2248 = vadd.f32 0.0, %v2247
    %v2249 = vpop.f32.mrf.mxu0
    %v2250 = vadd.f32 0.0, %v2249
    %2251 = vmatprep.mubr.f32.mxu0 %v2124
    %2252 = vmatmul.mubr.f32.gmra.mxu0 %v2087
    %v2253 = vpop.f32.mrf.mxu0
    %v2254 = vadd.f32 0.0, %v2253
    %v2255 = vpop.f32.mrf.mxu0
    %v2256 = vadd.f32 0.0, %v2255
    %2257 = vmatprep.mubr.f32.mxu0 %v2127
    %2258 = vmatmul.mubr.f32.gmra.mxu0 %v2089
    %v2259 = vpop.f32.mrf.mxu0
    %v2260 = vadd.f32 0.0, %v2259
    %v2261 = vpop.f32.mrf.mxu0
    %v2262 = vadd.f32 0.0, %v2261
    %2263 = vmatprep.mubr.f32.mxu0 %v2130
    %2264 = vmatmul.mubr.f32.gmra.mxu0 %v2091
    %v2265 = vpop.f32.mrf.mxu0
    %v2266 = vadd.f32 0.0, %v2265
    %v2267 = vpop.f32.mrf.mxu0
    %v2268 = vadd.f32 0.0, %v2267
    %2269 = vmatprep.mubr.f32.mxu0 %v2133
    %2270 = vmatmul.mubr.f32.gmra.mxu0 %v2093
    %v2271 = vpop.f32.mrf.mxu0
    %v2272 = vadd.f32 0.0, %v2271
    %v2273 = vpop.f32.mrf.mxu0
    %v2274 = vadd.f32 0.0, %v2273
    %2275 = vmatprep.mubr.f32.mxu0 %v2136
    %2276 = vmatmul.mubr.f32.gmra.mxu0 %v2095
    %v2277 = vpop.f32.mrf.mxu0
    %v2278 = vadd.f32 0.0, %v2277
    %v2279 = vpop.f32.mrf.mxu0
    %v2280 = vadd.f32 0.0, %v2279
    %2281 = vmatprep.mubr.f32.mxu0 %v2139
    %2282 = vmatmul.mubr.f32.gmra.mxu0 %v2097
    %v2283 = vpop.f32.mrf.mxu0
    %v2284 = vadd.f32 0.0, %v2283
    %v2285 = vpop.f32.mrf.mxu0
    %v2286 = vadd.f32 0.0, %v2285
    %2287 = vmatprep.mubr.f32.mxu0 %v2142
    %2288 = vmatmul.mubr.f32.gmra.mxu0 %v2099
    %v2289 = vpop.f32.mrf.mxu0
    %v2290 = vadd.f32 0.0, %v2289
    %v2291 = vpop.f32.mrf.mxu0
    %v2292 = vadd.f32 0.0, %v2291
    %2293 = vmatprep.mubr.f32.mxu0 %v2145
    %2294 = vmatmul.mubr.f32.gmra.mxu0 %v2101
    %v2295 = vpop.f32.mrf.mxu0
    %v2296 = vadd.f32 0.0, %v2295
    %v2297 = vpop.f32.mrf.mxu0
    %v2298 = vadd.f32 0.0, %v2297
    %2299 = vmatprep.mubr.f32.mxu0 %v2148
    %2300 = vmatmul.mubr.f32.gmra.mxu0 %v2103
    %v2301 = vpop.f32.mrf.mxu0
    %v2302 = vadd.f32 0.0, %v2301
    %v2303 = vpop.f32.mrf.mxu0
    %v2304 = vadd.f32 0.0, %v2303
    %2305 = vmatprep.mubr.f32.mxu0 %v2151
    %2306 = vmatmul.mubr.f32.gmra.mxu0 %v2105
    %v2307 = vpop.f32.mrf.mxu0
    %v2308 = vadd.f32 0.0, %v2307
    %v2309 = vpop.f32.mrf.mxu0
    %v2310 = vadd.f32 0.0, %v2309
    %2311 = vmatprep.mubr.f32.mxu0 %v2154
    %2312 = vmatmul.mubr.f32.gmra.mxu0 %v2107
    %v2313 = vpop.f32.mrf.mxu0
    %v2314 = vadd.f32 0.0, %v2313
    %v2315 = vpop.f32.mrf.mxu0
    %v2316 = vadd.f32 0.0, %v2315
    %2317 = vmatprep.mubr.f32.mxu0 %v2157
    %2318 = vmatmul.mubr.f32.gmra.mxu0 %v2109
    %v2319 = vpop.f32.mrf.mxu0
    %v2320 = vadd.f32 0.0, %v2319
    %v2321 = vpop.f32.mrf.mxu0
    %v2322 = vadd.f32 0.0, %v2321
    %2323 = vmatprep.mubr.f32.mxu0 %v2160
    %2324 = vmatmul.mubr.f32.gmra.mxu0 %v2111
    %v2325 = vpop.f32.mrf.mxu0
    %v2326 = vadd.f32 0.0, %v2325
    %v2327 = vpop.f32.mrf.mxu0
    %v2328 = vadd.f32 0.0, %v2327
    %2329 = vdwg.mxu0
    %v2330 = vld [vmem:[%s3] sm:$0xff]
    %v2331 = vld [vmem:[%s3 + $0x8] sm:$0xff]
    %v2332 = vld [vmem:[%s3 + $0x10] sm:$0xff]
    %v2333 = vld [vmem:[%s3 + $0x18] sm:$0xff]
    %v2334 = vld [vmem:[%s3 + $0x20] sm:$0xff]
    %v2335 = vld [vmem:[%s3 + $0x28] sm:$0xff]
    %v2336 = vld [vmem:[%s3 + $0x30] sm:$0xff]
    %v2337 = vld [vmem:[%s3 + $0x38] sm:$0xff]
    %v2338 = vld [vmem:[%s3 + $0x40] sm:$0xff]
    %v2339 = vld [vmem:[%s3 + $0x48] sm:$0xff]
    %v2340 = vld [vmem:[%s3 + $0x50] sm:$0xff]
    %v2341 = vld [vmem:[%s3 + $0x58] sm:$0xff]
    %v2342 = vld [vmem:[%s3 + $0x60] sm:$0xff]
    %v2343 = vld [vmem:[%s3 + $0x68] sm:$0xff]
    %v2344 = vld [vmem:[%s3 + $0x70] sm:$0xff]
    %v2345 = vld [vmem:[%s3 + $0x78] sm:$0xff]
    %v2346 = vld [vmem:[%s3 + $0x80] sm:$0xff]
    %v2347 = vld [vmem:[%s3 + $0x88] sm:$0xff]
    %v2348 = vld [vmem:[%s3 + $0x90] sm:$0xff]
    %v2349 = vld [vmem:[%s3 + $0x98] sm:$0xff]
    %v2350 = vld [vmem:[%s3 + $0xa0] sm:$0xff]
    %v2351 = vld [vmem:[%s3 + $0xa8] sm:$0xff]
    %v2352 = vld [vmem:[%s3 + $0xb0] sm:$0xff]
    %v2353 = vld [vmem:[%s3 + $0xb8] sm:$0xff]
    %v2354 = vld [vmem:[%s3 + $0xc0] sm:$0xff]
    %v2355 = vld [vmem:[%s3 + $0xc8] sm:$0xff]
    %v2356 = vld [vmem:[%s3 + $0xd0] sm:$0xff]
    %v2357 = vld [vmem:[%s3 + $0xd8] sm:$0xff]
    %v2358 = vld [vmem:[%s3 + $0xe0] sm:$0xff]
    %v2359 = vld [vmem:[%s3 + $0xe8] sm:$0xff]
    %v2360 = vld [vmem:[%s3 + $0xf0] sm:$0xff]
    %v2361 = vld [vmem:[%s3 + $0xf8] sm:$0xff]
    %v2362 = vld [vmem:[%s3 + $0x100] sm:$0xff]
    %v2363 = vld [vmem:[%s3 + $0x108] sm:$0xff]
    %v2364 = vld [vmem:[%s3 + $0x110] sm:$0xff]
    %v2365 = vld [vmem:[%s3 + $0x118] sm:$0xff]
    %v2366 = vld [vmem:[%s3 + $0x120] sm:$0x3f]
    %v2367 = vld [vmem:[%s3 + $0x128] sm:$0x3f]
    %s2368 = scalar_lea.vmem %s3, 304
    %v2369 = vld [vmem:[%s2368] sm:$0xff]
    %v2370 = vld [vmem:[%s2368 + $0x8] sm:$0xff]
    %v2371 = vld [vmem:[%s2368 + $0x10] sm:$0xff]
    %v2372 = vld [vmem:[%s2368 + $0x18] sm:$0xff]
    %v2373 = vld [vmem:[%s2368 + $0x20] sm:$0xff]
    %v2374 = vld [vmem:[%s2368 + $0x28] sm:$0xff]
    %v2375 = vld [vmem:[%s2368 + $0x30] sm:$0xff]
    %v2376 = vld [vmem:[%s2368 + $0x38] sm:$0xff]
    %v2377 = vld [vmem:[%s2368 + $0x40] sm:$0xff]
    %v2378 = vld [vmem:[%s2368 + $0x48] sm:$0xff]
    %v2379 = vld [vmem:[%s2368 + $0x50] sm:$0xff]
    %v2380 = vld [vmem:[%s2368 + $0x58] sm:$0xff]
    %v2381 = vld [vmem:[%s2368 + $0x60] sm:$0xff]
    %v2382 = vld [vmem:[%s2368 + $0x68] sm:$0xff]
    %v2383 = vld [vmem:[%s2368 + $0x70] sm:$0xff]
    %v2384 = vld [vmem:[%s2368 + $0x78] sm:$0xff]
    %v2385 = vld [vmem:[%s2368 + $0x80] sm:$0xff]
    %v2386 = vld [vmem:[%s2368 + $0x88] sm:$0xff]
    %v2387 = vld [vmem:[%s2368 + $0x90] sm:$0xff]
    %v2388 = vld [vmem:[%s2368 + $0x98] sm:$0xff]
    %v2389 = vld [vmem:[%s2368 + $0xa0] sm:$0xff]
    %v2390 = vld [vmem:[%s2368 + $0xa8] sm:$0xff]
    %v2391 = vld [vmem:[%s2368 + $0xb0] sm:$0xff]
    %v2392 = vld [vmem:[%s2368 + $0xb8] sm:$0xff]
    %v2393 = vld [vmem:[%s2368 + $0xc0] sm:$0xff]
    %v2394 = vld [vmem:[%s2368 + $0xc8] sm:$0xff]
    %v2395 = vld [vmem:[%s2368 + $0xd0] sm:$0xff]
    %v2396 = vld [vmem:[%s2368 + $0xd8] sm:$0xff]
    %v2397 = vld [vmem:[%s2368 + $0xe0] sm:$0xff]
    %v2398 = vld [vmem:[%s2368 + $0xe8] sm:$0xff]
    %v2399 = vld [vmem:[%s2368 + $0xf0] sm:$0xff]
    %v2400 = vld [vmem:[%s2368 + $0xf8] sm:$0xff]
    %v2401 = vld [vmem:[%s2368 + $0x100] sm:$0xff]
    %v2402 = vld [vmem:[%s2368 + $0x108] sm:$0xff]
    %v2403 = vld [vmem:[%s2368 + $0x110] sm:$0xff]
    %v2404 = vld [vmem:[%s2368 + $0x118] sm:$0xff]
    %v2405 = vld [vmem:[%s2368 + $0x120] sm:$0x3f]
    %v2406 = vld [vmem:[%s2368 + $0x128] sm:$0x3f]
    %v2439 = vrot.slane %v2236, 1
    %v2440 = vrot.slane %v2242, 1
    %v2441 = vsel %vm210, %v2439, %v2440
    %v2442 = vrot.slane %v2238, 1
    %v2443 = vrot.slane %v2244, 1
    %v2444 = vsel %vm210, %v2442, %v2443
    %v2445 = vrot.slane %v2248, 1
    %v2446 = vsel %vm210, %v2440, %v2445
    %v2447 = vrot.slane %v2250, 1
    %v2448 = vsel %vm210, %v2443, %v2447
    %v2449 = vrot.slane %v2254, 1
    %v2450 = vsel %vm210, %v2445, %v2449
    %v2451 = vrot.slane %v2256, 1
    %v2452 = vsel %vm210, %v2447, %v2451
    %v2453 = vrot.slane %v2260, 1
    %v2454 = vsel %vm210, %v2449, %v2453
    %v2455 = vrot.slane %v2262, 1
    %v2456 = vsel %vm210, %v2451, %v2455
    %v2457 = vrot.slane %v2266, 1
    %v2458 = vsel %vm210, %v2453, %v2457
    %v2459 = vrot.slane %v2268, 1
    %v2460 = vsel %vm210, %v2455, %v2459
    %v2461 = vrot.slane %v2272, 1
    %v2462 = vsel %vm210, %v2457, %v2461
    %v2463 = vrot.slane %v2274, 1
    %v2464 = vsel %vm210, %v2459, %v2463
    %v2465 = vrot.slane %v2278, 1
    %v2466 = vsel %vm210, %v2461, %v2465
    %v2467 = vrot.slane %v2280, 1
    %v2468 = vsel %vm210, %v2463, %v2467
    %v2469 = vrot.slane %v2284, 1
    %v2470 = vsel %vm210, %v2465, %v2469
    %v2471 = vrot.slane %v2286, 1
    %v2472 = vsel %vm210, %v2467, %v2471
    %v2473 = vrot.slane %v2290, 1
    %v2474 = vsel %vm210, %v2469, %v2473
    %v2475 = vrot.slane %v2292, 1
    %v2476 = vsel %vm210, %v2471, %v2475
    %v2477 = vrot.slane %v2296, 1
    %v2478 = vsel %vm210, %v2473, %v2477
    %v2479 = vrot.slane %v2298, 1
    %v2480 = vsel %vm210, %v2475, %v2479
    %v2481 = vrot.slane %v2302, 1
    %v2482 = vsel %vm210, %v2477, %v2481
    %v2483 = vrot.slane %v2304, 1
    %v2484 = vsel %vm210, %v2479, %v2483
    %v2485 = vrot.slane %v2308, 1
    %v2486 = vsel %vm210, %v2481, %v2485
    %v2487 = vrot.slane %v2310, 1
    %v2488 = vsel %vm210, %v2483, %v2487
    %v2489 = vrot.slane %v2314, 1
    %v2490 = vsel %vm210, %v2485, %v2489
    %v2491 = vrot.slane %v2316, 1
    %v2492 = vsel %vm210, %v2487, %v2491
    %v2493 = vrot.slane %v2320, 1
    %v2494 = vsel %vm210, %v2489, %v2493
    %v2495 = vrot.slane %v2322, 1
    %v2496 = vsel %vm210, %v2491, %v2495
    %v2497 = vrot.slane %v2326, 1
    %v2498 = vsel %vm210, %v2493, %v2497
    %v2499 = vrot.slane %v2328, 1
    %v2500 = vsel %vm210, %v2495, %v2499
    %vm2517 = vcmask 179200
    %v2518 = vsel %vm2517, %v2444, 0
    %v2520 = vsel %vm2517, %v2448, 0
    %v2522 = vsel %vm2517, %v2452, 0
    %v2524 = vsel %vm2517, %v2456, 0
    %v2526 = vsel %vm2517, %v2460, 0
    %v2528 = vsel %vm2517, %v2464, 0
    %v2530 = vsel %vm2517, %v2468, 0
    %v2532 = vsel %vm2517, %v2472, 0
    %v2534 = vsel %vm2517, %v2476, 0
    %v2536 = vsel %vm2517, %v2480, 0
    %v2538 = vsel %vm2517, %v2484, 0
    %v2540 = vsel %vm2517, %v2488, 0
    %v2542 = vsel %vm2517, %v2492, 0
    %v2544 = vsel %vm2517, %v2496, 0
    %v2546 = vsel %vm2517, %v2500, 0
    %v2548 = vsel %vm2517, %v2499, 0
    %v2551 = vsel %vm853, %v2405, 0
    %v2554 = vsel %vm853, %v2406, 0
    %2556 = vmatprep.subr.mxu0 %v2400
    %2557 = vmatpush1.msra.mxu0 %v2399
    %2558 = vmatprep.subr.mxu0 %v2398
    %2559 = vmatpush1.msra.mxu0 %v2397
    %2560 = vmatprep.subr.mxu0 %v2396
    %2561 = vmatpush1.msra.mxu0 %v2395
    %2562 = vmatprep.subr.mxu0 %v2394
    %2563 = vmatpush1.msra.mxu0 %v2393
    %2564 = vmatprep.subr.mxu0 %v2392
    %2565 = vmatpush1.msra.mxu0 %v2391
    %2566 = vmatprep.subr.mxu0 %v2390
    %2567 = vmatpush1.msra.mxu0 %v2389
    %2568 = vmatprep.subr.mxu0 %v2388
    %2569 = vmatpush1.msra.mxu0 %v2387
    %2570 = vmatprep.subr.mxu0 %v2386
    %2571 = vmatpush1.msra.mxu0 %v2385
    %2572 = vmatprep.subr.mxu0 %v2384
    %2573 = vmatpush1.msra.mxu0 %v2383
    %2574 = vmatprep.subr.mxu0 %v2382
    %2575 = vmatpush1.msra.mxu0 %v2381
    %2576 = vmatprep.subr.mxu0 %v2380
    %2577 = vmatpush1.msra.mxu0 %v2379
    %2578 = vmatprep.subr.mxu0 %v2378
    %2579 = vmatpush1.msra.mxu0 %v2377
    %2580 = vmatprep.subr.mxu0 %v2376
    %2581 = vmatpush1.msra.mxu0 %v2375
    %2582 = vmatprep.subr.mxu0 %v2374
    %2583 = vmatpush1.msra.mxu0 %v2373
    %2584 = vmatprep.subr.mxu0 %v2372
    %2585 = vmatpush1.msra.mxu0 %v2371
    %2586 = vmatprep.subr.mxu0 %v2370
    %2587 = vmatpush1.msra.mxu0 %v2369
    %2588 = vmatprep.subr.mxu0 0.0
    %2589 = vmatpush2.msra.mxu0 0.0
    %2590 = vmatprep.subr.mxu0 0.0
    %2591 = vmatpush2.msra.mxu0 0.0
    %2592 = vmatprep.subr.mxu0 0.0
    %2593 = vmatpush2.msra.mxu0 0.0
    %2594 = vmatprep.subr.mxu0 0.0
    %2595 = vmatpush2.msra.mxu0 0.0
    %2596 = vmatprep.subr.mxu0 0.0
    %2597 = vmatpush2.msra.mxu0 0.0
    %2598 = vmatprep.subr.mxu0 0.0
    %2599 = vmatpush2.msra.mxu0 0.0
    %2600 = vmatprep.subr.mxu0 0.0
    %2601 = vmatpush2.msra.mxu0 0.0
    %2602 = vmatprep.subr.mxu0 0.0
    %2603 = vmatpush2.msra.mxu0 0.0
    %2604 = vmatprep.subr.mxu0 0.0
    %2605 = vmatpush2.msra.mxu0 0.0
    %2606 = vmatprep.subr.mxu0 0.0
    %2607 = vmatpush2.msra.mxu0 0.0
    %2608 = vmatprep.subr.mxu0 0.0
    %2609 = vmatpush2.msra.mxu0 0.0
    %2610 = vmatprep.subr.mxu0 0.0
    %2611 = vmatpush2.msra.mxu0 0.0
    %2612 = vmatprep.subr.mxu0 0.0
    %2613 = vmatpush2.msra.mxu0 0.0
    %2614 = vmatprep.subr.mxu0 %v2554
    %2615 = vmatpush2.msra.mxu0 %v2551
    %2616 = vmatprep.subr.mxu0 %v2404
    %2617 = vmatpush2.msra.mxu0 %v2403
    %2618 = vmatprep.subr.mxu0 %v2402
    %2619 = vmatpush2.msra.mxu0 %v2401
    %2620 = vmatprep.mubr.f32.mxu0 %v2518
    %2621 = vmatmul.mubr.f32.gmra.mxu0 %v2441
    %v2622 = vpop.f32.mrf.mxu0
    %v2623 = vadd.f32 0.0, %v2622
    %v2624 = vpop.f32.mrf.mxu0
    %v2625 = vadd.f32 0.0, %v2624
    %2626 = vmatprep.mubr.f32.mxu0 %v2520
    %2627 = vmatmul.mubr.f32.gmra.mxu0 %v2446
    %v2628 = vpop.f32.mrf.mxu0
    %v2629 = vadd.f32 0.0, %v2628
    %v2630 = vpop.f32.mrf.mxu0
    %v2631 = vadd.f32 0.0, %v2630
    %2632 = vmatprep.mubr.f32.mxu0 %v2522
    %2633 = vmatmul.mubr.f32.gmra.mxu0 %v2450
    %v2634 = vpop.f32.mrf.mxu0
    %v2635 = vadd.f32 0.0, %v2634
    %v2636 = vpop.f32.mrf.mxu0
    %v2637 = vadd.f32 0.0, %v2636
    %2638 = vmatprep.mubr.f32.mxu0 %v2524
    %2639 = vmatmul.mubr.f32.gmra.mxu0 %v2454
    %v2640 = vpop.f32.mrf.mxu0
    %v2641 = vadd.f32 0.0, %v2640
    %v2642 = vpop.f32.mrf.mxu0
    %v2643 = vadd.f32 0.0, %v2642
    %2644 = vmatprep.mubr.f32.mxu0 %v2526
    %2645 = vmatmul.mubr.f32.gmra.mxu0 %v2458
    %v2646 = vpop.f32.mrf.mxu0
    %v2647 = vadd.f32 0.0, %v2646
    %v2648 = vpop.f32.mrf.mxu0
    %v2649 = vadd.f32 0.0, %v2648
    %2650 = vmatprep.mubr.f32.mxu0 %v2528
    %2651 = vmatmul.mubr.f32.gmra.mxu0 %v2462
    %v2652 = vpop.f32.mrf.mxu0
    %v2653 = vadd.f32 0.0, %v2652
    %v2654 = vpop.f32.mrf.mxu0
    %v2655 = vadd.f32 0.0, %v2654
    %2656 = vmatprep.mubr.f32.mxu0 %v2530
    %2657 = vmatmul.mubr.f32.gmra.mxu0 %v2466
    %v2658 = vpop.f32.mrf.mxu0
    %v2659 = vadd.f32 0.0, %v2658
    %v2660 = vpop.f32.mrf.mxu0
    %v2661 = vadd.f32 0.0, %v2660
    %2662 = vmatprep.mubr.f32.mxu0 %v2532
    %2663 = vmatmul.mubr.f32.gmra.mxu0 %v2470
    %v2664 = vpop.f32.mrf.mxu0
    %v2665 = vadd.f32 0.0, %v2664
    %v2666 = vpop.f32.mrf.mxu0
    %v2667 = vadd.f32 0.0, %v2666
    %2668 = vmatprep.mubr.f32.mxu0 %v2534
    %2669 = vmatmul.mubr.f32.gmra.mxu0 %v2474
    %v2670 = vpop.f32.mrf.mxu0
    %v2671 = vadd.f32 0.0, %v2670
    %v2672 = vpop.f32.mrf.mxu0
    %v2673 = vadd.f32 0.0, %v2672
    %2674 = vmatprep.mubr.f32.mxu0 %v2536
    %2675 = vmatmul.mubr.f32.gmra.mxu0 %v2478
    %v2676 = vpop.f32.mrf.mxu0
    %v2677 = vadd.f32 0.0, %v2676
    %v2678 = vpop.f32.mrf.mxu0
    %v2679 = vadd.f32 0.0, %v2678
    %2680 = vmatprep.mubr.f32.mxu0 %v2538
    %2681 = vmatmul.mubr.f32.gmra.mxu0 %v2482
    %v2682 = vpop.f32.mrf.mxu0
    %v2683 = vadd.f32 0.0, %v2682
    %v2684 = vpop.f32.mrf.mxu0
    %v2685 = vadd.f32 0.0, %v2684
    %2686 = vmatprep.mubr.f32.mxu0 %v2540
    %2687 = vmatmul.mubr.f32.gmra.mxu0 %v2486
    %v2688 = vpop.f32.mrf.mxu0
    %v2689 = vadd.f32 0.0, %v2688
    %v2690 = vpop.f32.mrf.mxu0
    %v2691 = vadd.f32 0.0, %v2690
    %2692 = vmatprep.mubr.f32.mxu0 %v2542
    %2693 = vmatmul.mubr.f32.gmra.mxu0 %v2490
    %v2694 = vpop.f32.mrf.mxu0
    %v2695 = vadd.f32 0.0, %v2694
    %v2696 = vpop.f32.mrf.mxu0
    %v2697 = vadd.f32 0.0, %v2696
    %2698 = vmatprep.mubr.f32.mxu0 %v2544
    %2699 = vmatmul.mubr.f32.gmra.mxu0 %v2494
    %v2700 = vpop.f32.mrf.mxu0
    %v2701 = vadd.f32 0.0, %v2700
    %v2702 = vpop.f32.mrf.mxu0
    %v2703 = vadd.f32 0.0, %v2702
    %2704 = vmatprep.mubr.f32.mxu0 %v2546
    %2705 = vmatmul.mubr.f32.gmra.mxu0 %v2498
    %v2706 = vpop.f32.mrf.mxu0
    %v2707 = vadd.f32 0.0, %v2706
    %v2708 = vpop.f32.mrf.mxu0
    %v2709 = vadd.f32 0.0, %v2708
    %2710 = vmatprep.mubr.f32.mxu0 %v2548
    %2711 = vmatmul.mubr.f32.gmra.mxu0 %v2497
    %v2712 = vpop.f32.mrf.mxu0
    %v2713 = vadd.f32 0.0, %v2712
    %v2714 = vpop.f32.mrf.mxu0
    %v2715 = vadd.f32 0.0, %v2714
    %2716 = vdwg.mxu0
    %v2717 = vsel %vm2517, %v2238, 0
    %v2719 = vsel %vm2517, %v2244, 0
    %v2721 = vsel %vm2517, %v2250, 0
    %v2723 = vsel %vm2517, %v2256, 0
    %v2725 = vsel %vm2517, %v2262, 0
    %v2727 = vsel %vm2517, %v2268, 0
    %v2729 = vsel %vm2517, %v2274, 0
    %v2731 = vsel %vm2517, %v2280, 0
    %v2733 = vsel %vm2517, %v2286, 0
    %v2735 = vsel %vm2517, %v2292, 0
    %v2737 = vsel %vm2517, %v2298, 0
    %v2739 = vsel %vm2517, %v2304, 0
    %v2741 = vsel %vm2517, %v2310, 0
    %v2743 = vsel %vm2517, %v2316, 0
    %v2745 = vsel %vm2517, %v2322, 0
    %v2747 = vsel %vm2517, %v2328, 0
    %v2750 = vsel %vm853, %v2366, 0
    %v2753 = vsel %vm853, %v2367, 0
    %2755 = vmatprep.subr.mxu0 %v2361
    %2756 = vmatpush1.msra.mxu0 %v2360
    %2757 = vmatprep.subr.mxu0 %v2359
    %2758 = vmatpush1.msra.mxu0 %v2358
    %2759 = vmatprep.subr.mxu0 %v2357
    %2760 = vmatpush1.msra.mxu0 %v2356
    %2761 = vmatprep.subr.mxu0 %v2355
    %2762 = vmatpush1.msra.mxu0 %v2354
    %2763 = vmatprep.subr.mxu0 %v2353
    %2764 = vmatpush1.msra.mxu0 %v2352
    %2765 = vmatprep.subr.mxu0 %v2351
    %2766 = vmatpush1.msra.mxu0 %v2350
    %2767 = vmatprep.subr.mxu0 %v2349
    %2768 = vmatpush1.msra.mxu0 %v2348
    %2769 = vmatprep.subr.mxu0 %v2347
    %2770 = vmatpush1.msra.mxu0 %v2346
    %2771 = vmatprep.subr.mxu0 %v2345
    %2772 = vmatpush1.msra.mxu0 %v2344
    %2773 = vmatprep.subr.mxu0 %v2343
    %2774 = vmatpush1.msra.mxu0 %v2342
    %2775 = vmatprep.subr.mxu0 %v2341
    %2776 = vmatpush1.msra.mxu0 %v2340
    %2777 = vmatprep.subr.mxu0 %v2339
    %2778 = vmatpush1.msra.mxu0 %v2338
    %2779 = vmatprep.subr.mxu0 %v2337
    %2780 = vmatpush1.msra.mxu0 %v2336
    %2781 = vmatprep.subr.mxu0 %v2335
    %2782 = vmatpush1.msra.mxu0 %v2334
    %2783 = vmatprep.subr.mxu0 %v2333
    %2784 = vmatpush1.msra.mxu0 %v2332
    %2785 = vmatprep.subr.mxu0 %v2331
    %2786 = vmatpush1.msra.mxu0 %v2330
    %2787 = vmatprep.subr.mxu0 0.0
    %2788 = vmatpush2.msra.mxu0 0.0
    %2789 = vmatprep.subr.mxu0 0.0
    %2790 = vmatpush2.msra.mxu0 0.0
    %2791 = vmatprep.subr.mxu0 0.0
    %2792 = vmatpush2.msra.mxu0 0.0
    %2793 = vmatprep.subr.mxu0 0.0
    %2794 = vmatpush2.msra.mxu0 0.0
    %2795 = vmatprep.subr.mxu0 0.0
    %2796 = vmatpush2.msra.mxu0 0.0
    %2797 = vmatprep.subr.mxu0 0.0
    %2798 = vmatpush2.msra.mxu0 0.0
    %2799 = vmatprep.subr.mxu0 0.0
    %2800 = vmatpush2.msra.mxu0 0.0
    %2801 = vmatprep.subr.mxu0 0.0
    %2802 = vmatpush2.msra.mxu0 0.0
    %2803 = vmatprep.subr.mxu0 0.0
    %2804 = vmatpush2.msra.mxu0 0.0
    %2805 = vmatprep.subr.mxu0 0.0
    %2806 = vmatpush2.msra.mxu0 0.0
    %2807 = vmatprep.subr.mxu0 0.0
    %2808 = vmatpush2.msra.mxu0 0.0
    %2809 = vmatprep.subr.mxu0 0.0
    %2810 = vmatpush2.msra.mxu0 0.0
    %2811 = vmatprep.subr.mxu0 0.0
    %2812 = vmatpush2.msra.mxu0 0.0
    %2813 = vmatprep.subr.mxu0 %v2753
    %2814 = vmatpush2.msra.mxu0 %v2750
    %2815 = vmatprep.subr.mxu0 %v2365
    %2816 = vmatpush2.msra.mxu0 %v2364
    %2817 = vmatprep.subr.mxu0 %v2363
    %2818 = vmatpush2.msra.mxu0 %v2362
    %2819 = vmatprep.mubr.f32.mxu0 %v2717
    %2820 = vmatmul.mubr.f32.gmra.mxu0 %v2236
    %v2821 = vpop.f32.mrf.mxu0
    %v2822 = vadd.f32 %v2623, %v2821
    %v2823 = vpop.f32.mrf.mxu0
    %v2824 = vadd.f32 %v2625, %v2823
    %2825 = vmatprep.mubr.f32.mxu0 %v2719
    %2826 = vmatmul.mubr.f32.gmra.mxu0 %v2242
    %v2827 = vpop.f32.mrf.mxu0
    %v2828 = vadd.f32 %v2629, %v2827
    %v2829 = vpop.f32.mrf.mxu0
    %v2830 = vadd.f32 %v2631, %v2829
    %2831 = vmatprep.mubr.f32.mxu0 %v2721
    %2832 = vmatmul.mubr.f32.gmra.mxu0 %v2248
    %v2833 = vpop.f32.mrf.mxu0
    %v2834 = vadd.f32 %v2635, %v2833
    %v2835 = vpop.f32.mrf.mxu0
    %v2836 = vadd.f32 %v2637, %v2835
    %2837 = vmatprep.mubr.f32.mxu0 %v2723
    %2838 = vmatmul.mubr.f32.gmra.mxu0 %v2254
    %v2839 = vpop.f32.mrf.mxu0
    %v2840 = vadd.f32 %v2641, %v2839
    %v2841 = vpop.f32.mrf.mxu0
    %v2842 = vadd.f32 %v2643, %v2841
    %2843 = vmatprep.mubr.f32.mxu0 %v2725
    %2844 = vmatmul.mubr.f32.gmra.mxu0 %v2260
    %v2845 = vpop.f32.mrf.mxu0
    %v2846 = vadd.f32 %v2647, %v2845
    %v2847 = vpop.f32.mrf.mxu0
    %v2848 = vadd.f32 %v2649, %v2847
    %2849 = vmatprep.mubr.f32.mxu0 %v2727
    %2850 = vmatmul.mubr.f32.gmra.mxu0 %v2266
    %v2851 = vpop.f32.mrf.mxu0
    %v2852 = vadd.f32 %v2653, %v2851
    %v2853 = vpop.f32.mrf.mxu0
    %v2854 = vadd.f32 %v2655, %v2853
    %2855 = vmatprep.mubr.f32.mxu0 %v2729
    %2856 = vmatmul.mubr.f32.gmra.mxu0 %v2272
    %v2857 = vpop.f32.mrf.mxu0
    %v2858 = vadd.f32 %v2659, %v2857
    %v2859 = vpop.f32.mrf.mxu0
    %v2860 = vadd.f32 %v2661, %v2859
    %2861 = vmatprep.mubr.f32.mxu0 %v2731
    %2862 = vmatmul.mubr.f32.gmra.mxu0 %v2278
    %v2863 = vpop.f32.mrf.mxu0
    %v2864 = vadd.f32 %v2665, %v2863
    %v2865 = vpop.f32.mrf.mxu0
    %v2866 = vadd.f32 %v2667, %v2865
    %2867 = vmatprep.mubr.f32.mxu0 %v2733
    %2868 = vmatmul.mubr.f32.gmra.mxu0 %v2284
    %v2869 = vpop.f32.mrf.mxu0
    %v2870 = vadd.f32 %v2671, %v2869
    %v2871 = vpop.f32.mrf.mxu0
    %v2872 = vadd.f32 %v2673, %v2871
    %2873 = vmatprep.mubr.f32.mxu0 %v2735
    %2874 = vmatmul.mubr.f32.gmra.mxu0 %v2290
    %v2875 = vpop.f32.mrf.mxu0
    %v2876 = vadd.f32 %v2677, %v2875
    %v2877 = vpop.f32.mrf.mxu0
    %v2878 = vadd.f32 %v2679, %v2877
    %2879 = vmatprep.mubr.f32.mxu0 %v2737
    %2880 = vmatmul.mubr.f32.gmra.mxu0 %v2296
    %v2881 = vpop.f32.mrf.mxu0
    %v2882 = vadd.f32 %v2683, %v2881
    %v2883 = vpop.f32.mrf.mxu0
    %v2884 = vadd.f32 %v2685, %v2883
    %2885 = vmatprep.mubr.f32.mxu0 %v2739
    %2886 = vmatmul.mubr.f32.gmra.mxu0 %v2302
    %v2887 = vpop.f32.mrf.mxu0
    %v2888 = vadd.f32 %v2689, %v2887
    %v2889 = vpop.f32.mrf.mxu0
    %v2890 = vadd.f32 %v2691, %v2889
    %2891 = vmatprep.mubr.f32.mxu0 %v2741
    %2892 = vmatmul.mubr.f32.gmra.mxu0 %v2308
    %v2893 = vpop.f32.mrf.mxu0
    %v2894 = vadd.f32 %v2695, %v2893
    %v2895 = vpop.f32.mrf.mxu0
    %v2896 = vadd.f32 %v2697, %v2895
    %2897 = vmatprep.mubr.f32.mxu0 %v2743
    %2898 = vmatmul.mubr.f32.gmra.mxu0 %v2314
    %v2899 = vpop.f32.mrf.mxu0
    %v2900 = vadd.f32 %v2701, %v2899
    %v2901 = vpop.f32.mrf.mxu0
    %v2902 = vadd.f32 %v2703, %v2901
    %2903 = vmatprep.mubr.f32.mxu0 %v2745
    %2904 = vmatmul.mubr.f32.gmra.mxu0 %v2320
    %v2905 = vpop.f32.mrf.mxu0
    %v2906 = vadd.f32 %v2707, %v2905
    %v2907 = vpop.f32.mrf.mxu0
    %v2908 = vadd.f32 %v2709, %v2907
    %2909 = vmatprep.mubr.f32.mxu0 %v2747
    %2910 = vmatmul.mubr.f32.gmra.mxu0 %v2326
    %v2911 = vpop.f32.mrf.mxu0
    %v2912 = vadd.f32 %v2713, %v2911
    %v2913 = vpop.f32.mrf.mxu0
    %v2914 = vadd.f32 %v2715, %v2913
    %2915 = vdwg.mxu0
    %s2916 = scalar_lea.vmem %s3, 608
    %v2917 = vld [vmem:[%s2916] sm:$0xff]
    %v2918 = vld [vmem:[%s2916 + $0x8] sm:$0xff]
    %v2919 = vld [vmem:[%s2916 + $0x10] sm:$0xff]
    %v2920 = vld [vmem:[%s2916 + $0x18] sm:$0xff]
    %v2921 = vld [vmem:[%s2916 + $0x20] sm:$0xff]
    %v2922 = vld [vmem:[%s2916 + $0x28] sm:$0xff]
    %v2923 = vld [vmem:[%s2916 + $0x30] sm:$0xff]
    %v2924 = vld [vmem:[%s2916 + $0x38] sm:$0xff]
    %v2925 = vld [vmem:[%s2916 + $0x40] sm:$0xff]
    %v2926 = vld [vmem:[%s2916 + $0x48] sm:$0xff]
    %v2927 = vld [vmem:[%s2916 + $0x50] sm:$0xff]
    %v2928 = vld [vmem:[%s2916 + $0x58] sm:$0xff]
    %v2929 = vld [vmem:[%s2916 + $0x60] sm:$0xff]
    %v2930 = vld [vmem:[%s2916 + $0x68] sm:$0xff]
    %v2931 = vld [vmem:[%s2916 + $0x70] sm:$0xff]
    %v2932 = vld [vmem:[%s2916 + $0x78] sm:$0xff]
    %v2933 = vld [vmem:[%s2916 + $0x80] sm:$0xff]
    %v2934 = vld [vmem:[%s2916 + $0x88] sm:$0xff]
    %v2935 = vld [vmem:[%s2916 + $0x90] sm:$0xff]
    %v2936 = vld [vmem:[%s2916 + $0x98] sm:$0xff]
    %v2937 = vld [vmem:[%s2916 + $0xa0] sm:$0xff]
    %v2938 = vld [vmem:[%s2916 + $0xa8] sm:$0xff]
    %v2939 = vld [vmem:[%s2916 + $0xb0] sm:$0xff]
    %v2940 = vld [vmem:[%s2916 + $0xb8] sm:$0xff]
    %v2941 = vld [vmem:[%s2916 + $0xc0] sm:$0xff]
    %v2942 = vld [vmem:[%s2916 + $0xc8] sm:$0xff]
    %v2943 = vld [vmem:[%s2916 + $0xd0] sm:$0xff]
    %v2944 = vld [vmem:[%s2916 + $0xd8] sm:$0xff]
    %v2945 = vld [vmem:[%s2916 + $0xe0] sm:$0xff]
    %v2946 = vld [vmem:[%s2916 + $0xe8] sm:$0xff]
    %v2947 = vld [vmem:[%s2916 + $0xf0] sm:$0xff]
    %v2948 = vld [vmem:[%s2916 + $0xf8] sm:$0xff]
    %v2949 = vld [vmem:[%s2916 + $0x100] sm:$0xff]
    %v2950 = vld [vmem:[%s2916 + $0x108] sm:$0xff]
    %v2951 = vld [vmem:[%s2916 + $0x110] sm:$0xff]
    %v2952 = vld [vmem:[%s2916 + $0x118] sm:$0xff]
    %v2953 = vld [vmem:[%s2916 + $0x120] sm:$0x3f]
    %v2954 = vld [vmem:[%s2916 + $0x128] sm:$0x3f]
    %v2955 = vrot.slane %v2236, 2
    %v2956 = vrot.slane %v2242, 2
    %v2957 = vsel %vm853, %v2955, %v2956
    %v2958 = vrot.slane %v2238, 2
    %v2959 = vrot.slane %v2244, 2
    %v2960 = vsel %vm853, %v2958, %v2959
    %v2961 = vrot.slane %v2248, 2
    %v2962 = vsel %vm853, %v2956, %v2961
    %v2963 = vrot.slane %v2250, 2
    %v2964 = vsel %vm853, %v2959, %v2963
    %v2965 = vrot.slane %v2254, 2
    %v2966 = vsel %vm853, %v2961, %v2965
    %v2967 = vrot.slane %v2256, 2
    %v2968 = vsel %vm853, %v2963, %v2967
    %v2969 = vrot.slane %v2260, 2
    %v2970 = vsel %vm853, %v2965, %v2969
    %v2971 = vrot.slane %v2262, 2
    %v2972 = vsel %vm853, %v2967, %v2971
    %v2973 = vrot.slane %v2266, 2
    %v2974 = vsel %vm853, %v2969, %v2973
    %v2975 = vrot.slane %v2268, 2
    %v2976 = vsel %vm853, %v2971, %v2975
    %v2977 = vrot.slane %v2272, 2
    %v2978 = vsel %vm853, %v2973, %v2977
    %v2979 = vrot.slane %v2274, 2
    %v2980 = vsel %vm853, %v2975, %v2979
    %v2981 = vrot.slane %v2278, 2
    %v2982 = vsel %vm853, %v2977, %v2981
    %v2983 = vrot.slane %v2280, 2
    %v2984 = vsel %vm853, %v2979, %v2983
    %v2985 = vrot.slane %v2284, 2
    %v2986 = vsel %vm853, %v2981, %v2985
    %v2987 = vrot.slane %v2286, 2
    %v2988 = vsel %vm853, %v2983, %v2987
    %v2989 = vrot.slane %v2290, 2
    %v2990 = vsel %vm853, %v2985, %v2989
    %v2991 = vrot.slane %v2292, 2
    %v2992 = vsel %vm853, %v2987, %v2991
    %v2993 = vrot.slane %v2296, 2
    %v2994 = vsel %vm853, %v2989, %v2993
    %v2995 = vrot.slane %v2298, 2
    %v2996 = vsel %vm853, %v2991, %v2995
    %v2997 = vrot.slane %v2302, 2
    %v2998 = vsel %vm853, %v2993, %v2997
    %v2999 = vrot.slane %v2304, 2
    %v3000 = vsel %vm853, %v2995, %v2999
    %v3001 = vrot.slane %v2308, 2
    %v3002 = vsel %vm853, %v2997, %v3001
    %v3003 = vrot.slane %v2310, 2
    %v3004 = vsel %vm853, %v2999, %v3003
    %v3005 = vrot.slane %v2314, 2
    %v3006 = vsel %vm853, %v3001, %v3005
    %v3007 = vrot.slane %v2316, 2
    %v3008 = vsel %vm853, %v3003, %v3007
    %v3009 = vrot.slane %v2320, 2
    %v3010 = vsel %vm853, %v3005, %v3009
    %v3011 = vrot.slane %v2322, 2
    %v3012 = vsel %vm853, %v3007, %v3011
    %v3013 = vrot.slane %v2326, 2
    %v3014 = vsel %vm853, %v3009, %v3013
    %v3015 = vrot.slane %v2328, 2
    %v3016 = vsel %vm853, %v3011, %v3015
    %v3033 = vsel %vm2517, %v2960, 0
    %v3035 = vsel %vm2517, %v2964, 0
    %v3037 = vsel %vm2517, %v2968, 0
    %v3039 = vsel %vm2517, %v2972, 0
    %v3041 = vsel %vm2517, %v2976, 0
    %v3043 = vsel %vm2517, %v2980, 0
    %v3045 = vsel %vm2517, %v2984, 0
    %v3047 = vsel %vm2517, %v2988, 0
    %v3049 = vsel %vm2517, %v2992, 0
    %v3051 = vsel %vm2517, %v2996, 0
    %v3053 = vsel %vm2517, %v3000, 0
    %v3055 = vsel %vm2517, %v3004, 0
    %v3057 = vsel %vm2517, %v3008, 0
    %v3059 = vsel %vm2517, %v3012, 0
    %v3061 = vsel %vm2517, %v3016, 0
    %v3063 = vsel %vm2517, %v3015, 0
    %v3066 = vsel %vm853, %v2953, 0
    %v3069 = vsel %vm853, %v2954, 0
    %3071 = vmatprep.subr.mxu0 %v2948
    %3072 = vmatpush1.msra.mxu0 %v2947
    %3073 = vmatprep.subr.mxu0 %v2946
    %3074 = vmatpush1.msra.mxu0 %v2945
    %3075 = vmatprep.subr.mxu0 %v2944
    %3076 = vmatpush1.msra.mxu0 %v2943
    %3077 = vmatprep.subr.mxu0 %v2942
    %3078 = vmatpush1.msra.mxu0 %v2941
    %3079 = vmatprep.subr.mxu0 %v2940
    %3080 = vmatpush1.msra.mxu0 %v2939
    %3081 = vmatprep.subr.mxu0 %v2938
    %3082 = vmatpush1.msra.mxu0 %v2937
    %3083 = vmatprep.subr.mxu0 %v2936
    %3084 = vmatpush1.msra.mxu0 %v2935
    %3085 = vmatprep.subr.mxu0 %v2934
    %3086 = vmatpush1.msra.mxu0 %v2933
    %3087 = vmatprep.subr.mxu0 %v2932
    %3088 = vmatpush1.msra.mxu0 %v2931
    %3089 = vmatprep.subr.mxu0 %v2930
    %3090 = vmatpush1.msra.mxu0 %v2929
    %3091 = vmatprep.subr.mxu0 %v2928
    %3092 = vmatpush1.msra.mxu0 %v2927
    %3093 = vmatprep.subr.mxu0 %v2926
    %3094 = vmatpush1.msra.mxu0 %v2925
    %3095 = vmatprep.subr.mxu0 %v2924
    %3096 = vmatpush1.msra.mxu0 %v2923
    %3097 = vmatprep.subr.mxu0 %v2922
    %3098 = vmatpush1.msra.mxu0 %v2921
    %3099 = vmatprep.subr.mxu0 %v2920
    %3100 = vmatpush1.msra.mxu0 %v2919
    %3101 = vmatprep.subr.mxu0 %v2918
    %3102 = vmatpush1.msra.mxu0 %v2917
    %3103 = vmatprep.subr.mxu0 0.0
    %3104 = vmatpush2.msra.mxu0 0.0
    %3105 = vmatprep.subr.mxu0 0.0
    %3106 = vmatpush2.msra.mxu0 0.0
    %3107 = vmatprep.subr.mxu0 0.0
    %3108 = vmatpush2.msra.mxu0 0.0
    %3109 = vmatprep.subr.mxu0 0.0
    %3110 = vmatpush2.msra.mxu0 0.0
    %3111 = vmatprep.subr.mxu0 0.0
    %3112 = vmatpush2.msra.mxu0 0.0
    %3113 = vmatprep.subr.mxu0 0.0
    %3114 = vmatpush2.msra.mxu0 0.0
    %3115 = vmatprep.subr.mxu0 0.0
    %3116 = vmatpush2.msra.mxu0 0.0
    %3117 = vmatprep.subr.mxu0 0.0
    %3118 = vmatpush2.msra.mxu0 0.0
    %3119 = vmatprep.subr.mxu0 0.0
    %3120 = vmatpush2.msra.mxu0 0.0
    %3121 = vmatprep.subr.mxu0 0.0
    %3122 = vmatpush2.msra.mxu0 0.0
    %3123 = vmatprep.subr.mxu0 0.0
    %3124 = vmatpush2.msra.mxu0 0.0
    %3125 = vmatprep.subr.mxu0 0.0
    %3126 = vmatpush2.msra.mxu0 0.0
    %3127 = vmatprep.subr.mxu0 0.0
    %3128 = vmatpush2.msra.mxu0 0.0
    %3129 = vmatprep.subr.mxu0 %v3069
    %3130 = vmatpush2.msra.mxu0 %v3066
    %3131 = vmatprep.subr.mxu0 %v2952
    %3132 = vmatpush2.msra.mxu0 %v2951
    %3133 = vmatprep.subr.mxu0 %v2950
    %3134 = vmatpush2.msra.mxu0 %v2949
    %3135 = vmatprep.mubr.f32.mxu0 %v3033
    %3136 = vmatmul.mubr.f32.gmra.mxu0 %v2957
    %v3137 = vpop.f32.mrf.mxu0
    %v3138 = vadd.f32 0.0, %v3137
    %v3139 = vpop.f32.mrf.mxu0
    %v3140 = vadd.f32 0.0, %v3139
    %3141 = vmatprep.mubr.f32.mxu0 %v3035
    %3142 = vmatmul.mubr.f32.gmra.mxu0 %v2962
    %v3143 = vpop.f32.mrf.mxu0
    %v3144 = vadd.f32 0.0, %v3143
    %v3145 = vpop.f32.mrf.mxu0
    %v3146 = vadd.f32 0.0, %v3145
    %3147 = vmatprep.mubr.f32.mxu0 %v3037
    %3148 = vmatmul.mubr.f32.gmra.mxu0 %v2966
    %v3149 = vpop.f32.mrf.mxu0
    %v3150 = vadd.f32 0.0, %v3149
    %v3151 = vpop.f32.mrf.mxu0
    %v3152 = vadd.f32 0.0, %v3151
    %3153 = vmatprep.mubr.f32.mxu0 %v3039
    %3154 = vmatmul.mubr.f32.gmra.mxu0 %v2970
    %v3155 = vpop.f32.mrf.mxu0
    %v3156 = vadd.f32 0.0, %v3155
    %v3157 = vpop.f32.mrf.mxu0
    %v3158 = vadd.f32 0.0, %v3157
    %3159 = vmatprep.mubr.f32.mxu0 %v3041
    %3160 = vmatmul.mubr.f32.gmra.mxu0 %v2974
    %v3161 = vpop.f32.mrf.mxu0
    %v3162 = vadd.f32 0.0, %v3161
    %v3163 = vpop.f32.mrf.mxu0
    %v3164 = vadd.f32 0.0, %v3163
    %3165 = vmatprep.mubr.f32.mxu0 %v3043
    %3166 = vmatmul.mubr.f32.gmra.mxu0 %v2978
    %v3167 = vpop.f32.mrf.mxu0
    %v3168 = vadd.f32 0.0, %v3167
    %v3169 = vpop.f32.mrf.mxu0
    %v3170 = vadd.f32 0.0, %v3169
    %3171 = vmatprep.mubr.f32.mxu0 %v3045
    %3172 = vmatmul.mubr.f32.gmra.mxu0 %v2982
    %v3173 = vpop.f32.mrf.mxu0
    %v3174 = vadd.f32 0.0, %v3173
    %v3175 = vpop.f32.mrf.mxu0
    %v3176 = vadd.f32 0.0, %v3175
    %3177 = vmatprep.mubr.f32.mxu0 %v3047
    %3178 = vmatmul.mubr.f32.gmra.mxu0 %v2986
    %v3179 = vpop.f32.mrf.mxu0
    %v3180 = vadd.f32 0.0, %v3179
    %v3181 = vpop.f32.mrf.mxu0
    %v3182 = vadd.f32 0.0, %v3181
    %3183 = vmatprep.mubr.f32.mxu0 %v3049
    %3184 = vmatmul.mubr.f32.gmra.mxu0 %v2990
    %v3185 = vpop.f32.mrf.mxu0
    %v3186 = vadd.f32 0.0, %v3185
    %v3187 = vpop.f32.mrf.mxu0
    %v3188 = vadd.f32 0.0, %v3187
    %3189 = vmatprep.mubr.f32.mxu0 %v3051
    %3190 = vmatmul.mubr.f32.gmra.mxu0 %v2994
    %v3191 = vpop.f32.mrf.mxu0
    %v3192 = vadd.f32 0.0, %v3191
    %v3193 = vpop.f32.mrf.mxu0
    %v3194 = vadd.f32 0.0, %v3193
    %3195 = vmatprep.mubr.f32.mxu0 %v3053
    %3196 = vmatmul.mubr.f32.gmra.mxu0 %v2998
    %v3197 = vpop.f32.mrf.mxu0
    %v3198 = vadd.f32 0.0, %v3197
    %v3199 = vpop.f32.mrf.mxu0
    %v3200 = vadd.f32 0.0, %v3199
    %3201 = vmatprep.mubr.f32.mxu0 %v3055
    %3202 = vmatmul.mubr.f32.gmra.mxu0 %v3002
    %v3203 = vpop.f32.mrf.mxu0
    %v3204 = vadd.f32 0.0, %v3203
    %v3205 = vpop.f32.mrf.mxu0
    %v3206 = vadd.f32 0.0, %v3205
    %3207 = vmatprep.mubr.f32.mxu0 %v3057
    %3208 = vmatmul.mubr.f32.gmra.mxu0 %v3006
    %v3209 = vpop.f32.mrf.mxu0
    %v3210 = vadd.f32 0.0, %v3209
    %v3211 = vpop.f32.mrf.mxu0
    %v3212 = vadd.f32 0.0, %v3211
    %3213 = vmatprep.mubr.f32.mxu0 %v3059
    %3214 = vmatmul.mubr.f32.gmra.mxu0 %v3010
    %v3215 = vpop.f32.mrf.mxu0
    %v3216 = vadd.f32 0.0, %v3215
    %v3217 = vpop.f32.mrf.mxu0
    %v3218 = vadd.f32 0.0, %v3217
    %3219 = vmatprep.mubr.f32.mxu0 %v3061
    %3220 = vmatmul.mubr.f32.gmra.mxu0 %v3014
    %v3221 = vpop.f32.mrf.mxu0
    %v3222 = vadd.f32 0.0, %v3221
    %v3223 = vpop.f32.mrf.mxu0
    %v3224 = vadd.f32 0.0, %v3223
    %3225 = vmatprep.mubr.f32.mxu0 %v3063
    %3226 = vmatmul.mubr.f32.gmra.mxu0 %v3013
    %v3227 = vpop.f32.mrf.mxu0
    %v3228 = vadd.f32 0.0, %v3227
    %v3229 = vpop.f32.mrf.mxu0
    %v3230 = vadd.f32 0.0, %v3229
    %3231 = vdwg.mxu0
    %v3232 = vadd.f32 %v2822, %v3138
    %v3233 = vadd.f32 %v2824, %v3140
    %v3234 = vadd.f32 %v2828, %v3144
    %v3235 = vadd.f32 %v2830, %v3146
    %v3236 = vadd.f32 %v2834, %v3150
    %v3237 = vadd.f32 %v2836, %v3152
    %v3238 = vadd.f32 %v2840, %v3156
    %v3239 = vadd.f32 %v2842, %v3158
    %v3240 = vadd.f32 %v2846, %v3162
    %v3241 = vadd.f32 %v2848, %v3164
    %v3242 = vadd.f32 %v2852, %v3168
    %v3243 = vadd.f32 %v2854, %v3170
    %v3244 = vadd.f32 %v2858, %v3174
    %v3245 = vadd.f32 %v2860, %v3176
    %v3246 = vadd.f32 %v2864, %v3180
    %v3247 = vadd.f32 %v2866, %v3182
    %v3248 = vadd.f32 %v2870, %v3186
    %v3249 = vadd.f32 %v2872, %v3188
    %v3250 = vadd.f32 %v2876, %v3192
    %v3251 = vadd.f32 %v2878, %v3194
    %v3252 = vadd.f32 %v2882, %v3198
    %v3253 = vadd.f32 %v2884, %v3200
    %v3254 = vadd.f32 %v2888, %v3204
    %v3255 = vadd.f32 %v2890, %v3206
    %v3256 = vadd.f32 %v2894, %v3210
    %v3257 = vadd.f32 %v2896, %v3212
    %v3258 = vadd.f32 %v2900, %v3216
    %v3259 = vadd.f32 %v2902, %v3218
    %v3260 = vadd.f32 %v2906, %v3222
    %v3261 = vadd.f32 %v2908, %v3224
    %v3262 = vadd.f32 %v2912, %v3228
    %v3263 = vadd.f32 %v2914, %v3230
    %v3264 = vld [vmem:[%s4] sm:$0x3]
    %v3266 = vlaneseq
    %v3267 = vshrl.u32 %v3266, 7
    %v3268 = vsub.s32 0, %v3267
    %v3269 = vrot.slane %v3264, %v3268
    %v3270 = vlaneseq
    %v3271 = vshrl.u32 %v3270, 7
    %v3272 = vsub.s32 1, %v3271
    %v3273 = vrot.slane %v3264, %v3272
    %v3276 = vadd.f32 %v3232, %v3269
    %v3277 = vadd.f32 %v3233, %v3273
    %v3278 = vadd.f32 %v3234, %v3269
    %v3279 = vadd.f32 %v3235, %v3273
    %v3280 = vadd.f32 %v3236, %v3269
    %v3281 = vadd.f32 %v3237, %v3273
    %v3282 = vadd.f32 %v3238, %v3269
    %v3283 = vadd.f32 %v3239, %v3273
    %v3284 = vadd.f32 %v3240, %v3269
    %v3285 = vadd.f32 %v3241, %v3273
    %v3286 = vadd.f32 %v3242, %v3269
    %v3287 = vadd.f32 %v3243, %v3273
    %v3288 = vadd.f32 %v3244, %v3269
    %v3289 = vadd.f32 %v3245, %v3273
    %v3290 = vadd.f32 %v3246, %v3269
    %v3291 = vadd.f32 %v3247, %v3273
    %v3292 = vadd.f32 %v3248, %v3269
    %v3293 = vadd.f32 %v3249, %v3273
    %v3294 = vadd.f32 %v3250, %v3269
    %v3295 = vadd.f32 %v3251, %v3273
    %v3296 = vadd.f32 %v3252, %v3269
    %v3297 = vadd.f32 %v3253, %v3273
    %v3298 = vadd.f32 %v3254, %v3269
    %v3299 = vadd.f32 %v3255, %v3273
    %v3300 = vadd.f32 %v3256, %v3269
    %v3301 = vadd.f32 %v3257, %v3273
    %v3302 = vadd.f32 %v3258, %v3269
    %v3303 = vadd.f32 %v3259, %v3273
    %v3304 = vadd.f32 %v3260, %v3269
    %v3305 = vadd.f32 %v3261, %v3273
    %v3306 = vadd.f32 %v3262, %v3269
    %v3307 = vadd.f32 %v3263, %v3273
    %v3308 = vmax.f32 %v3276, 0.0
    %v3309 = vmax.f32 %v3277, 0.0
    %v3310 = vmax.f32 %v3278, 0.0
    %v3311 = vmax.f32 %v3279, 0.0
    %v3312 = vmax.f32 %v3280, 0.0
    %v3313 = vmax.f32 %v3281, 0.0
    %v3314 = vmax.f32 %v3282, 0.0
    %v3315 = vmax.f32 %v3283, 0.0
    %v3316 = vmax.f32 %v3284, 0.0
    %v3317 = vmax.f32 %v3285, 0.0
    %v3318 = vmax.f32 %v3286, 0.0
    %v3319 = vmax.f32 %v3287, 0.0
    %v3320 = vmax.f32 %v3288, 0.0
    %v3321 = vmax.f32 %v3289, 0.0
    %v3322 = vmax.f32 %v3290, 0.0
    %v3323 = vmax.f32 %v3291, 0.0
    %v3324 = vmax.f32 %v3292, 0.0
    %v3325 = vmax.f32 %v3293, 0.0
    %v3326 = vmax.f32 %v3294, 0.0
    %v3327 = vmax.f32 %v3295, 0.0
    %v3328 = vmax.f32 %v3296, 0.0
    %v3329 = vmax.f32 %v3297, 0.0
    %v3330 = vmax.f32 %v3298, 0.0
    %v3331 = vmax.f32 %v3299, 0.0
    %v3332 = vmax.f32 %v3300, 0.0
    %v3333 = vmax.f32 %v3301, 0.0
    %v3334 = vmax.f32 %v3302, 0.0
    %v3335 = vmax.f32 %v3303, 0.0
    %v3336 = vmax.f32 %v3304, 0.0
    %v3337 = vmax.f32 %v3305, 0.0
    %v3338 = vmax.f32 %v3306, 0.0
    %v3339 = vmax.f32 %v3307, 0.0
    %v3372 = vrot.slane %v3308, 1
    %v3373 = vrot.slane %v3310, 1
    %v3374 = vsel %vm210, %v3372, %v3373
    %v3375 = vrot.slane %v3309, 1
    %v3376 = vrot.slane %v3311, 1
    %v3377 = vsel %vm210, %v3375, %v3376
    %v3378 = vrot.slane %v3312, 1
    %v3379 = vsel %vm210, %v3373, %v3378
    %v3380 = vrot.slane %v3313, 1
    %v3381 = vsel %vm210, %v3376, %v3380
    %v3382 = vrot.slane %v3314, 1
    %v3383 = vsel %vm210, %v3378, %v3382
    %v3384 = vrot.slane %v3315, 1
    %v3385 = vsel %vm210, %v3380, %v3384
    %v3386 = vrot.slane %v3316, 1
    %v3387 = vsel %vm210, %v3382, %v3386
    %v3388 = vrot.slane %v3317, 1
    %v3389 = vsel %vm210, %v3384, %v3388
    %v3390 = vrot.slane %v3318, 1
    %v3391 = vsel %vm210, %v3386, %v3390
    %v3392 = vrot.slane %v3319, 1
    %v3393 = vsel %vm210, %v3388, %v3392
    %v3394 = vrot.slane %v3320, 1
    %v3395 = vsel %vm210, %v3390, %v3394
    %v3396 = vrot.slane %v3321, 1
    %v3397 = vsel %vm210, %v3392, %v3396
    %v3398 = vrot.slane %v3322, 1
    %v3399 = vsel %vm210, %v3394, %v3398
    %v3400 = vrot.slane %v3323, 1
    %v3401 = vsel %vm210, %v3396, %v3400
    %v3402 = vrot.slane %v3324, 1
    %v3403 = vsel %vm210, %v3398, %v3402
    %v3404 = vrot.slane %v3325, 1
    %v3405 = vsel %vm210, %v3400, %v3404
    %v3406 = vrot.slane %v3326, 1
    %v3407 = vsel %vm210, %v3402, %v3406
    %v3408 = vrot.slane %v3327, 1
    %v3409 = vsel %vm210, %v3404, %v3408
    %v3410 = vrot.slane %v3328, 1
    %v3411 = vsel %vm210, %v3406, %v3410
    %v3412 = vrot.slane %v3329, 1
    %v3413 = vsel %vm210, %v3408, %v3412
    %v3414 = vrot.slane %v3330, 1
    %v3415 = vsel %vm210, %v3410, %v3414
    %v3416 = vrot.slane %v3331, 1
    %v3417 = vsel %vm210, %v3412, %v3416
    %v3418 = vrot.slane %v3332, 1
    %v3419 = vsel %vm210, %v3414, %v3418
    %v3420 = vrot.slane %v3333, 1
    %v3421 = vsel %vm210, %v3416, %v3420
    %v3422 = vrot.slane %v3334, 1
    %v3423 = vsel %vm210, %v3418, %v3422
    %v3424 = vrot.slane %v3335, 1
    %v3425 = vsel %vm210, %v3420, %v3424
    %v3426 = vrot.slane %v3336, 1
    %v3427 = vsel %vm210, %v3422, %v3426
    %v3428 = vrot.slane %v3337, 1
    %v3429 = vsel %vm210, %v3424, %v3428
    %v3430 = vrot.slane %v3338, 1
    %v3431 = vsel %vm210, %v3426, %v3430
    %v3432 = vrot.slane %v3339, 1
    %v3433 = vsel %vm210, %v3428, %v3432
    %v3466 = vmax.f32 %v3308, %v3374
    %v3467 = vmax.f32 %v3309, %v3377
    %v3468 = vmax.f32 %v3310, %v3379
    %v3469 = vmax.f32 %v3311, %v3381
    %v3470 = vmax.f32 %v3312, %v3383
    %v3471 = vmax.f32 %v3313, %v3385
    %v3472 = vmax.f32 %v3314, %v3387
    %v3473 = vmax.f32 %v3315, %v3389
    %v3474 = vmax.f32 %v3316, %v3391
    %v3475 = vmax.f32 %v3317, %v3393
    %v3476 = vmax.f32 %v3318, %v3395
    %v3477 = vmax.f32 %v3319, %v3397
    %v3478 = vmax.f32 %v3320, %v3399
    %v3479 = vmax.f32 %v3321, %v3401
    %v3480 = vmax.f32 %v3322, %v3403
    %v3481 = vmax.f32 %v3323, %v3405
    %v3482 = vmax.f32 %v3324, %v3407
    %v3483 = vmax.f32 %v3325, %v3409
    %v3484 = vmax.f32 %v3326, %v3411
    %v3485 = vmax.f32 %v3327, %v3413
    %v3486 = vmax.f32 %v3328, %v3415
    %v3487 = vmax.f32 %v3329, %v3417
    %v3488 = vmax.f32 %v3330, %v3419
    %v3489 = vmax.f32 %v3331, %v3421
    %v3490 = vmax.f32 %v3332, %v3423
    %v3491 = vmax.f32 %v3333, %v3425
    %v3492 = vmax.f32 %v3334, %v3427
    %v3493 = vmax.f32 %v3335, %v3429
    %v3494 = vmax.f32 %v3336, %v3431
    %v3495 = vmax.f32 %v3337, %v3433
    %v3496 = vmax.f32 %v3338, %v3430
    %v3497 = vmax.f32 %v3339, %v3432
    %3530 = vrot.lane.b32.xlu0 %v3466, 112
    %v3531 = vpop.permute.xlu0 %3530
    %3532 = vrot.lane.b32.xlu0 %v3467, 112
    %v3533 = vpop.permute.xlu0 %3532
    %3534 = vrot.lane.b32.xlu0 %v3468, 112
    %v3535 = vpop.permute.xlu0 %3534
    %3536 = vrot.lane.b32.xlu0 %v3469, 112
    %v3537 = vpop.permute.xlu0 %3536
    %3538 = vrot.lane.b32.xlu0 %v3470, 112
    %v3539 = vpop.permute.xlu0 %3538
    %3540 = vrot.lane.b32.xlu0 %v3471, 112
    %v3541 = vpop.permute.xlu0 %3540
    %3542 = vrot.lane.b32.xlu0 %v3472, 112
    %v3543 = vpop.permute.xlu0 %3542
    %3544 = vrot.lane.b32.xlu0 %v3473, 112
    %v3545 = vpop.permute.xlu0 %3544
    %3546 = vrot.lane.b32.xlu0 %v3474, 112
    %v3547 = vpop.permute.xlu0 %3546
    %3548 = vrot.lane.b32.xlu0 %v3475, 112
    %v3549 = vpop.permute.xlu0 %3548
    %3550 = vrot.lane.b32.xlu0 %v3476, 112
    %v3551 = vpop.permute.xlu0 %3550
    %3552 = vrot.lane.b32.xlu0 %v3477, 112
    %v3553 = vpop.permute.xlu0 %3552
    %3554 = vrot.lane.b32.xlu0 %v3478, 112
    %v3555 = vpop.permute.xlu0 %3554
    %3556 = vrot.lane.b32.xlu0 %v3479, 112
    %v3557 = vpop.permute.xlu0 %3556
    %3558 = vrot.lane.b32.xlu0 %v3480, 112
    %v3559 = vpop.permute.xlu0 %3558
    %3560 = vrot.lane.b32.xlu0 %v3481, 112
    %v3561 = vpop.permute.xlu0 %3560
    %3562 = vrot.lane.b32.xlu0 %v3482, 112
    %v3563 = vpop.permute.xlu0 %3562
    %3564 = vrot.lane.b32.xlu0 %v3483, 112
    %v3565 = vpop.permute.xlu0 %3564
    %3566 = vrot.lane.b32.xlu0 %v3484, 112
    %v3567 = vpop.permute.xlu0 %3566
    %3568 = vrot.lane.b32.xlu0 %v3485, 112
    %v3569 = vpop.permute.xlu0 %3568
    %3570 = vrot.lane.b32.xlu0 %v3486, 112
    %v3571 = vpop.permute.xlu0 %3570
    %3572 = vrot.lane.b32.xlu0 %v3487, 112
    %v3573 = vpop.permute.xlu0 %3572
    %3574 = vrot.lane.b32.xlu0 %v3488, 112
    %v3575 = vpop.permute.xlu0 %3574
    %3576 = vrot.lane.b32.xlu0 %v3489, 112
    %v3577 = vpop.permute.xlu0 %3576
    %3578 = vrot.lane.b32.xlu0 %v3490, 112
    %v3579 = vpop.permute.xlu0 %3578
    %3580 = vrot.lane.b32.xlu0 %v3491, 112
    %v3581 = vpop.permute.xlu0 %3580
    %3582 = vrot.lane.b32.xlu0 %v3492, 112
    %v3583 = vpop.permute.xlu0 %3582
    %3584 = vrot.lane.b32.xlu0 %v3493, 112
    %v3585 = vpop.permute.xlu0 %3584
    %3586 = vrot.lane.b32.xlu0 %v3494, 112
    %v3587 = vpop.permute.xlu0 %3586
    %3588 = vrot.lane.b32.xlu0 %v3495, 112
    %v3589 = vpop.permute.xlu0 %3588
    %3590 = vrot.lane.b32.xlu0 %v3496, 112
    %v3591 = vpop.permute.xlu0 %3590
    %3592 = vrot.lane.b32.xlu0 %v3497, 112
    %v3593 = vpop.permute.xlu0 %3592
    %vm3594 = vcmask 916480
    %v3595 = vsel %vm3594, %v3531, %v3533
    %v3596 = vsel %vm3594, %v3535, %v3537
    %v3597 = vsel %vm3594, %v3539, %v3541
    %v3598 = vsel %vm3594, %v3543, %v3545
    %v3599 = vsel %vm3594, %v3547, %v3549
    %v3600 = vsel %vm3594, %v3551, %v3553
    %v3601 = vsel %vm3594, %v3555, %v3557
    %v3602 = vsel %vm3594, %v3559, %v3561
    %v3603 = vsel %vm3594, %v3563, %v3565
    %v3604 = vsel %vm3594, %v3567, %v3569
    %v3605 = vsel %vm3594, %v3571, %v3573
    %v3606 = vsel %vm3594, %v3575, %v3577
    %v3607 = vsel %vm3594, %v3579, %v3581
    %v3608 = vsel %vm3594, %v3583, %v3585
    %v3609 = vsel %vm3594, %v3587, %v3589
    %v3610 = vsel %vm3594, %v3591, %v3593
    %v3643 = vmax.f32 %v3466, %v3595
    %v3644 = vmax.f32 %v3467, %v3533
    %v3645 = vmax.f32 %v3468, %v3596
    %v3646 = vmax.f32 %v3469, %v3537
    %v3647 = vmax.f32 %v3470, %v3597
    %v3648 = vmax.f32 %v3471, %v3541
    %v3649 = vmax.f32 %v3472, %v3598
    %v3650 = vmax.f32 %v3473, %v3545
    %v3651 = vmax.f32 %v3474, %v3599
    %v3652 = vmax.f32 %v3475, %v3549
    %v3653 = vmax.f32 %v3476, %v3600
    %v3654 = vmax.f32 %v3477, %v3553
    %v3655 = vmax.f32 %v3478, %v3601
    %v3656 = vmax.f32 %v3479, %v3557
    %v3657 = vmax.f32 %v3480, %v3602
    %v3658 = vmax.f32 %v3481, %v3561
    %v3659 = vmax.f32 %v3482, %v3603
    %v3660 = vmax.f32 %v3483, %v3565
    %v3661 = vmax.f32 %v3484, %v3604
    %v3662 = vmax.f32 %v3485, %v3569
    %v3663 = vmax.f32 %v3486, %v3605
    %v3664 = vmax.f32 %v3487, %v3573
    %v3665 = vmax.f32 %v3488, %v3606
    %v3666 = vmax.f32 %v3489, %v3577
    %v3667 = vmax.f32 %v3490, %v3607
    %v3668 = vmax.f32 %v3491, %v3581
    %v3669 = vmax.f32 %v3492, %v3608
    %v3670 = vmax.f32 %v3493, %v3585
    %v3671 = vmax.f32 %v3494, %v3609
    %v3672 = vmax.f32 %v3495, %v3589
    %v3673 = vmax.f32 %v3496, %v3610
    %v3674 = vmax.f32 %v3497, %v3593
    %v3675 = vld [vmem:[%s6] sm:$0xff]
    %vm3676 = vcmask 1014784
    %v3678 = vsel %vm3676, %v3675, 0
    %vm3680 = vcmask 1043456
    %v3682 = vsel %vm3680, %v3673, 0
    %v3685 = vsel %vm3680, %v3674, 0
    %3687 = vmatprep.subr.mxu0 %v3685
    %3688 = vmatpush1.msra.mxu0 %v3682
    %3689 = vmatprep.subr.mxu0 %v3672
    %3690 = vmatpush1.msra.mxu0 %v3671
    %3691 = vmatprep.subr.mxu0 %v3670
    %3692 = vmatpush1.msra.mxu0 %v3669
    %3693 = vmatprep.subr.mxu0 %v3668
    %3694 = vmatpush1.msra.mxu0 %v3667
    %3695 = vmatprep.subr.mxu0 %v3666
    %3696 = vmatpush1.msra.mxu0 %v3665
    %3697 = vmatprep.subr.mxu0 %v3664
    %3698 = vmatpush1.msra.mxu0 %v3663
    %3699 = vmatprep.subr.mxu0 %v3662
    %3700 = vmatpush1.msra.mxu0 %v3661
    %3701 = vmatprep.subr.mxu0 %v3660
    %3702 = vmatpush1.msra.mxu0 %v3659
    %3703 = vmatprep.subr.mxu0 %v3658
    %3704 = vmatpush1.msra.mxu0 %v3657
    %3705 = vmatprep.subr.mxu0 %v3656
    %3706 = vmatpush1.msra.mxu0 %v3655
    %3707 = vmatprep.subr.mxu0 %v3654
    %3708 = vmatpush1.msra.mxu0 %v3653
    %3709 = vmatprep.subr.mxu0 %v3652
    %3710 = vmatpush1.msra.mxu0 %v3651
    %3711 = vmatprep.subr.mxu0 %v3650
    %3712 = vmatpush1.msra.mxu0 %v3649
    %3713 = vmatprep.subr.mxu0 %v3648
    %3714 = vmatpush1.msra.mxu0 %v3647
    %3715 = vmatprep.subr.mxu0 %v3646
    %3716 = vmatpush1.msra.mxu0 %v3645
    %3717 = vmatprep.subr.mxu0 %v3644
    %3718 = vmatpush1.msra.mxu0 %v3643
    %3719 = vmatprep.subr.mxu0 0.0
    %3720 = vmatpush2.msra.mxu0 0.0
    %3721 = vmatprep.subr.mxu0 0.0
    %3722 = vmatpush2.msra.mxu0 0.0
    %3723 = vmatprep.subr.mxu0 0.0
    %3724 = vmatpush2.msra.mxu0 0.0
    %3725 = vmatprep.subr.mxu0 0.0
    %3726 = vmatpush2.msra.mxu0 0.0
    %3727 = vmatprep.subr.mxu0 0.0
    %3728 = vmatpush2.msra.mxu0 0.0
    %3729 = vmatprep.subr.mxu0 0.0
    %3730 = vmatpush2.msra.mxu0 0.0
    %3731 = vmatprep.subr.mxu0 0.0
    %3732 = vmatpush2.msra.mxu0 0.0
    %3733 = vmatprep.subr.mxu0 0.0
    %3734 = vmatpush2.msra.mxu0 0.0
    %3735 = vmatprep.subr.mxu0 0.0
    %3736 = vmatpush2.msra.mxu0 0.0
    %3737 = vmatprep.subr.mxu0 0.0
    %3738 = vmatpush2.msra.mxu0 0.0
    %3739 = vmatprep.subr.mxu0 0.0
    %3740 = vmatpush2.msra.mxu0 0.0
    %3741 = vmatprep.subr.mxu0 0.0
    %3742 = vmatpush2.msra.mxu0 0.0
    %3743 = vmatprep.subr.mxu0 0.0
    %3744 = vmatpush2.msra.mxu0 0.0
    %3745 = vmatprep.subr.mxu0 0.0
    %3746 = vmatpush2.msra.mxu0 0.0
    %3747 = vmatprep.subr.mxu0 0.0
    %3748 = vmatpush2.msra.mxu0 0.0
    %3749 = vmatprep.subr.mxu0 0.0
    %3750 = vmatpush2.msra.mxu0 0.0
    %3751 = vmatprep.mubr.f32.mxu0 0.0
    %3752 = vmatmul.mubr.f32.gmra.mxu0 %v3678
    %v3753 = vpop.f32.mrf.mxu0
    %v3754 = vadd.f32 0.0, %v3753
    %v3755 = vpop.f32.mrf.mxu0
    %v3756 = vadd.f32 0.0, %v3755
    %3757 = vdwg.mxu0
    %v3758 = vld [vmem:[%s7] sm:$0xff]
    %v3759 = vld [vmem:[%s7 + $0x8] sm:$0xff]
    %v3760 = vld [vmem:[%s7 + $0x10] sm:$0xff]
    %v3761 = vld [vmem:[%s7 + $0x18] sm:$0xff]
    %v3762 = vld [vmem:[%s7 + $0x20] sm:$0xff]
    %v3763 = vld [vmem:[%s7 + $0x28] sm:$0xff]
    %v3764 = vld [vmem:[%s7 + $0x30] sm:$0xff]
    %v3765 = vld [vmem:[%s7 + $0x38] sm:$0xff]
    %v3766 = vld [vmem:[%s7 + $0x40] sm:$0xff]
    %v3767 = vld [vmem:[%s7 + $0x48] sm:$0xff]
    %v3768 = vld [vmem:[%s7 + $0x50] sm:$0xff]
    %v3769 = vld [vmem:[%s7 + $0x58] sm:$0xff]
    %v3770 = vld [vmem:[%s7 + $0x60] sm:$0xff]
    %v3771 = vld [vmem:[%s7 + $0x68] sm:$0xff]
    %v3772 = vld [vmem:[%s7 + $0x70] sm:$0xff]
    %v3773 = vld [vmem:[%s7 + $0x78] sm:$0xff]
    %v3774 = vld [vmem:[%s7 + $0x80] sm:$0xff]
    %v3775 = vld [vmem:[%s7 + $0x88] sm:$0xff]
    %v3776 = vld [vmem:[%s7 + $0x90] sm:$0xff]
    %v3777 = vld [vmem:[%s7 + $0x98] sm:$0xff]
    %s3778 = scalar_lea.vmem %s6, 8
    %v3779 = vld [vmem:[%s3778] sm:$0xff]
    %v3781 = vsel %vm3676, %v3779, 0
    %3783 = vmatprep.subr.mxu0 %v3685
    %3784 = vmatpush1.msra.mxu0 %v3682
    %3785 = vmatprep.subr.mxu0 %v3672
    %3786 = vmatpush1.msra.mxu0 %v3671
    %3787 = vmatprep.subr.mxu0 %v3670
    %3788 = vmatpush1.msra.mxu0 %v3669
    %3789 = vmatprep.subr.mxu0 %v3668
    %3790 = vmatpush1.msra.mxu0 %v3667
    %3791 = vmatprep.subr.mxu0 %v3666
    %3792 = vmatpush1.msra.mxu0 %v3665
    %3793 = vmatprep.subr.mxu0 %v3664
    %3794 = vmatpush1.msra.mxu0 %v3663
    %3795 = vmatprep.subr.mxu0 %v3662
    %3796 = vmatpush1.msra.mxu0 %v3661
    %3797 = vmatprep.subr.mxu0 %v3660
    %3798 = vmatpush1.msra.mxu0 %v3659
    %3799 = vmatprep.subr.mxu0 %v3658
    %3800 = vmatpush1.msra.mxu0 %v3657
    %3801 = vmatprep.subr.mxu0 %v3656
    %3802 = vmatpush1.msra.mxu0 %v3655
    %3803 = vmatprep.subr.mxu0 %v3654
    %3804 = vmatpush1.msra.mxu0 %v3653
    %3805 = vmatprep.subr.mxu0 %v3652
    %3806 = vmatpush1.msra.mxu0 %v3651
    %3807 = vmatprep.subr.mxu0 %v3650
    %3808 = vmatpush1.msra.mxu0 %v3649
    %3809 = vmatprep.subr.mxu0 %v3648
    %3810 = vmatpush1.msra.mxu0 %v3647
    %3811 = vmatprep.subr.mxu0 %v3646
    %3812 = vmatpush1.msra.mxu0 %v3645
    %3813 = vmatprep.subr.mxu0 %v3644
    %3814 = vmatpush1.msra.mxu0 %v3643
    %3815 = vmatprep.subr.mxu0 0.0
    %3816 = vmatpush2.msra.mxu0 0.0
    %3817 = vmatprep.subr.mxu0 0.0
    %3818 = vmatpush2.msra.mxu0 0.0
    %3819 = vmatprep.subr.mxu0 0.0
    %3820 = vmatpush2.msra.mxu0 0.0
    %3821 = vmatprep.subr.mxu0 0.0
    %3822 = vmatpush2.msra.mxu0 0.0
    %3823 = vmatprep.subr.mxu0 0.0
    %3824 = vmatpush2.msra.mxu0 0.0
    %3825 = vmatprep.subr.mxu0 0.0
    %3826 = vmatpush2.msra.mxu0 0.0
    %3827 = vmatprep.subr.mxu0 0.0
    %3828 = vmatpush2.msra.mxu0 0.0
    %3829 = vmatprep.subr.mxu0 0.0
    %3830 = vmatpush2.msra.mxu0 0.0
    %3831 = vmatprep.subr.mxu0 0.0
    %3832 = vmatpush2.msra.mxu0 0.0
    %3833 = vmatprep.subr.mxu0 0.0
    %3834 = vmatpush2.msra.mxu0 0.0
    %3835 = vmatprep.subr.mxu0 0.0
    %3836 = vmatpush2.msra.mxu0 0.0
    %3837 = vmatprep.subr.mxu0 0.0
    %3838 = vmatpush2.msra.mxu0 0.0
    %3839 = vmatprep.subr.mxu0 0.0
    %3840 = vmatpush2.msra.mxu0 0.0
    %3841 = vmatprep.subr.mxu0 0.0
    %3842 = vmatpush2.msra.mxu0 0.0
    %3843 = vmatprep.subr.mxu0 0.0
    %3844 = vmatpush2.msra.mxu0 0.0
    %3845 = vmatprep.subr.mxu0 0.0
    %3846 = vmatpush2.msra.mxu0 0.0
    %3847 = vmatprep.mubr.f32.mxu0 0.0
    %3848 = vmatmul.mubr.f32.gmra.mxu0 %v3781
    %v3849 = vpop.f32.mrf.mxu0
    %v3850 = vadd.f32 0.0, %v3849
    %v3851 = vpop.f32.mrf.mxu0
    %v3852 = vadd.f32 0.0, %v3851
    %3853 = vdwg.mxu0
    %s3854 = scalar_lea.vmem %s7, 160
    %v3855 = vld [vmem:[%s3854] sm:$0xff]
    %v3856 = vld [vmem:[%s3854 + $0x8] sm:$0xff]
    %v3857 = vld [vmem:[%s3854 + $0x10] sm:$0xff]
    %v3858 = vld [vmem:[%s3854 + $0x18] sm:$0xff]
    %v3859 = vld [vmem:[%s3854 + $0x20] sm:$0xff]
    %v3860 = vld [vmem:[%s3854 + $0x28] sm:$0xff]
    %v3861 = vld [vmem:[%s3854 + $0x30] sm:$0xff]
    %v3862 = vld [vmem:[%s3854 + $0x38] sm:$0xff]
    %v3863 = vld [vmem:[%s3854 + $0x40] sm:$0xff]
    %v3864 = vld [vmem:[%s3854 + $0x48] sm:$0xff]
    %v3865 = vld [vmem:[%s3854 + $0x50] sm:$0xff]
    %v3866 = vld [vmem:[%s3854 + $0x58] sm:$0xff]
    %v3867 = vld [vmem:[%s3854 + $0x60] sm:$0xff]
    %v3868 = vld [vmem:[%s3854 + $0x68] sm:$0xff]
    %v3869 = vld [vmem:[%s3854 + $0x70] sm:$0xff]
    %v3870 = vld [vmem:[%s3854 + $0x78] sm:$0xff]
    %v3871 = vld [vmem:[%s3854 + $0x80] sm:$0xff]
    %v3872 = vld [vmem:[%s3854 + $0x88] sm:$0xff]
    %v3873 = vld [vmem:[%s3854 + $0x90] sm:$0xff]
    %v3874 = vld [vmem:[%s3854 + $0x98] sm:$0xff]
    %vm3875 = vcmask 261120
    %v3877 = vsel %vm3875, %v3852, 0
    %3879 = vmatprep.subr.mxu0 0.0
    %3880 = vmatpush1.msra.mxu0 %v3870
    %3881 = vmatprep.subr.mxu0 0.0
    %3882 = vmatpush1.msra.mxu0 %v3869
    %3883 = vmatprep.subr.mxu0 0.0
    %3884 = vmatpush1.msra.mxu0 %v3868
    %3885 = vmatprep.subr.mxu0 0.0
    %3886 = vmatpush1.msra.mxu0 %v3867
    %3887 = vmatprep.subr.mxu0 0.0
    %3888 = vmatpush1.msra.mxu0 %v3866
    %3889 = vmatprep.subr.mxu0 0.0
    %3890 = vmatpush1.msra.mxu0 %v3865
    %3891 = vmatprep.subr.mxu0 0.0
    %3892 = vmatpush1.msra.mxu0 %v3864
    %3893 = vmatprep.subr.mxu0 0.0
    %3894 = vmatpush1.msra.mxu0 %v3863
    %3895 = vmatprep.subr.mxu0 0.0
    %3896 = vmatpush1.msra.mxu0 %v3862
    %3897 = vmatprep.subr.mxu0 0.0
    %3898 = vmatpush1.msra.mxu0 %v3861
    %3899 = vmatprep.subr.mxu0 0.0
    %3900 = vmatpush1.msra.mxu0 %v3860
    %3901 = vmatprep.subr.mxu0 0.0
    %3902 = vmatpush1.msra.mxu0 %v3859
    %3903 = vmatprep.subr.mxu0 0.0
    %3904 = vmatpush1.msra.mxu0 %v3858
    %3905 = vmatprep.subr.mxu0 0.0
    %3906 = vmatpush1.msra.mxu0 %v3857
    %3907 = vmatprep.subr.mxu0 0.0
    %3908 = vmatpush1.msra.mxu0 %v3856
    %3909 = vmatprep.subr.mxu0 0.0
    %3910 = vmatpush1.msra.mxu0 %v3855
    %3911 = vmatprep.subr.mxu0 0.0
    %3912 = vmatpush2.msra.mxu0 0.0
    %3913 = vmatprep.subr.mxu0 0.0
    %3914 = vmatpush2.msra.mxu0 0.0
    %3915 = vmatprep.subr.mxu0 0.0
    %3916 = vmatpush2.msra.mxu0 0.0
    %3917 = vmatprep.subr.mxu0 0.0
    %3918 = vmatpush2.msra.mxu0 0.0
    %3919 = vmatprep.subr.mxu0 0.0
    %3920 = vmatpush2.msra.mxu0 0.0
    %3921 = vmatprep.subr.mxu0 0.0
    %3922 = vmatpush2.msra.mxu0 0.0
    %3923 = vmatprep.subr.mxu0 0.0
    %3924 = vmatpush2.msra.mxu0 0.0
    %3925 = vmatprep.subr.mxu0 0.0
    %3926 = vmatpush2.msra.mxu0 0.0
    %3927 = vmatprep.subr.mxu0 0.0
    %3928 = vmatpush2.msra.mxu0 0.0
    %3929 = vmatprep.subr.mxu0 0.0
    %3930 = vmatpush2.msra.mxu0 0.0
    %3931 = vmatprep.subr.mxu0 0.0
    %3932 = vmatpush2.msra.mxu0 0.0
    %3933 = vmatprep.subr.mxu0 0.0
    %3934 = vmatpush2.msra.mxu0 0.0
    %3935 = vmatprep.subr.mxu0 0.0
    %3936 = vmatpush2.msra.mxu0 %v3874
    %3937 = vmatprep.subr.mxu0 0.0
    %3938 = vmatpush2.msra.mxu0 %v3873
    %3939 = vmatprep.subr.mxu0 0.0
    %3940 = vmatpush2.msra.mxu0 %v3872
    %3941 = vmatprep.subr.mxu0 0.0
    %3942 = vmatpush2.msra.mxu0 %v3871
    %3943 = vmatprep.mubr.f32.mxu0 %v3877
    %3944 = vmatmul.mubr.f32.gmra.mxu0 %v3850
    %v3945 = vpop.f32.mrf.mxu0
    %v3946 = vadd.f32 0.0, %v3945
    %v3947 = vpop.f32.mrf.mxu0
    %3948 = vdwg.mxu0
    %v3950 = vsel %vm3875, %v3756, 0
    %3952 = vmatprep.subr.mxu0 0.0
    %3953 = vmatpush1.msra.mxu0 %v3773
    %3954 = vmatprep.subr.mxu0 0.0
    %3955 = vmatpush1.msra.mxu0 %v3772
    %3956 = vmatprep.subr.mxu0 0.0
    %3957 = vmatpush1.msra.mxu0 %v3771
    %3958 = vmatprep.subr.mxu0 0.0
    %3959 = vmatpush1.msra.mxu0 %v3770
    %3960 = vmatprep.subr.mxu0 0.0
    %3961 = vmatpush1.msra.mxu0 %v3769
    %3962 = vmatprep.subr.mxu0 0.0
    %3963 = vmatpush1.msra.mxu0 %v3768
    %3964 = vmatprep.subr.mxu0 0.0
    %3965 = vmatpush1.msra.mxu0 %v3767
    %3966 = vmatprep.subr.mxu0 0.0
    %3967 = vmatpush1.msra.mxu0 %v3766
    %3968 = vmatprep.subr.mxu0 0.0
    %3969 = vmatpush1.msra.mxu0 %v3765
    %3970 = vmatprep.subr.mxu0 0.0
    %3971 = vmatpush1.msra.mxu0 %v3764
    %3972 = vmatprep.subr.mxu0 0.0
    %3973 = vmatpush1.msra.mxu0 %v3763
    %3974 = vmatprep.subr.mxu0 0.0
    %3975 = vmatpush1.msra.mxu0 %v3762
    %3976 = vmatprep.subr.mxu0 0.0
    %3977 = vmatpush1.msra.mxu0 %v3761
    %3978 = vmatprep.subr.mxu0 0.0
    %3979 = vmatpush1.msra.mxu0 %v3760
    %3980 = vmatprep.subr.mxu0 0.0
    %3981 = vmatpush1.msra.mxu0 %v3759
    %3982 = vmatprep.subr.mxu0 0.0
    %3983 = vmatpush1.msra.mxu0 %v3758
    %3984 = vmatprep.subr.mxu0 0.0
    %3985 = vmatpush2.msra.mxu0 0.0
    %3986 = vmatprep.subr.mxu0 0.0
    %3987 = vmatpush2.msra.mxu0 0.0
    %3988 = vmatprep.subr.mxu0 0.0
    %3989 = vmatpush2.msra.mxu0 0.0
    %3990 = vmatprep.subr.mxu0 0.0
    %3991 = vmatpush2.msra.mxu0 0.0
    %3992 = vmatprep.subr.mxu0 0.0
    %3993 = vmatpush2.msra.mxu0 0.0
    %3994 = vmatprep.subr.mxu0 0.0
    %3995 = vmatpush2.msra.mxu0 0.0
    %3996 = vmatprep.subr.mxu0 0.0
    %3997 = vmatpush2.msra.mxu0 0.0
    %3998 = vmatprep.subr.mxu0 0.0
    %3999 = vmatpush2.msra.mxu0 0.0
    %4000 = vmatprep.subr.mxu0 0.0
    %4001 = vmatpush2.msra.mxu0 0.0
    %4002 = vmatprep.subr.mxu0 0.0
    %4003 = vmatpush2.msra.mxu0 0.0
    %4004 = vmatprep.subr.mxu0 0.0
    %4005 = vmatpush2.msra.mxu0 0.0
    %4006 = vmatprep.subr.mxu0 0.0
    %4007 = vmatpush2.msra.mxu0 0.0
    %4008 = vmatprep.subr.mxu0 0.0
    %4009 = vmatpush2.msra.mxu0 %v3777
    %4010 = vmatprep.subr.mxu0 0.0
    %4011 = vmatpush2.msra.mxu0 %v3776
    %4012 = vmatprep.subr.mxu0 0.0
    %4013 = vmatpush2.msra.mxu0 %v3775
    %4014 = vmatprep.subr.mxu0 0.0
    %4015 = vmatpush2.msra.mxu0 %v3774
    %4016 = vmatprep.mubr.f32.mxu0 %v3950
    %4017 = vmatmul.mubr.f32.gmra.mxu0 %v3754
    %v4018 = vpop.f32.mrf.mxu0
    %v4019 = vadd.f32 %v3946, %v4018
    %v4020 = vpop.f32.mrf.mxu0
    %4021 = vdwg.mxu0
    %s4022 = scalar_lea.vmem %s6, 16
    %v4023 = vld [vmem:[%s4022] sm:$0xff]
    %v4025 = vsel %vm3676, %v4023, 0
    %4027 = vmatprep.subr.mxu0 %v3685
    %4028 = vmatpush1.msra.mxu0 %v3682
    %4029 = vmatprep.subr.mxu0 %v3672
    %4030 = vmatpush1.msra.mxu0 %v3671
    %4031 = vmatprep.subr.mxu0 %v3670
    %4032 = vmatpush1.msra.mxu0 %v3669
    %4033 = vmatprep.subr.mxu0 %v3668
    %4034 = vmatpush1.msra.mxu0 %v3667
    %4035 = vmatprep.subr.mxu0 %v3666
    %4036 = vmatpush1.msra.mxu0 %v3665
    %4037 = vmatprep.subr.mxu0 %v3664
    %4038 = vmatpush1.msra.mxu0 %v3663
    %4039 = vmatprep.subr.mxu0 %v3662
    %4040 = vmatpush1.msra.mxu0 %v3661
    %4041 = vmatprep.subr.mxu0 %v3660
    %4042 = vmatpush1.msra.mxu0 %v3659
    %4043 = vmatprep.subr.mxu0 %v3658
    %4044 = vmatpush1.msra.mxu0 %v3657
    %4045 = vmatprep.subr.mxu0 %v3656
    %4046 = vmatpush1.msra.mxu0 %v3655
    %4047 = vmatprep.subr.mxu0 %v3654
    %4048 = vmatpush1.msra.mxu0 %v3653
    %4049 = vmatprep.subr.mxu0 %v3652
    %4050 = vmatpush1.msra.mxu0 %v3651
    %4051 = vmatprep.subr.mxu0 %v3650
    %4052 = vmatpush1.msra.mxu0 %v3649
    %4053 = vmatprep.subr.mxu0 %v3648
    %4054 = vmatpush1.msra.mxu0 %v3647
    %4055 = vmatprep.subr.mxu0 %v3646
    %4056 = vmatpush1.msra.mxu0 %v3645
    %4057 = vmatprep.subr.mxu0 %v3644
    %4058 = vmatpush1.msra.mxu0 %v3643
    %4059 = vmatprep.subr.mxu0 0.0
    %4060 = vmatpush2.msra.mxu0 0.0
    %4061 = vmatprep.subr.mxu0 0.0
    %4062 = vmatpush2.msra.mxu0 0.0
    %4063 = vmatprep.subr.mxu0 0.0
    %4064 = vmatpush2.msra.mxu0 0.0
    %4065 = vmatprep.subr.mxu0 0.0
    %4066 = vmatpush2.msra.mxu0 0.0
    %4067 = vmatprep.subr.mxu0 0.0
    %4068 = vmatpush2.msra.mxu0 0.0
    %4069 = vmatprep.subr.mxu0 0.0
    %4070 = vmatpush2.msra.mxu0 0.0
    %4071 = vmatprep.subr.mxu0 0.0
    %4072 = vmatpush2.msra.mxu0 0.0
    %4073 = vmatprep.subr.mxu0 0.0
    %4074 = vmatpush2.msra.mxu0 0.0
    %4075 = vmatprep.subr.mxu0 0.0
    %4076 = vmatpush2.msra.mxu0 0.0
    %4077 = vmatprep.subr.mxu0 0.0
    %4078 = vmatpush2.msra.mxu0 0.0
    %4079 = vmatprep.subr.mxu0 0.0
    %4080 = vmatpush2.msra.mxu0 0.0
    %4081 = vmatprep.subr.mxu0 0.0
    %4082 = vmatpush2.msra.mxu0 0.0
    %4083 = vmatprep.subr.mxu0 0.0
    %4084 = vmatpush2.msra.mxu0 0.0
    %4085 = vmatprep.subr.mxu0 0.0
    %4086 = vmatpush2.msra.mxu0 0.0
    %4087 = vmatprep.subr.mxu0 0.0
    %4088 = vmatpush2.msra.mxu0 0.0
    %4089 = vmatprep.subr.mxu0 0.0
    %4090 = vmatpush2.msra.mxu0 0.0
    %4091 = vmatprep.mubr.f32.mxu0 0.0
    %4092 = vmatmul.mubr.f32.gmra.mxu0 %v4025
    %v4093 = vpop.f32.mrf.mxu0
    %v4094 = vadd.f32 0.0, %v4093
    %v4095 = vpop.f32.mrf.mxu0
    %v4096 = vadd.f32 0.0, %v4095
    %4097 = vdwg.mxu0
    %s4098 = scalar_lea.vmem %s7, 320
    %v4099 = vld [vmem:[%s4098] sm:$0xff]
    %v4100 = vld [vmem:[%s4098 + $0x8] sm:$0xff]
    %v4101 = vld [vmem:[%s4098 + $0x10] sm:$0xff]
    %v4102 = vld [vmem:[%s4098 + $0x18] sm:$0xff]
    %v4103 = vld [vmem:[%s4098 + $0x20] sm:$0xff]
    %v4104 = vld [vmem:[%s4098 + $0x28] sm:$0xff]
    %v4105 = vld [vmem:[%s4098 + $0x30] sm:$0xff]
    %v4106 = vld [vmem:[%s4098 + $0x38] sm:$0xff]
    %v4107 = vld [vmem:[%s4098 + $0x40] sm:$0xff]
    %v4108 = vld [vmem:[%s4098 + $0x48] sm:$0xff]
    %v4109 = vld [vmem:[%s4098 + $0x50] sm:$0xff]
    %v4110 = vld [vmem:[%s4098 + $0x58] sm:$0xff]
    %v4111 = vld [vmem:[%s4098 + $0x60] sm:$0xff]
    %v4112 = vld [vmem:[%s4098 + $0x68] sm:$0xff]
    %v4113 = vld [vmem:[%s4098 + $0x70] sm:$0xff]
    %v4114 = vld [vmem:[%s4098 + $0x78] sm:$0xff]
    %v4115 = vld [vmem:[%s4098 + $0x80] sm:$0xff]
    %v4116 = vld [vmem:[%s4098 + $0x88] sm:$0xff]
    %v4117 = vld [vmem:[%s4098 + $0x90] sm:$0xff]
    %v4118 = vld [vmem:[%s4098 + $0x98] sm:$0xff]
    %v4120 = vsel %vm3875, %v4096, 0
    %4122 = vmatprep.subr.mxu0 0.0
    %4123 = vmatpush1.msra.mxu0 %v4114
    %4124 = vmatprep.subr.mxu0 0.0
    %4125 = vmatpush1.msra.mxu0 %v4113
    %4126 = vmatprep.subr.mxu0 0.0
    %4127 = vmatpush1.msra.mxu0 %v4112
    %4128 = vmatprep.subr.mxu0 0.0
    %4129 = vmatpush1.msra.mxu0 %v4111
    %4130 = vmatprep.subr.mxu0 0.0
    %4131 = vmatpush1.msra.mxu0 %v4110
    %4132 = vmatprep.subr.mxu0 0.0
    %4133 = vmatpush1.msra.mxu0 %v4109
    %4134 = vmatprep.subr.mxu0 0.0
    %4135 = vmatpush1.msra.mxu0 %v4108
    %4136 = vmatprep.subr.mxu0 0.0
    %4137 = vmatpush1.msra.mxu0 %v4107
    %4138 = vmatprep.subr.mxu0 0.0
    %4139 = vmatpush1.msra.mxu0 %v4106
    %4140 = vmatprep.subr.mxu0 0.0
    %4141 = vmatpush1.msra.mxu0 %v4105
    %4142 = vmatprep.subr.mxu0 0.0
    %4143 = vmatpush1.msra.mxu0 %v4104
    %4144 = vmatprep.subr.mxu0 0.0
    %4145 = vmatpush1.msra.mxu0 %v4103
    %4146 = vmatprep.subr.mxu0 0.0
    %4147 = vmatpush1.msra.mxu0 %v4102
    %4148 = vmatprep.subr.mxu0 0.0
    %4149 = vmatpush1.msra.mxu0 %v4101
    %4150 = vmatprep.subr.mxu0 0.0
    %4151 = vmatpush1.msra.mxu0 %v4100
    %4152 = vmatprep.subr.mxu0 0.0
    %4153 = vmatpush1.msra.mxu0 %v4099
    %4154 = vmatprep.subr.mxu0 0.0
    %4155 = vmatpush2.msra.mxu0 0.0
    %4156 = vmatprep.subr.mxu0 0.0
    %4157 = vmatpush2.msra.mxu0 0.0
    %4158 = vmatprep.subr.mxu0 0.0
    %4159 = vmatpush2.msra.mxu0 0.0
    %4160 = vmatprep.subr.mxu0 0.0
    %4161 = vmatpush2.msra.mxu0 0.0
    %4162 = vmatprep.subr.mxu0 0.0
    %4163 = vmatpush2.msra.mxu0 0.0
    %4164 = vmatprep.subr.mxu0 0.0
    %4165 = vmatpush2.msra.mxu0 0.0
    %4166 = vmatprep.subr.mxu0 0.0
    %4167 = vmatpush2.msra.mxu0 0.0
    %4168 = vmatprep.subr.mxu0 0.0
    %4169 = vmatpush2.msra.mxu0 0.0
    %4170 = vmatprep.subr.mxu0 0.0
    %4171 = vmatpush2.msra.mxu0 0.0
    %4172 = vmatprep.subr.mxu0 0.0
    %4173 = vmatpush2.msra.mxu0 0.0
    %4174 = vmatprep.subr.mxu0 0.0
    %4175 = vmatpush2.msra.mxu0 0.0
    %4176 = vmatprep.subr.mxu0 0.0
    %4177 = vmatpush2.msra.mxu0 0.0
    %4178 = vmatprep.subr.mxu0 0.0
    %4179 = vmatpush2.msra.mxu0 %v4118
    %4180 = vmatprep.subr.mxu0 0.0
    %4181 = vmatpush2.msra.mxu0 %v4117
    %4182 = vmatprep.subr.mxu0 0.0
    %4183 = vmatpush2.msra.mxu0 %v4116
    %4184 = vmatprep.subr.mxu0 0.0
    %4185 = vmatpush2.msra.mxu0 %v4115
    %4186 = vmatprep.mubr.f32.mxu0 %v4120
    %4187 = vmatmul.mubr.f32.gmra.mxu0 %v4094
    %v4188 = vpop.f32.mrf.mxu0
    %v4189 = vadd.f32 0.0, %v4188
    %v4190 = vpop.f32.mrf.mxu0
    %4191 = vdwg.mxu0
    %v4192 = vadd.f32 %v4019, %v4189
    %s4193 = scalar_lea.vmem %s6, 24
    %v4194 = vld [vmem:[%s4193] sm:$0xff]
    %v4196 = vsel %vm3676, %v4194, 0
    %4198 = vmatprep.subr.mxu0 %v3685
    %4199 = vmatpush1.msra.mxu0 %v3682
    %4200 = vmatprep.subr.mxu0 %v3672
    %4201 = vmatpush1.msra.mxu0 %v3671
    %4202 = vmatprep.subr.mxu0 %v3670
    %4203 = vmatpush1.msra.mxu0 %v3669
    %4204 = vmatprep.subr.mxu0 %v3668
    %4205 = vmatpush1.msra.mxu0 %v3667
    %4206 = vmatprep.subr.mxu0 %v3666
    %4207 = vmatpush1.msra.mxu0 %v3665
    %4208 = vmatprep.subr.mxu0 %v3664
    %4209 = vmatpush1.msra.mxu0 %v3663
    %4210 = vmatprep.subr.mxu0 %v3662
    %4211 = vmatpush1.msra.mxu0 %v3661
    %4212 = vmatprep.subr.mxu0 %v3660
    %4213 = vmatpush1.msra.mxu0 %v3659
    %4214 = vmatprep.subr.mxu0 %v3658
    %4215 = vmatpush1.msra.mxu0 %v3657
    %4216 = vmatprep.subr.mxu0 %v3656
    %4217 = vmatpush1.msra.mxu0 %v3655
    %4218 = vmatprep.subr.mxu0 %v3654
    %4219 = vmatpush1.msra.mxu0 %v3653
    %4220 = vmatprep.subr.mxu0 %v3652
    %4221 = vmatpush1.msra.mxu0 %v3651
    %4222 = vmatprep.subr.mxu0 %v3650
    %4223 = vmatpush1.msra.mxu0 %v3649
    %4224 = vmatprep.subr.mxu0 %v3648
    %4225 = vmatpush1.msra.mxu0 %v3647
    %4226 = vmatprep.subr.mxu0 %v3646
    %4227 = vmatpush1.msra.mxu0 %v3645
    %4228 = vmatprep.subr.mxu0 %v3644
    %4229 = vmatpush1.msra.mxu0 %v3643
    %4230 = vmatprep.subr.mxu0 0.0
    %4231 = vmatpush2.msra.mxu0 0.0
    %4232 = vmatprep.subr.mxu0 0.0
    %4233 = vmatpush2.msra.mxu0 0.0
    %4234 = vmatprep.subr.mxu0 0.0
    %4235 = vmatpush2.msra.mxu0 0.0
    %4236 = vmatprep.subr.mxu0 0.0
    %4237 = vmatpush2.msra.mxu0 0.0
    %4238 = vmatprep.subr.mxu0 0.0
    %4239 = vmatpush2.msra.mxu0 0.0
    %4240 = vmatprep.subr.mxu0 0.0
    %4241 = vmatpush2.msra.mxu0 0.0
    %4242 = vmatprep.subr.mxu0 0.0
    %4243 = vmatpush2.msra.mxu0 0.0
    %4244 = vmatprep.subr.mxu0 0.0
    %4245 = vmatpush2.msra.mxu0 0.0
    %4246 = vmatprep.subr.mxu0 0.0
    %4247 = vmatpush2.msra.mxu0 0.0
    %4248 = vmatprep.subr.mxu0 0.0
    %4249 = vmatpush2.msra.mxu0 0.0
    %4250 = vmatprep.subr.mxu0 0.0
    %4251 = vmatpush2.msra.mxu0 0.0
    %4252 = vmatprep.subr.mxu0 0.0
    %4253 = vmatpush2.msra.mxu0 0.0
    %4254 = vmatprep.subr.mxu0 0.0
    %4255 = vmatpush2.msra.mxu0 0.0
    %4256 = vmatprep.subr.mxu0 0.0
    %4257 = vmatpush2.msra.mxu0 0.0
    %4258 = vmatprep.subr.mxu0 0.0
    %4259 = vmatpush2.msra.mxu0 0.0
    %4260 = vmatprep.subr.mxu0 0.0
    %4261 = vmatpush2.msra.mxu0 0.0
    %4262 = vmatprep.mubr.f32.mxu0 0.0
    %4263 = vmatmul.mubr.f32.gmra.mxu0 %v4196
    %v4264 = vpop.f32.mrf.mxu0
    %v4265 = vadd.f32 0.0, %v4264
    %v4266 = vpop.f32.mrf.mxu0
    %v4267 = vadd.f32 0.0, %v4266
    %4268 = vdwg.mxu0
    %s4269 = scalar_lea.vmem %s7, 480
    %v4270 = vld [vmem:[%s4269] sm:$0xff]
    %v4271 = vld [vmem:[%s4269 + $0x8] sm:$0xff]
    %v4272 = vld [vmem:[%s4269 + $0x10] sm:$0xff]
    %v4273 = vld [vmem:[%s4269 + $0x18] sm:$0xff]
    %v4274 = vld [vmem:[%s4269 + $0x20] sm:$0xff]
    %v4275 = vld [vmem:[%s4269 + $0x28] sm:$0xff]
    %v4276 = vld [vmem:[%s4269 + $0x30] sm:$0xff]
    %v4277 = vld [vmem:[%s4269 + $0x38] sm:$0xff]
    %v4278 = vld [vmem:[%s4269 + $0x40] sm:$0xff]
    %v4279 = vld [vmem:[%s4269 + $0x48] sm:$0xff]
    %v4280 = vld [vmem:[%s4269 + $0x50] sm:$0xff]
    %v4281 = vld [vmem:[%s4269 + $0x58] sm:$0xff]
    %v4282 = vld [vmem:[%s4269 + $0x60] sm:$0xff]
    %v4283 = vld [vmem:[%s4269 + $0x68] sm:$0xff]
    %v4284 = vld [vmem:[%s4269 + $0x70] sm:$0xff]
    %v4285 = vld [vmem:[%s4269 + $0x78] sm:$0xff]
    %v4286 = vld [vmem:[%s4269 + $0x80] sm:$0xff]
    %v4287 = vld [vmem:[%s4269 + $0x88] sm:$0xff]
    %v4288 = vld [vmem:[%s4269 + $0x90] sm:$0xff]
    %v4289 = vld [vmem:[%s4269 + $0x98] sm:$0xff]
    %v4291 = vsel %vm3875, %v4267, 0
    %4293 = vmatprep.subr.mxu0 0.0
    %4294 = vmatpush1.msra.mxu0 %v4285
    %4295 = vmatprep.subr.mxu0 0.0
    %4296 = vmatpush1.msra.mxu0 %v4284
    %4297 = vmatprep.subr.mxu0 0.0
    %4298 = vmatpush1.msra.mxu0 %v4283
    %4299 = vmatprep.subr.mxu0 0.0
    %4300 = vmatpush1.msra.mxu0 %v4282
    %4301 = vmatprep.subr.mxu0 0.0
    %4302 = vmatpush1.msra.mxu0 %v4281
    %4303 = vmatprep.subr.mxu0 0.0
    %4304 = vmatpush1.msra.mxu0 %v4280
    %4305 = vmatprep.subr.mxu0 0.0
    %4306 = vmatpush1.msra.mxu0 %v4279
    %4307 = vmatprep.subr.mxu0 0.0
    %4308 = vmatpush1.msra.mxu0 %v4278
    %4309 = vmatprep.subr.mxu0 0.0
    %4310 = vmatpush1.msra.mxu0 %v4277
    %4311 = vmatprep.subr.mxu0 0.0
    %4312 = vmatpush1.msra.mxu0 %v4276
    %4313 = vmatprep.subr.mxu0 0.0
    %4314 = vmatpush1.msra.mxu0 %v4275
    %4315 = vmatprep.subr.mxu0 0.0
    %4316 = vmatpush1.msra.mxu0 %v4274
    %4317 = vmatprep.subr.mxu0 0.0
    %4318 = vmatpush1.msra.mxu0 %v4273
    %4319 = vmatprep.subr.mxu0 0.0
    %4320 = vmatpush1.msra.mxu0 %v4272
    %4321 = vmatprep.subr.mxu0 0.0
    %4322 = vmatpush1.msra.mxu0 %v4271
    %4323 = vmatprep.subr.mxu0 0.0
    %4324 = vmatpush1.msra.mxu0 %v4270
    %4325 = vmatprep.subr.mxu0 0.0
    %4326 = vmatpush2.msra.mxu0 0.0
    %4327 = vmatprep.subr.mxu0 0.0
    %4328 = vmatpush2.msra.mxu0 0.0
    %4329 = vmatprep.subr.mxu0 0.0
    %4330 = vmatpush2.msra.mxu0 0.0
    %4331 = vmatprep.subr.mxu0 0.0
    %4332 = vmatpush2.msra.mxu0 0.0
    %4333 = vmatprep.subr.mxu0 0.0
    %4334 = vmatpush2.msra.mxu0 0.0
    %4335 = vmatprep.subr.mxu0 0.0
    %4336 = vmatpush2.msra.mxu0 0.0
    %4337 = vmatprep.subr.mxu0 0.0
    %4338 = vmatpush2.msra.mxu0 0.0
    %4339 = vmatprep.subr.mxu0 0.0
    %4340 = vmatpush2.msra.mxu0 0.0
    %4341 = vmatprep.subr.mxu0 0.0
    %4342 = vmatpush2.msra.mxu0 0.0
    %4343 = vmatprep.subr.mxu0 0.0
    %4344 = vmatpush2.msra.mxu0 0.0
    %4345 = vmatprep.subr.mxu0 0.0
    %4346 = vmatpush2.msra.mxu0 0.0
    %4347 = vmatprep.subr.mxu0 0.0
    %4348 = vmatpush2.msra.mxu0 0.0
    %4349 = vmatprep.subr.mxu0 0.0
    %4350 = vmatpush2.msra.mxu0 %v4289
    %4351 = vmatprep.subr.mxu0 0.0
    %4352 = vmatpush2.msra.mxu0 %v4288
    %4353 = vmatprep.subr.mxu0 0.0
    %4354 = vmatpush2.msra.mxu0 %v4287
    %4355 = vmatprep.subr.mxu0 0.0
    %4356 = vmatpush2.msra.mxu0 %v4286
    %4357 = vmatprep.mubr.f32.mxu0 %v4291
    %4358 = vmatmul.mubr.f32.gmra.mxu0 %v4265
    %v4359 = vpop.f32.mrf.mxu0
    %v4360 = vadd.f32 0.0, %v4359
    %v4361 = vpop.f32.mrf.mxu0
    %4362 = vdwg.mxu0
    %v4363 = vadd.f32 %v4192, %v4360
    %s4364 = scalar_lea.vmem %s6, 32
    %v4365 = vld [vmem:[%s4364] sm:$0xff]
    %v4367 = vsel %vm3676, %v4365, 0
    %4369 = vmatprep.subr.mxu0 %v3685
    %4370 = vmatpush1.msra.mxu0 %v3682
    %4371 = vmatprep.subr.mxu0 %v3672
    %4372 = vmatpush1.msra.mxu0 %v3671
    %4373 = vmatprep.subr.mxu0 %v3670
    %4374 = vmatpush1.msra.mxu0 %v3669
    %4375 = vmatprep.subr.mxu0 %v3668
    %4376 = vmatpush1.msra.mxu0 %v3667
    %4377 = vmatprep.subr.mxu0 %v3666
    %4378 = vmatpush1.msra.mxu0 %v3665
    %4379 = vmatprep.subr.mxu0 %v3664
    %4380 = vmatpush1.msra.mxu0 %v3663
    %4381 = vmatprep.subr.mxu0 %v3662
    %4382 = vmatpush1.msra.mxu0 %v3661
    %4383 = vmatprep.subr.mxu0 %v3660
    %4384 = vmatpush1.msra.mxu0 %v3659
    %4385 = vmatprep.subr.mxu0 %v3658
    %4386 = vmatpush1.msra.mxu0 %v3657
    %4387 = vmatprep.subr.mxu0 %v3656
    %4388 = vmatpush1.msra.mxu0 %v3655
    %4389 = vmatprep.subr.mxu0 %v3654
    %4390 = vmatpush1.msra.mxu0 %v3653
    %4391 = vmatprep.subr.mxu0 %v3652
    %4392 = vmatpush1.msra.mxu0 %v3651
    %4393 = vmatprep.subr.mxu0 %v3650
    %4394 = vmatpush1.msra.mxu0 %v3649
    %4395 = vmatprep.subr.mxu0 %v3648
    %4396 = vmatpush1.msra.mxu0 %v3647
    %4397 = vmatprep.subr.mxu0 %v3646
    %4398 = vmatpush1.msra.mxu0 %v3645
    %4399 = vmatprep.subr.mxu0 %v3644
    %4400 = vmatpush1.msra.mxu0 %v3643
    %4401 = vmatprep.subr.mxu0 0.0
    %4402 = vmatpush2.msra.mxu0 0.0
    %4403 = vmatprep.subr.mxu0 0.0
    %4404 = vmatpush2.msra.mxu0 0.0
    %4405 = vmatprep.subr.mxu0 0.0
    %4406 = vmatpush2.msra.mxu0 0.0
    %4407 = vmatprep.subr.mxu0 0.0
    %4408 = vmatpush2.msra.mxu0 0.0
    %4409 = vmatprep.subr.mxu0 0.0
    %4410 = vmatpush2.msra.mxu0 0.0
    %4411 = vmatprep.subr.mxu0 0.0
    %4412 = vmatpush2.msra.mxu0 0.0
    %4413 = vmatprep.subr.mxu0 0.0
    %4414 = vmatpush2.msra.mxu0 0.0
    %4415 = vmatprep.subr.mxu0 0.0
    %4416 = vmatpush2.msra.mxu0 0.0
    %4417 = vmatprep.subr.mxu0 0.0
    %4418 = vmatpush2.msra.mxu0 0.0
    %4419 = vmatprep.subr.mxu0 0.0
    %4420 = vmatpush2.msra.mxu0 0.0
    %4421 = vmatprep.subr.mxu0 0.0
    %4422 = vmatpush2.msra.mxu0 0.0
    %4423 = vmatprep.subr.mxu0 0.0
    %4424 = vmatpush2.msra.mxu0 0.0
    %4425 = vmatprep.subr.mxu0 0.0
    %4426 = vmatpush2.msra.mxu0 0.0
    %4427 = vmatprep.subr.mxu0 0.0
    %4428 = vmatpush2.msra.mxu0 0.0
    %4429 = vmatprep.subr.mxu0 0.0
    %4430 = vmatpush2.msra.mxu0 0.0
    %4431 = vmatprep.subr.mxu0 0.0
    %4432 = vmatpush2.msra.mxu0 0.0
    %4433 = vmatprep.mubr.f32.mxu0 0.0
    %4434 = vmatmul.mubr.f32.gmra.mxu0 %v4367
    %v4435 = vpop.f32.mrf.mxu0
    %v4436 = vadd.f32 0.0, %v4435
    %v4437 = vpop.f32.mrf.mxu0
    %v4438 = vadd.f32 0.0, %v4437
    %4439 = vdwg.mxu0
    %s4440 = scalar_lea.vmem %s7, 640
    %v4441 = vld [vmem:[%s4440] sm:$0xff]
    %v4442 = vld [vmem:[%s4440 + $0x8] sm:$0xff]
    %v4443 = vld [vmem:[%s4440 + $0x10] sm:$0xff]
    %v4444 = vld [vmem:[%s4440 + $0x18] sm:$0xff]
    %v4445 = vld [vmem:[%s4440 + $0x20] sm:$0xff]
    %v4446 = vld [vmem:[%s4440 + $0x28] sm:$0xff]
    %v4447 = vld [vmem:[%s4440 + $0x30] sm:$0xff]
    %v4448 = vld [vmem:[%s4440 + $0x38] sm:$0xff]
    %v4449 = vld [vmem:[%s4440 + $0x40] sm:$0xff]
    %v4450 = vld [vmem:[%s4440 + $0x48] sm:$0xff]
    %v4451 = vld [vmem:[%s4440 + $0x50] sm:$0xff]
    %v4452 = vld [vmem:[%s4440 + $0x58] sm:$0xff]
    %v4453 = vld [vmem:[%s4440 + $0x60] sm:$0xff]
    %v4454 = vld [vmem:[%s4440 + $0x68] sm:$0xff]
    %v4455 = vld [vmem:[%s4440 + $0x70] sm:$0xff]
    %v4456 = vld [vmem:[%s4440 + $0x78] sm:$0xff]
    %v4457 = vld [vmem:[%s4440 + $0x80] sm:$0xff]
    %v4458 = vld [vmem:[%s4440 + $0x88] sm:$0xff]
    %v4459 = vld [vmem:[%s4440 + $0x90] sm:$0xff]
    %v4460 = vld [vmem:[%s4440 + $0x98] sm:$0xff]
    %v4462 = vsel %vm3875, %v4438, 0
    %4464 = vmatprep.subr.mxu0 0.0
    %4465 = vmatpush1.msra.mxu0 %v4456
    %4466 = vmatprep.subr.mxu0 0.0
    %4467 = vmatpush1.msra.mxu0 %v4455
    %4468 = vmatprep.subr.mxu0 0.0
    %4469 = vmatpush1.msra.mxu0 %v4454
    %4470 = vmatprep.subr.mxu0 0.0
    %4471 = vmatpush1.msra.mxu0 %v4453
    %4472 = vmatprep.subr.mxu0 0.0
    %4473 = vmatpush1.msra.mxu0 %v4452
    %4474 = vmatprep.subr.mxu0 0.0
    %4475 = vmatpush1.msra.mxu0 %v4451
    %4476 = vmatprep.subr.mxu0 0.0
    %4477 = vmatpush1.msra.mxu0 %v4450
    %4478 = vmatprep.subr.mxu0 0.0
    %4479 = vmatpush1.msra.mxu0 %v4449
    %4480 = vmatprep.subr.mxu0 0.0
    %4481 = vmatpush1.msra.mxu0 %v4448
    %4482 = vmatprep.subr.mxu0 0.0
    %4483 = vmatpush1.msra.mxu0 %v4447
    %4484 = vmatprep.subr.mxu0 0.0
    %4485 = vmatpush1.msra.mxu0 %v4446
    %4486 = vmatprep.subr.mxu0 0.0
    %4487 = vmatpush1.msra.mxu0 %v4445
    %4488 = vmatprep.subr.mxu0 0.0
    %4489 = vmatpush1.msra.mxu0 %v4444
    %4490 = vmatprep.subr.mxu0 0.0
    %4491 = vmatpush1.msra.mxu0 %v4443
    %4492 = vmatprep.subr.mxu0 0.0
    %4493 = vmatpush1.msra.mxu0 %v4442
    %4494 = vmatprep.subr.mxu0 0.0
    %4495 = vmatpush1.msra.mxu0 %v4441
    %4496 = vmatprep.subr.mxu0 0.0
    %4497 = vmatpush2.msra.mxu0 0.0
    %4498 = vmatprep.subr.mxu0 0.0
    %4499 = vmatpush2.msra.mxu0 0.0
    %4500 = vmatprep.subr.mxu0 0.0
    %4501 = vmatpush2.msra.mxu0 0.0
    %4502 = vmatprep.subr.mxu0 0.0
    %4503 = vmatpush2.msra.mxu0 0.0
    %4504 = vmatprep.subr.mxu0 0.0
    %4505 = vmatpush2.msra.mxu0 0.0
    %4506 = vmatprep.subr.mxu0 0.0
    %4507 = vmatpush2.msra.mxu0 0.0
    %4508 = vmatprep.subr.mxu0 0.0
    %4509 = vmatpush2.msra.mxu0 0.0
    %4510 = vmatprep.subr.mxu0 0.0
    %4511 = vmatpush2.msra.mxu0 0.0
    %4512 = vmatprep.subr.mxu0 0.0
    %4513 = vmatpush2.msra.mxu0 0.0
    %4514 = vmatprep.subr.mxu0 0.0
    %4515 = vmatpush2.msra.mxu0 0.0
    %4516 = vmatprep.subr.mxu0 0.0
    %4517 = vmatpush2.msra.mxu0 0.0
    %4518 = vmatprep.subr.mxu0 0.0
    %4519 = vmatpush2.msra.mxu0 0.0
    %4520 = vmatprep.subr.mxu0 0.0
    %4521 = vmatpush2.msra.mxu0 %v4460
    %4522 = vmatprep.subr.mxu0 0.0
    %4523 = vmatpush2.msra.mxu0 %v4459
    %4524 = vmatprep.subr.mxu0 0.0
    %4525 = vmatpush2.msra.mxu0 %v4458
    %4526 = vmatprep.subr.mxu0 0.0
    %4527 = vmatpush2.msra.mxu0 %v4457
    %4528 = vmatprep.mubr.f32.mxu0 %v4462
    %4529 = vmatmul.mubr.f32.gmra.mxu0 %v4436
    %v4530 = vpop.f32.mrf.mxu0
    %v4531 = vadd.f32 0.0, %v4530
    %v4532 = vpop.f32.mrf.mxu0
    %4533 = vdwg.mxu0
    %v4534 = vadd.f32 %v4363, %v4531
    %v4535 = vld [vmem:[#allocation2] sm:$0x1]
    %v4537 = vlaneseq
    %v4538 = vshrl.u32 %v4537, 7
    %v4539 = vsub.s32 0, %v4538
    %v4540 = vrot.slane %v4535, %v4539
    %v4542 = vadd.f32 %v4534, %v4540
    %v4543 = vmax.f32 %v4542, 0.0
    %v4544 = vld [vmem:[%s9] sm:$0xff]
    %v4545 = vld [vmem:[%s9 + $0x8] sm:$0xff]
    %v4546 = vld [vmem:[%s9 + $0x10] sm:$0xff]
    %v4547 = vld [vmem:[%s9 + $0x18] sm:$0xff]
    %v4548 = vld [vmem:[%s9 + $0x20] sm:$0xff]
    %v4549 = vld [vmem:[%s9 + $0x28] sm:$0xff]
    %v4550 = vld [vmem:[%s9 + $0x30] sm:$0xff]
    %v4551 = vld [vmem:[%s9 + $0x38] sm:$0xff]
    %v4552 = vld [vmem:[%s9 + $0x40] sm:$0xff]
    %v4553 = vld [vmem:[%s9 + $0x48] sm:$0xff]
    %v4554 = vld [vmem:[%s9 + $0x50] sm:$0xff]
    %v4555 = vld [vmem:[%s9 + $0x58] sm:$0xff]
    %v4556 = vld [vmem:[%s9 + $0x60] sm:$0xff]
    %v4557 = vld [vmem:[%s9 + $0x68] sm:$0xff]
    %v4558 = vld [vmem:[%s9 + $0x70] sm:$0xff]
    %v4559 = vld [vmem:[%s9 + $0x78] sm:$0xff]
    %v4560 = vld [vmem:[#allocation4] sm:$0x1]
    %v4562 = vlaneseq
    %v4563 = vshrl.u32 %v4562, 7
    %v4564 = vsub.s32 0, %v4563
    %v4565 = vrot.slane %v4560, %v4564
    %4567 = vmatprep.subr.mxu0 0.0
    %4568 = vmatpush1.msra.mxu0 %v4559
    %4569 = vmatprep.subr.mxu0 0.0
    %4570 = vmatpush1.msra.mxu0 %v4558
    %4571 = vmatprep.subr.mxu0 0.0
    %4572 = vmatpush1.msra.mxu0 %v4557
    %4573 = vmatprep.subr.mxu0 0.0
    %4574 = vmatpush1.msra.mxu0 %v4556
    %4575 = vmatprep.subr.mxu0 0.0
    %4576 = vmatpush1.msra.mxu0 %v4555
    %4577 = vmatprep.subr.mxu0 0.0
    %4578 = vmatpush1.msra.mxu0 %v4554
    %4579 = vmatprep.subr.mxu0 0.0
    %4580 = vmatpush1.msra.mxu0 %v4553
    %4581 = vmatprep.subr.mxu0 0.0
    %4582 = vmatpush1.msra.mxu0 %v4552
    %4583 = vmatprep.subr.mxu0 0.0
    %4584 = vmatpush1.msra.mxu0 %v4551
    %4585 = vmatprep.subr.mxu0 0.0
    %4586 = vmatpush1.msra.mxu0 %v4550
    %4587 = vmatprep.subr.mxu0 0.0
    %4588 = vmatpush1.msra.mxu0 %v4549
    %4589 = vmatprep.subr.mxu0 0.0
    %4590 = vmatpush1.msra.mxu0 %v4548
    %4591 = vmatprep.subr.mxu0 0.0
    %4592 = vmatpush1.msra.mxu0 %v4547
    %4593 = vmatprep.subr.mxu0 0.0
    %4594 = vmatpush1.msra.mxu0 %v4546
    %4595 = vmatprep.subr.mxu0 0.0
    %4596 = vmatpush1.msra.mxu0 %v4545
    %4597 = vmatprep.subr.mxu0 0.0
    %4598 = vmatpush1.msra.mxu0 %v4544
    %4599 = vmatprep.subr.mxu0 0.0
    %4600 = vmatpush2.msra.mxu0 0.0
    %4601 = vmatprep.subr.mxu0 0.0
    %4602 = vmatpush2.msra.mxu0 0.0
    %4603 = vmatprep.subr.mxu0 0.0
    %4604 = vmatpush2.msra.mxu0 0.0
    %4605 = vmatprep.subr.mxu0 0.0
    %4606 = vmatpush2.msra.mxu0 0.0
    %4607 = vmatprep.subr.mxu0 0.0
    %4608 = vmatpush2.msra.mxu0 0.0
    %4609 = vmatprep.subr.mxu0 0.0
    %4610 = vmatpush2.msra.mxu0 0.0
    %4611 = vmatprep.subr.mxu0 0.0
    %4612 = vmatpush2.msra.mxu0 0.0
    %4613 = vmatprep.subr.mxu0 0.0
    %4614 = vmatpush2.msra.mxu0 0.0
    %4615 = vmatprep.subr.mxu0 0.0
    %4616 = vmatpush2.msra.mxu0 0.0
    %4617 = vmatprep.subr.mxu0 0.0
    %4618 = vmatpush2.msra.mxu0 0.0
    %4619 = vmatprep.subr.mxu0 0.0
    %4620 = vmatpush2.msra.mxu0 0.0
    %4621 = vmatprep.subr.mxu0 0.0
    %4622 = vmatpush2.msra.mxu0 0.0
    %4623 = vmatprep.subr.mxu0 0.0
    %4624 = vmatpush2.msra.mxu0 0.0
    %4625 = vmatprep.subr.mxu0 0.0
    %4626 = vmatpush2.msra.mxu0 0.0
    %4627 = vmatprep.subr.mxu0 0.0
    %4628 = vmatpush2.msra.mxu0 0.0
    %4629 = vmatprep.subr.mxu0 0.0
    %4630 = vmatpush2.msra.mxu0 0.0
    %4631 = vmatprep.mubr.f32.mxu0 0.0
    %4632 = vmatmul.mubr.f32.gmra.mxu0 %v4543
    %v4633 = vpop.f32.mrf.mxu0
    %v4634 = vadd.f32 %v4565, %v4633
    %v4635 = vpop.f32.mrf.mxu0
    %4636 = vdwg.mxu0
    %v4637 = vmax.f32 %v4634, 0.0
    %v4638 = vld [vmem:[#allocation6] sm:$0xff]
    %v4639 = vld [vmem:[#allocation6 + $0x8] sm:$0xff]
    %v4640 = vld [vmem:[#allocation6 + $0x10] sm:$0xff]
    %v4641 = vld [vmem:[#allocation6 + $0x18] sm:$0xff]
    %v4642 = vld [vmem:[#allocation6 + $0x20] sm:$0xff]
    %v4643 = vld [vmem:[#allocation6 + $0x28] sm:$0xff]
    %v4644 = vld [vmem:[#allocation6 + $0x30] sm:$0xff]
    %v4645 = vld [vmem:[#allocation6 + $0x38] sm:$0xff]
    %v4646 = vld [vmem:[#allocation6 + $0x40] sm:$0xff]
    %v4647 = vld [vmem:[#allocation6 + $0x48] sm:$0xff]
    %v4648 = vld [vmem:[#allocation6 + $0x50] sm:$0xff]
    %v4649 = vld [vmem:[#allocation6 + $0x58] sm:$0xff]
    %v4650 = vld [vmem:[#allocation6 + $0x60] sm:$0xff]
    %v4651 = vld [vmem:[#allocation6 + $0x68] sm:$0xff]
    %v4652 = vld [vmem:[#allocation6 + $0x70] sm:$0xff]
    %v4653 = vld [vmem:[#allocation6 + $0x78] sm:$0xff]
    %v4654 = vld [vmem:[%s12] sm:$0x1]
    %v4656 = vlaneseq
    %v4657 = vshrl.u32 %v4656, 7
    %v4658 = vsub.s32 0, %v4657
    %v4659 = vrot.slane %v4654, %v4658
    %4661 = vmatprep.subr.mxu0 0.0
    %4662 = vmatpush1.msra.mxu0 %v4653
    %4663 = vmatprep.subr.mxu0 0.0
    %4664 = vmatpush1.msra.mxu0 %v4652
    %4665 = vmatprep.subr.mxu0 0.0
    %4666 = vmatpush1.msra.mxu0 %v4651
    %4667 = vmatprep.subr.mxu0 0.0
    %4668 = vmatpush1.msra.mxu0 %v4650
    %4669 = vmatprep.subr.mxu0 0.0
    %4670 = vmatpush1.msra.mxu0 %v4649
    %4671 = vmatprep.subr.mxu0 0.0
    %4672 = vmatpush1.msra.mxu0 %v4648
    %4673 = vmatprep.subr.mxu0 0.0
    %4674 = vmatpush1.msra.mxu0 %v4647
    %4675 = vmatprep.subr.mxu0 0.0
    %4676 = vmatpush1.msra.mxu0 %v4646
    %4677 = vmatprep.subr.mxu0 0.0
    %4678 = vmatpush1.msra.mxu0 %v4645
    %4679 = vmatprep.subr.mxu0 0.0
    %4680 = vmatpush1.msra.mxu0 %v4644
    %4681 = vmatprep.subr.mxu0 0.0
    %4682 = vmatpush1.msra.mxu0 %v4643
    %4683 = vmatprep.subr.mxu0 0.0
    %4684 = vmatpush1.msra.mxu0 %v4642
    %4685 = vmatprep.subr.mxu0 0.0
    %4686 = vmatpush1.msra.mxu0 %v4641
    %4687 = vmatprep.subr.mxu0 0.0
    %4688 = vmatpush1.msra.mxu0 %v4640
    %4689 = vmatprep.subr.mxu0 0.0
    %4690 = vmatpush1.msra.mxu0 %v4639
    %4691 = vmatprep.subr.mxu0 0.0
    %4692 = vmatpush1.msra.mxu0 %v4638
    %4693 = vmatprep.subr.mxu0 0.0
    %4694 = vmatpush2.msra.mxu0 0.0
    %4695 = vmatprep.subr.mxu0 0.0
    %4696 = vmatpush2.msra.mxu0 0.0
    %4697 = vmatprep.subr.mxu0 0.0
    %4698 = vmatpush2.msra.mxu0 0.0
    %4699 = vmatprep.subr.mxu0 0.0
    %4700 = vmatpush2.msra.mxu0 0.0
    %4701 = vmatprep.subr.mxu0 0.0
    %4702 = vmatpush2.msra.mxu0 0.0
    %4703 = vmatprep.subr.mxu0 0.0
    %4704 = vmatpush2.msra.mxu0 0.0
    %4705 = vmatprep.subr.mxu0 0.0
    %4706 = vmatpush2.msra.mxu0 0.0
    %4707 = vmatprep.subr.mxu0 0.0
    %4708 = vmatpush2.msra.mxu0 0.0
    %4709 = vmatprep.subr.mxu0 0.0
    %4710 = vmatpush2.msra.mxu0 0.0
    %4711 = vmatprep.subr.mxu0 0.0
    %4712 = vmatpush2.msra.mxu0 0.0
    %4713 = vmatprep.subr.mxu0 0.0
    %4714 = vmatpush2.msra.mxu0 0.0
    %4715 = vmatprep.subr.mxu0 0.0
    %4716 = vmatpush2.msra.mxu0 0.0
    %4717 = vmatprep.subr.mxu0 0.0
    %4718 = vmatpush2.msra.mxu0 0.0
    %4719 = vmatprep.subr.mxu0 0.0
    %4720 = vmatpush2.msra.mxu0 0.0
    %4721 = vmatprep.subr.mxu0 0.0
    %4722 = vmatpush2.msra.mxu0 0.0
    %4723 = vmatprep.subr.mxu0 0.0
    %4724 = vmatpush2.msra.mxu0 0.0
    %4725 = vmatprep.mubr.f32.mxu0 0.0
    %4726 = vmatmul.mubr.f32.gmra.mxu0 %v4637
    %v4727 = vpop.f32.mrf.mxu0
    %v4728 = vadd.f32 %v4659, %v4727
    %v4729 = vpop.f32.mrf.mxu0
    %4730 = vdwg.mxu0
    %4731 = vst [vmem:[%s13] sm:$0xff] %v4728
    // Predicated region
    $region66: #{net_forward.1} parent=1 // pred_check
      _
    $region67: #{net_forward.1} parent=1 // pred_check_branch
      %4733 = sbr.rel (0) target = $region69
    $region68: #{net_forward.1} parent=1 // pred_region
      _
    $region69: #{net_forward.1} parent=1 // pred_fallthru
      _
    // Predicated region
    $region70: #{net_forward.1} parent=1 // pred_check
      _
    $region71: #{net_forward.1} parent=1 // pred_check_branch
      %4735 = sbr.rel (0) target = $region73
    $region72: #{net_forward.1} parent=1 // pred_region
      _
    $region73: #{net_forward.1} parent=1 // pred_fallthru
      _
    %4736 = vsyncpa [#allocation3], 1
    %4737 = vsyncpa [#allocation5], 1

</llo_original>
